<compile_context>
chip_gen: v7x
topology: tpu7x:2x2x1
jax: 0.10.0
libtpu: 0.0.40
codegen_flags: <defaults>
</compile_context>

<pallas_src>
import functools

import jax
import jax.numpy as jnp
from jax.experimental import pallas as pl
from jax.experimental.pallas import tpu as pltpu

_SQRT_2 = 1.4142135623730951
_GN_EPS = 1e-5


# --------------------------------------------------------------------------
# elementwise helpers (VPU ops + one EUP transcendental per element)
# --------------------------------------------------------------------------
def _erf(x):
    # Abramowitz & Stegun 7.1.26 rational approximation, |err| < 1.5e-7.
    a1, a2, a3, a4, a5 = 0.254829592, -0.284496736, 1.421413741, -1.453152027, 1.061405429
    p = 0.3275911
    ax = jnp.abs(x)
    t = 1.0 / (1.0 + p * ax)
    poly = ((((a5 * t + a4) * t + a3) * t + a2) * t + a1) * t
    y = 1.0 - poly * jnp.exp(-ax * ax)
    return jnp.where(x >= 0, y, -y)


def _gelu(x, tanh_approx):
    if tanh_approx:
        # cheaper on v5e (tanh -> EUP slot, fewer VALU ops); ~1e-3 abs deviation.
        return 0.5 * x * (1.0 + jnp.tanh(0.7978845608028654 * (x + 0.044715 * x * x * x)))
    return 0.5 * x * (1.0 + _erf(x / _SQRT_2))   # exact-erf GELU (torch default)


def _gn_stats(x2d, cg, gc):
    """GroupNorm statistics for one sample.

    x2d: (S, C)  all spatial positions of the sample, channels on lanes.
    cg:  (C, G)  0/1 channel->group indicator.
    gc:  (G, C)  group->channel indicator pre-scaled by 1/(S*Cg) in f32.
    Returns (x - mean, rsqrt(var + eps)); biased variance as in torch GroupNorm.
    """
    f32 = jnp.float32
    s1 = jnp.sum(x2d, axis=0, keepdims=True)                           # (1, C)
    mean_c = jnp.dot(jnp.dot(s1, cg, preferred_element_type=f32), gc,
                     preferred_element_type=f32)                       # (1, C)
    d = x2d - mean_c
    s2 = jnp.sum(d * d, axis=0, keepdims=True)
    var_c = jnp.dot(jnp.dot(s2, cg, preferred_element_type=f32), gc,
                    preferred_element_type=f32)
    return d, jax.lax.rsqrt(var_c + _GN_EPS)


# --------------------------------------------------------------------------
# fused residual-block kernel (one batch element per grid step)
# --------------------------------------------------------------------------
def _residual_block_kernel(
        xp_ref,
        cg1_ref, gc1_ref, g1_ref, b1g_ref, w1_ref, b1_ref,
        cg2_ref, gc2_ref, g2_ref, b2g_ref, w2_ref, b2_ref,
        gp_ref, bpg_ref, wp_ref, bp_ref,
        o_ref,
        ypad_ref, col1_ref, hpad_ref, col2_ref,
        *, ho, wo, cin, cout, gelu_tanh):
    f32 = jnp.float32
    mm_dt = ypad_ref.dtype
    hop1, wop1 = ypad_ref.shape[2], ypad_ref.shape[3]
    hop2, wop2 = hpad_ref.shape[0], hpad_ref.shape[1]

    # ---- zero only the pad border; the interiors are fully rewritten below. ----
    # Done every step (cost ~O((ho+wo)*C)): with dimension_semantics=("parallel",)
    # each TensorCore owns a disjoint program_id range and its own scratch, so a
    # `program_id == 0` guard would leave one core's pad ring uninitialized.
    ypad_ref[:, :, 0:1, :, :] = jnp.zeros((2, 2, 1, wop1, cin), mm_dt)
    ypad_ref[:, :, :, 0:1, :] = jnp.zeros((2, 2, hop1, 1, cin), mm_dt)
    hpad_ref[0:1, :, :] = jnp.zeros((1, wop2, cout), mm_dt)
    hpad_ref[ho + 1:ho + 2, :, :] = jnp.zeros((1, wop2, cout), mm_dt)
    hpad_ref[:, 0:1, :] = jnp.zeros((hop2, 1, cout), mm_dt)
    hpad_ref[:, wo + 1:wo + 2, :] = jnp.zeros((hop2, 1, cout), mm_dt)

    # ---- shared GroupNorm of the input (GN1 and gn_proj differ only in affine) --
    x2d = xp_ref[...].reshape(4 * ho * wo, cin)          # row order (pi, pj, i, j)
    d, rstd = _gn_stats(x2d, cg1_ref[...], gc1_ref[...])
    xn = d * rstd                                        # normalized, no affine yet

    # ---- main branch, stage 1: GN1 affine + GELU + 3x3 stride-2 conv (fused K) --
    y1 = _gelu(xn * g1_ref[...] + b1g_ref[...], gelu_tanh).astype(mm_dt)
    ypad_ref[:, :, 1:ho + 1, 1:wo + 1, :] = y1.reshape(2, 2, ho, wo, cin)
    for dh in range(3):
        pi = 0 if dh == 1 else 1        # H-parity plane holding row 2i+dh-1
        r0 = 0 if dh == 0 else 1        # 0 -> window includes the zero-pad row
        for dw in range(3):
            pj = 0 if dw == 1 else 1
            c0 = 0 if dw == 0 else 1
            t = 3 * dh + dw
            patch = ypad_ref[pi, pj, r0:r0 + ho, c0:c0 + wo, :]
            col1_ref[:, t * cin:(t + 1) * cin] = patch.reshape(ho * wo, cin)
    h = jnp.dot(col1_ref[...], w1_ref[...], preferred_element_type=f32) + b1_ref[...]

    # ---- main branch, stage 2: GN2 + GELU + 3x3 stride-1 conv (fused K) ---------
    d2, rstd2 = _gn_stats(h, cg2_ref[...], gc2_ref[...])
    y2 = _gelu(d2 * rstd2 * g2_ref[...] + b2g_ref[...], gelu_tanh).astype(mm_dt)
    hpad_ref[1:ho + 1, 1:wo + 1, :] = y2.reshape(ho, wo, cout)
    for dh in range(3):
        for dw in range(3):
            t = 3 * dh + dw
            patch = hpad_ref[dh:dh + ho, dw:dw + wo, :]
            col2_ref[:, t * cout:(t + 1) * cout] = patch.reshape(ho * wo, cout)
    main = jnp.dot(col2_ref[...], w2_ref[...], preferred_element_type=f32) + b2_ref[...]

    # ---- residual branch: gn_proj affine + 1x1 stride-2 conv --------------------
    # ::2, ::2 subsample == parity plane (0, 0) == the first ho*wo rows of xn.
    r = xn[0:ho * wo, :] * gp_ref[...] + bpg_ref[...]
    res = jnp.dot(r.astype(wp_ref.dtype), wp_ref[...],
                  preferred_element_type=f32) + bp_ref[...]

    # ---- write NCHW directly: one in-VMEM transpose -> lane-dense (cout, ho*wo) -
    o_ref[...] = jnp.transpose(main + res).reshape(o_ref.shape)


# --------------------------------------------------------------------------
# wrapper: layout prep (one input transpose), parameter packing, pallas_call
# --------------------------------------------------------------------------
def residual_block_forward(x_nchw, params, num_groups, *,
                           matmul_dtype=jnp.bfloat16, gelu_approx="erf"):
    """Forward pass of _ResidualBlock.

    x_nchw: (N, C//2, H, W) float32, NCHW (PyTorch layout).
    Returns (N, C, H//2, W//2) float32, NCHW.
    """
    N, cin, H, W = x_nchw.shape
    cout = params["conv1_w"].shape[0]
    G = num_groups
    assert H % 2 == 0 and W % 2 == 0, "spatial dims must be even"
    assert cin % G == 0 and cout % G == 0
    ho, wo = H // 2, W // 2
    f32 = jnp.float32

    # TODO(synk): for very large H*W add a spatial row-tile grid axis (with a
    #   1-row halo on the parity planes) so one block need not hold the whole
    #   image in VMEM (matters most on v7x's 64 MiB) and both v7x cores stay
    #   busy when N == 1.
    # TODO(synk): the NCHW->parity relayout below is one extra HBM round trip of
    #   x; when stacking blocks keep activations channels-last between blocks
    #   (or fuse the transpose into the input DMA via allow_input_fusion).
    x_par = jnp.transpose(
        x_nchw.astype(f32).reshape(N, cin, ho, 2, wo, 2), (0, 3, 5, 2, 4, 1))

    def group_maps(channels, spatial):
        cg = channels // G
        gid = jnp.arange(channels) // cg
        sel = (gid[:, None] == jnp.arange(G)[None, :]).astype(f32)   # (C, G)
        return sel, sel.T * (1.0 / float(spatial * cg))              # (G, C) scaled

    def conv3_taps(w):   # torch (Cout, Cin, 3, 3) -> (9*Cin, Cout); row = (3*dh+dw)*Cin+ci
        return (jnp.transpose(w, (2, 3, 1, 0))
                .reshape(9 * w.shape[1], w.shape[0]).astype(matmul_dtype))

    cg1, gc1 = group_maps(cin, H * W)        # GN1 / gn_proj share statistics
    cg2, gc2 = group_maps(cout, ho * wo)     # GN2
    g1 = params["gn1_w"].reshape(1, cin).astype(f32)
    b1g = params["gn1_b"].reshape(1, cin).astype(f32)
    g2 = params["gn2_w"].reshape(1, cout).astype(f32)
    b2g = params["gn2_b"].reshape(1, cout).astype(f32)
    gp = params["gnp_w"].reshape(1, cin).astype(f32)
    bpg = params["gnp_b"].reshape(1, cin).astype(f32)
    w1 = conv3_taps(params["conv1_w"])                                # (9*cin, cout)
    b1 = params["conv1_b"].reshape(1, cout).astype(f32)
    w2 = conv3_taps(params["conv2_w"])                                # (9*cout, cout)
    b2 = params["conv2_b"].reshape(1, cout).astype(f32)
    wp = params["convp_w"].reshape(cout, cin).T.astype(matmul_dtype)  # (cin, cout)
    bp = params["convp_b"].reshape(1, cout).astype(f32)

    # sublane-aligned pad scratches (second-minor dim rounded to the native tile)
    mm_bytes = jnp.dtype(matmul_dtype).itemsize
    sub = {4: 8, 2: 16, 1: 32}.get(mm_bytes, 8)
    wop1 = -(-(wo + 1) // sub) * sub
    wop2 = -(-(wo + 2) // sub) * sub

    # ---- VMEM limit: ~85% of this generation's capacity (v7x 64 MiB, else 128) --
    try:
        vmem_cap = int(pltpu.get_tpu_info().vmem_capacity_bytes)
    except Exception:   # conservative fallback that is safe on every generation
        vmem_cap = 64 * 1024 * 1024
    vmem_limit = int(0.85 * vmem_cap)

    param_bytes = (4 * (2 * cin * G + 2 * cout * G + 4 * cin + 5 * cout)
                   + mm_bytes * ((9 + 1) * cin * cout + 9 * cout * cout))
    flops = N * (18 * ho * wo * cin * cout            # 3x3 stride-2 conv
                 + 18 * ho * wo * cout * cout         # 3x3 stride-1 conv
                 + 2 * ho * wo * cin * cout           # 1x1 residual conv
                 + 30 * (H * W * cin + ho * wo * cout))   # GN + GELU (rough)
    transcendentals = N * (H * W * cin + ho * wo * cout)  # one exp/tanh per GELU elem
    bytes_accessed = 4 * N * (H * W * cin + ho * wo * cout) + param_bytes

    def inv_spec(shape):   # grid-invariant parameter: same full-array block each step
        # TODO(synk): single-buffer these with pipeline_mode=pl.Buffered(1) once
        #   that is universally supported (invariant blocks never re-DMA but are
        #   still double-buffered today).
        return pl.BlockSpec(shape, lambda n, _r=len(shape): (0,) * _r)

    kernel = functools.partial(_residual_block_kernel, ho=ho, wo=wo, cin=cin,
                               cout=cout, gelu_tanh=(gelu_approx == "tanh"))
    out = pl.pallas_call(
        kernel,
        out_shape=jax.ShapeDtypeStruct((N, cout, ho * wo), f32),
        grid=(N,),
        in_specs=[
            pl.BlockSpec((1, 2, 2, ho, wo, cin), lambda n: (n, 0, 0, 0, 0, 0)),
            inv_spec((cin, G)),          # cg1  (GN1 / gn_proj channel->group)
            inv_spec((G, cin)),          # gc1  (group->channel, scaled)
            inv_spec((1, cin)),          # gn1 gamma
            inv_spec((1, cin)),          # gn1 beta
            inv_spec((9 * cin, cout)),   # conv1 taps (K-fused)
            inv_spec((1, cout)),         # conv1 bias
            inv_spec((cout, G)),         # cg2
            inv_spec((G, cout)),         # gc2 (scaled)
            inv_spec((1, cout)),         # gn2 gamma
            inv_spec((1, cout)),         # gn2 beta
            inv_spec((9 * cout, cout)),  # conv2 taps (K-fused)
            inv_spec((1, cout)),         # conv2 bias
            inv_spec((1, cin)),          # gn_proj gamma
            inv_spec((1, cin)),          # gn_proj beta
            inv_spec((cin, cout)),       # conv_proj weight
            inv_spec((1, cout)),         # conv_proj bias
        ],
        out_specs=pl.BlockSpec((1, cout, ho * wo), lambda n: (n, 0, 0)),
        scratch_shapes=[
            pltpu.VMEM((2, 2, ho + 1, wop1, cin), matmul_dtype),   # padded parity planes
            pltpu.VMEM((ho * wo, 9 * cin), matmul_dtype),          # stage-1 im2col
            pltpu.VMEM((ho + 2, wop2, cout), matmul_dtype),        # padded stage-2 input
            pltpu.VMEM((ho * wo, 9 * cout), matmul_dtype),         # stage-2 im2col
        ],
        compiler_params=pltpu.CompilerParams(
            dimension_semantics=("parallel",),   # batch split across TensorCores
            vmem_limit_bytes=vmem_limit),
        cost_estimate=pl.CostEstimate(flops=int(flops),
                                      transcendentals=int(transcendentals),
                                      bytes_accessed=int(bytes_accessed)),
    )(x_par, cg1, gc1, g1, b1g, w1, b1, cg2, gc2, g2, b2g, w2, b2, gp, bpg, wp, bp)

    return out.reshape(N, cout, ho, wo)      # kernel already wrote NCHW; reshape is free


# --------------------------------------------------------------------------
# pure-JAX (XLA) reference with the same intended semantics
# --------------------------------------------------------------------------
def _reference_forward(x, params, num_groups):
    def gn(v, w, b):
        n, c, h, wd = v.shape
        g = num_groups
        vg = v.reshape(n, g, c // g, h, wd)
        m = vg.mean(axis=(2, 3, 4), keepdims=True)
        var = ((vg - m) ** 2).mean(axis=(2, 3, 4), keepdims=True)
        vn = ((vg - m) / jnp.sqrt(var + _GN_EPS)).reshape(n, c, h, wd)
        return vn * w.reshape(1, c, 1, 1) + b.reshape(1, c, 1, 1)

    def conv(v, w, b, stride):
        pad = 1 if w.shape[-1] == 3 else 0
        y = jax.lax.conv_general_dilated(
            v, w, (stride, stride), [(pad, pad), (pad, pad)],
            dimension_numbers=("NCHW", "OIHW", "NCHW"),
            precision=jax.lax.Precision.HIGHEST)
        return y + b.reshape(1, -1, 1, 1)

    h = gn(x, params["gn1_w"], params["gn1_b"])
    h = jax.nn.gelu(h, approximate=False)
    h = conv(h, params["conv1_w"], params["conv1_b"], 2)
    h = gn(h, params["gn2_w"], params["gn2_b"])
    h = jax.nn.gelu(h, approximate=False)
    h = conv(h, params["conv2_w"], params["conv2_b"], 1)
    r = gn(x, params["gnp_w"], params["gnp_b"])
    r = conv(r, params["convp_w"], params["convp_b"], 2)
    return h + r


# --------------------------------------------------------------------------
# parameter init (matches the PyTorch module's parameter shapes)
# --------------------------------------------------------------------------
def init_params(key, num_channels, num_groups):
    C = num_channels
    Cin = C // 2
    ks = jax.random.split(key, 12)

    def u(k, shape, fan_in):
        bound = 1.0 / (fan_in ** 0.5)
        return jax.random.uniform(k, shape, jnp.float32, -bound, bound)

    return dict(
        # model[0]: GroupNorm(groups, C//2)
        gn1_w=1.0 + 0.1 * jax.random.normal(ks[0], (Cin,), jnp.float32),
        gn1_b=0.1 * jax.random.normal(ks[1], (Cin,), jnp.float32),
        # model[2]: Conv2d(C//2, C, 3, stride=2, padding=1)
        conv1_w=u(ks[2], (C, Cin, 3, 3), Cin * 9),
        conv1_b=u(ks[3], (C,), Cin * 9),
        # model[3]: GroupNorm(groups, C)
        gn2_w=1.0 + 0.1 * jax.random.normal(ks[4], (C,), jnp.float32),
        gn2_b=0.1 * jax.random.normal(ks[5], (C,), jnp.float32),
        # model[5]: Conv2d(C, C, 3, stride=1, padding=1)
        conv2_w=u(ks[6], (C, C, 3, 3), C * 9),
        conv2_b=u(ks[7], (C,), C * 9),
        # gn_proj / conv_proj (intended C//2 -> C projection, see TODO(synk))
        gnp_w=1.0 + 0.1 * jax.random.normal(ks[8], (Cin,), jnp.float32),
        gnp_b=0.1 * jax.random.normal(ks[9], (Cin,), jnp.float32),
        convp_w=u(ks[10], (C, Cin, 1, 1), Cin),
        convp_b=u(ks[11], (C,), Cin),
    )


if __name__ == "__main__":
    num_channels, num_groups = 8, 2
    N, H, W = 2, 16, 16

    key = jax.random.PRNGKey(0)
    kx, kp = jax.random.split(key)
    x = jax.random.normal(kx, (N, num_channels // 2, H, W), jnp.float32)   # NCHW
    params = init_params(kp, num_channels, num_groups)

    fwd = jax.jit(functools.partial(residual_block_forward, num_groups=num_groups))
    out = jax.block_until_ready(fwd(x, params))

    assert out.shape == (N, num_channels, H // 2, W // 2), out.shape
    assert bool(jnp.all(jnp.isfinite(out)))

    ref = jax.block_until_ready(_reference_forward(x, params, num_groups))
    max_err = float(jnp.max(jnp.abs(out - ref)))
    assert max_err < 5e-2, f"max |kernel - reference| = {max_err}"
    print("KERNEL_OK")
</pallas_src>

<mosaic_0001>
module attributes {stable_mosaic.version = 11 : i64} {
  func.func @_residual_block_kernel(%arg0: i32, %arg1: memref<1x2x2x8x8x4xf32, #tpu.memory_space<vmem>>, %arg2: memref<4x2xf32, #tpu.memory_space<vmem>>, %arg3: memref<2x4xf32, #tpu.memory_space<vmem>>, %arg4: memref<1x4xf32, #tpu.memory_space<vmem>>, %arg5: memref<1x4xf32, #tpu.memory_space<vmem>>, %arg6: memref<36x8xbf16, #tpu.memory_space<vmem>>, %arg7: memref<1x8xf32, #tpu.memory_space<vmem>>, %arg8: memref<8x2xf32, #tpu.memory_space<vmem>>, %arg9: memref<2x8xf32, #tpu.memory_space<vmem>>, %arg10: memref<1x8xf32, #tpu.memory_space<vmem>>, %arg11: memref<1x8xf32, #tpu.memory_space<vmem>>, %arg12: memref<72x8xbf16, #tpu.memory_space<vmem>>, %arg13: memref<1x8xf32, #tpu.memory_space<vmem>>, %arg14: memref<1x4xf32, #tpu.memory_space<vmem>>, %arg15: memref<1x4xf32, #tpu.memory_space<vmem>>, %arg16: memref<4x8xbf16, #tpu.memory_space<vmem>>, %arg17: memref<1x8xf32, #tpu.memory_space<vmem>>, %arg18: memref<1x8x64xf32, #tpu.memory_space<vmem>>, %arg19: memref<2x2x9x16x4xbf16, #tpu.memory_space<vmem>>, %arg20: memref<64x36xbf16, #tpu.memory_space<vmem>>, %arg21: memref<10x16x8xbf16, #tpu.memory_space<vmem>>, %arg22: memref<64x72xbf16, #tpu.memory_space<vmem>>) attributes {dimension_semantics = [#tpu.dimension_semantics<parallel>], iteration_bounds = array<i64: 2>, scalar_prefetch = 0 : i64, scratch_operands = 4 : i64, tpu.core_type = #tpu.core_type<tc>, window_params = [{transform_indices = @transform_0, window_bounds = array<i64: 1, 2, 2, 8, 8, 4>}, {pipeline_mode = #tpu.pipeline_mode<synchronous>, transform_indices = @transform_1, window_bounds = array<i64: 4, 2>}, {pipeline_mode = #tpu.pipeline_mode<synchronous>, transform_indices = @transform_2, window_bounds = array<i64: 2, 4>}, {pipeline_mode = #tpu.pipeline_mode<synchronous>, transform_indices = @transform_3, window_bounds = array<i64: 1, 4>}, {pipeline_mode = #tpu.pipeline_mode<synchronous>, transform_indices = @transform_4, window_bounds = array<i64: 1, 4>}, {pipeline_mode = #tpu.pipeline_mode<synchronous>, transform_indices = @transform_5, window_bounds = array<i64: 36, 8>}, {pipeline_mode = #tpu.pipeline_mode<synchronous>, transform_indices = @transform_6, window_bounds = array<i64: 1, 8>}, {pipeline_mode = #tpu.pipeline_mode<synchronous>, transform_indices = @transform_7, window_bounds = array<i64: 8, 2>}, {pipeline_mode = #tpu.pipeline_mode<synchronous>, transform_indices = @transform_8, window_bounds = array<i64: 2, 8>}, {pipeline_mode = #tpu.pipeline_mode<synchronous>, transform_indices = @transform_9, window_bounds = array<i64: 1, 8>}, {pipeline_mode = #tpu.pipeline_mode<synchronous>, transform_indices = @transform_10, window_bounds = array<i64: 1, 8>}, {pipeline_mode = #tpu.pipeline_mode<synchronous>, transform_indices = @transform_11, window_bounds = array<i64: 72, 8>}, {pipeline_mode = #tpu.pipeline_mode<synchronous>, transform_indices = @transform_12, window_bounds = array<i64: 1, 8>}, {pipeline_mode = #tpu.pipeline_mode<synchronous>, transform_indices = @transform_13, window_bounds = array<i64: 1, 4>}, {pipeline_mode = #tpu.pipeline_mode<synchronous>, transform_indices = @transform_14, window_bounds = array<i64: 1, 4>}, {pipeline_mode = #tpu.pipeline_mode<synchronous>, transform_indices = @transform_15, window_bounds = array<i64: 4, 8>}, {pipeline_mode = #tpu.pipeline_mode<synchronous>, transform_indices = @transform_16, window_bounds = array<i64: 1, 8>}, {transform_indices = @transform_17, window_bounds = array<i64: 1, 8, 64>}]} {
    %cst = arith.constant 0.000000e+00 : bf16
    %0 = vector.broadcast %cst : bf16 to vector<2x2x1x16x4xbf16>
    %c0 = arith.constant 0 : index
    %c0_0 = arith.constant 0 : index
    %c0_1 = arith.constant 0 : index
    %c0_2 = arith.constant 0 : index
    %c0_3 = arith.constant 0 : index
    %1 = vector.load %arg19[%c0, %c0_0, %c0_1, %c0_2, %c0_3] : memref<2x2x9x16x4xbf16, #tpu.memory_space<vmem>>, vector<2x2x1x16x4xbf16>
    tpu.vector_store %arg19[%c0, %c0_0, %c0_1, %c0_2, %c0_3], %0 {strides = array<i32>} : memref<2x2x9x16x4xbf16, #tpu.memory_space<vmem>>, vector<2x2x1x16x4xbf16>,
    %cst_4 = arith.constant 0.000000e+00 : bf16
    %2 = vector.broadcast %cst_4 : bf16 to vector<2x2x9x1x4xbf16>
    %c0_5 = arith.constant 0 : index
    %c0_6 = arith.constant 0 : index
    %c0_7 = arith.constant 0 : index
    %c0_8 = arith.constant 0 : index
    %c0_9 = arith.constant 0 : index
    %3 = vector.load %arg19[%c0_5, %c0_6, %c0_7, %c0_8, %c0_9] : memref<2x2x9x16x4xbf16, #tpu.memory_space<vmem>>, vector<2x2x9x1x4xbf16>
    tpu.vector_store %arg19[%c0_5, %c0_6, %c0_7, %c0_8, %c0_9], %2 {strides = array<i32>} : memref<2x2x9x16x4xbf16, #tpu.memory_space<vmem>>, vector<2x2x9x1x4xbf16>,
    %cst_10 = arith.constant 0.000000e+00 : bf16
    %4 = vector.broadcast %cst_10 : bf16 to vector<1x16x8xbf16>
    %c0_11 = arith.constant 0 : index
    %c0_12 = arith.constant 0 : index
    %c0_13 = arith.constant 0 : index
    %5 = vector.load %arg21[%c0_11, %c0_12, %c0_13] : memref<10x16x8xbf16, #tpu.memory_space<vmem>>, vector<1x16x8xbf16>
    tpu.vector_store %arg21[%c0_11, %c0_12, %c0_13], %4 {strides = array<i32>} : memref<10x16x8xbf16, #tpu.memory_space<vmem>>, vector<1x16x8xbf16>,
    %cst_14 = arith.constant 0.000000e+00 : bf16
    %6 = vector.broadcast %cst_14 : bf16 to vector<1x16x8xbf16>
    %c9 = arith.constant 9 : index
    %c0_15 = arith.constant 0 : index
    %c0_16 = arith.constant 0 : index
    %7 = vector.load %arg21[%c9, %c0_15, %c0_16] : memref<10x16x8xbf16, #tpu.memory_space<vmem>>, vector<1x16x8xbf16>
    tpu.vector_store %arg21[%c9, %c0_15, %c0_16], %6 {strides = array<i32>} : memref<10x16x8xbf16, #tpu.memory_space<vmem>>, vector<1x16x8xbf16>,
    %cst_17 = arith.constant 0.000000e+00 : bf16
    %8 = vector.broadcast %cst_17 : bf16 to vector<10x1x8xbf16>
    %c0_18 = arith.constant 0 : index
    %c0_19 = arith.constant 0 : index
    %c0_20 = arith.constant 0 : index
    %9 = vector.load %arg21[%c0_18, %c0_19, %c0_20] : memref<10x16x8xbf16, #tpu.memory_space<vmem>>, vector<10x1x8xbf16>
    tpu.vector_store %arg21[%c0_18, %c0_19, %c0_20], %8 {strides = array<i32>} : memref<10x16x8xbf16, #tpu.memory_space<vmem>>, vector<10x1x8xbf16>,
    %cst_21 = arith.constant 0.000000e+00 : bf16
    %10 = vector.broadcast %cst_21 : bf16 to vector<10x1x8xbf16>
    %c0_22 = arith.constant 0 : index
    %c9_23 = arith.constant 9 : index
    %c0_24 = arith.constant 0 : index
    %11 = vector.load %arg21[%c0_22, %c9_23, %c0_24] : memref<10x16x8xbf16, #tpu.memory_space<vmem>>, vector<10x1x8xbf16>
    tpu.vector_store %arg21[%c0_22, %c9_23, %c0_24], %10 {strides = array<i32>} : memref<10x16x8xbf16, #tpu.memory_space<vmem>>, vector<10x1x8xbf16>,
    %c0_25 = arith.constant 0 : index
    %c0_26 = arith.constant 0 : index
    %c0_27 = arith.constant 0 : index
    %c0_28 = arith.constant 0 : index
    %c0_29 = arith.constant 0 : index
    %c0_30 = arith.constant 0 : index
    %12 = vector.load %arg1[%c0_25, %c0_26, %c0_27, %c0_28, %c0_29, %c0_30] : memref<1x2x2x8x8x4xf32, #tpu.memory_space<vmem>>, vector<1x2x2x8x8x4xf32>
    %13 = vector.shape_cast %12 : vector<1x2x2x8x8x4xf32> to vector<256x4xf32>
    %c0_31 = arith.constant 0 : index
    %c0_32 = arith.constant 0 : index
    %14 = vector.load %arg2[%c0_31, %c0_32] : memref<4x2xf32, #tpu.memory_space<vmem>>, vector<4x2xf32>
    %c0_33 = arith.constant 0 : index
    %c0_34 = arith.constant 0 : index
    %15 = vector.load %arg3[%c0_33, %c0_34] : memref<2x4xf32, #tpu.memory_space<vmem>>, vector<2x4xf32>
    %cst_35 = arith.constant dense<0.000000e+00> : vector<4xf32>
    %16 = vector.multi_reduction <add>, %13, %cst_35 [0] : vector<256x4xf32> to vector<4xf32>
    %17 = vector.shape_cast %16 : vector<4xf32> to vector<1x4xf32>
    %cst_36 = arith.constant dense<0.000000e+00> : vector<1x2xf32>
    %18 = tpu.matmul %17, %14, %cst_36 {dimension_numbers = #tpu.dot_dimension_numbers<[1], [0], [0], [1], [0, 0, 1, 1], [], []>} : vector<1x4xf32>, vector<4x2xf32>, vector<1x2xf32> -> vector<1x2xf32>
    %cst_37 = arith.constant dense<0.000000e+00> : vector<1x4xf32>
    %19 = tpu.matmul %18, %15, %cst_37 {dimension_numbers = #tpu.dot_dimension_numbers<[1], [0], [0], [1], [0, 0, 1, 1], [], []>} : vector<1x2xf32>, vector<2x4xf32>, vector<1x4xf32> -> vector<1x4xf32>
    %20 = vector.broadcast %19 : vector<1x4xf32> to vector<256x4xf32>
    %21 = arith.subf %13, %20 : vector<256x4xf32>
    %22 = arith.mulf %21, %21 : vector<256x4xf32>
    %cst_38 = arith.constant dense<0.000000e+00> : vector<4xf32>
    %23 = vector.multi_reduction <add>, %22, %cst_38 [0] : vector<256x4xf32> to vector<4xf32>
    %24 = vector.shape_cast %23 : vector<4xf32> to vector<1x4xf32>
    %cst_39 = arith.constant dense<0.000000e+00> : vector<1x2xf32>
    %25 = tpu.matmul %24, %14, %cst_39 {dimension_numbers = #tpu.dot_dimension_numbers<[1], [0], [0], [1], [0, 0, 1, 1], [], []>} : vector<1x4xf32>, vector<4x2xf32>, vector<1x2xf32> -> vector<1x2xf32>
    %cst_40 = arith.constant dense<0.000000e+00> : vector<1x4xf32>
    %26 = tpu.matmul %25, %15, %cst_40 {dimension_numbers = #tpu.dot_dimension_numbers<[1], [0], [0], [1], [0, 0, 1, 1], [], []>} : vector<1x2xf32>, vector<2x4xf32>, vector<1x4xf32> -> vector<1x4xf32>
    %cst_41 = arith.constant 9.99999974E-6 : f32
    %27 = vector.broadcast %cst_41 : f32 to vector<1x4xf32>
    %28 = arith.addf %26, %27 : vector<1x4xf32>
    %29 = math.rsqrt %28 : vector<1x4xf32>
    %30 = vector.broadcast %29 : vector<1x4xf32> to vector<256x4xf32>
    %31 = arith.mulf %21, %30 : vector<256x4xf32>
    %c0_42 = arith.constant 0 : index
    %c0_43 = arith.constant 0 : index
    %32 = vector.load %arg4[%c0_42, %c0_43] : memref<1x4xf32, #tpu.memory_space<vmem>>, vector<1x4xf32>
    %33 = vector.broadcast %32 : vector<1x4xf32> to vector<256x4xf32>
    %34 = arith.mulf %31, %33 : vector<256x4xf32>
    %c0_44 = arith.constant 0 : index
    %c0_45 = arith.constant 0 : index
    %35 = vector.load %arg5[%c0_44, %c0_45] : memref<1x4xf32, #tpu.memory_space<vmem>>, vector<1x4xf32>
    %36 = vector.broadcast %35 : vector<1x4xf32> to vector<256x4xf32>
    %37 = arith.addf %34, %36 : vector<256x4xf32>
    %cst_46 = arith.constant 5.000000e-01 : f32
    %38 = vector.broadcast %cst_46 : f32 to vector<256x4xf32>
    %39 = arith.mulf %38, %37 : vector<256x4xf32>
    %cst_47 = arith.constant 1.41421354 : f32
    %40 = vector.broadcast %cst_47 : f32 to vector<256x4xf32>
    %41 = arith.divf %37, %40 : vector<256x4xf32>
    %42 = math.absf %41 : vector<256x4xf32>
    %cst_48 = arith.constant 0.327591091 : f32
    %43 = vector.broadcast %cst_48 : f32 to vector<256x4xf32>
    %44 = arith.mulf %43, %42 : vector<256x4xf32>
    %cst_49 = arith.constant 1.000000e+00 : f32
    %45 = vector.broadcast %cst_49 : f32 to vector<256x4xf32>
    %46 = arith.addf %45, %44 : vector<256x4xf32>
    %cst_50 = arith.constant 1.000000e+00 : f32
    %47 = vector.broadcast %cst_50 : f32 to vector<256x4xf32>
    %48 = arith.divf %47, %46 : vector<256x4xf32>
    %cst_51 = arith.constant 1.06140542 : f32
    %49 = vector.broadcast %cst_51 : f32 to vector<256x4xf32>
    %50 = arith.mulf %49, %48 : vector<256x4xf32>
    %cst_52 = arith.constant -1.45315206 : f32
    %51 = vector.broadcast %cst_52 : f32 to vector<256x4xf32>
    %52 = arith.addf %50, %51 : vector<256x4xf32>
    %53 = arith.mulf %52, %48 : vector<256x4xf32>
    %cst_53 = arith.constant 1.42141378 : f32
    %54 = vector.broadcast %cst_53 : f32 to vector<256x4xf32>
    %55 = arith.addf %53, %54 : vector<256x4xf32>
    %56 = arith.mulf %55, %48 : vector<256x4xf32>
    %cst_54 = arith.constant -0.284496725 : f32
    %57 = vector.broadcast %cst_54 : f32 to vector<256x4xf32>
    %58 = arith.addf %56, %57 : vector<256x4xf32>
    %59 = arith.mulf %58, %48 : vector<256x4xf32>
    %cst_55 = arith.constant 0.254829586 : f32
    %60 = vector.broadcast %cst_55 : f32 to vector<256x4xf32>
    %61 = arith.addf %59, %60 : vector<256x4xf32>
    %62 = arith.mulf %61, %48 : vector<256x4xf32>
    %cst_56 = arith.constant 0.000000e+00 : f32
    %63 = vector.broadcast %cst_56 : f32 to vector<256x4xf32>
    %64 = arith.subf %63, %42 : vector<256x4xf32>
    %65 = arith.mulf %64, %42 : vector<256x4xf32>
    %66 = math.exp %65 : vector<256x4xf32>
    %67 = arith.mulf %62, %66 : vector<256x4xf32>
    %cst_57 = arith.constant 1.000000e+00 : f32
    %68 = vector.broadcast %cst_57 : f32 to vector<256x4xf32>
    %69 = arith.subf %68, %67 : vector<256x4xf32>
    %cst_58 = arith.constant 0.000000e+00 : f32
    %70 = vector.broadcast %cst_58 : f32 to vector<256x4xf32>
    %71 = arith.cmpf oge, %41, %70 : vector<256x4xf32>
    %cst_59 = arith.constant 0.000000e+00 : f32
    %72 = vector.broadcast %cst_59 : f32 to vector<256x4xf32>
    %73 = arith.subf %72, %69 : vector<256x4xf32>
    %74 = arith.select %71, %69, %73 : vector<256x4xi1>, vector<256x4xf32>
    %cst_60 = arith.constant 1.000000e+00 : f32
    %75 = vector.broadcast %cst_60 : f32 to vector<256x4xf32>
    %76 = arith.addf %75, %74 : vector<256x4xf32>
    %77 = arith.mulf %39, %76 : vector<256x4xf32>
    %78 = arith.truncf %77 : vector<256x4xf32> to vector<256x4xbf16>
    %79 = vector.shape_cast %78 : vector<256x4xbf16> to vector<2x2x8x8x4xbf16>
    %c0_61 = arith.constant 0 : index
    %c0_62 = arith.constant 0 : index
    %c1 = arith.constant 1 : index
    %c1_63 = arith.constant 1 : index
    %c0_64 = arith.constant 0 : index
    %80 = vector.load %arg19[%c0_61, %c0_62, %c1, %c1_63, %c0_64] : memref<2x2x9x16x4xbf16, #tpu.memory_space<vmem>>, vector<2x2x8x8x4xbf16>
    tpu.vector_store %arg19[%c0_61, %c0_62, %c1, %c1_63, %c0_64], %79 {strides = array<i32>} : memref<2x2x9x16x4xbf16, #tpu.memory_space<vmem>>, vector<2x2x8x8x4xbf16>,
    %c1_65 = arith.constant 1 : index
    %c1_66 = arith.constant 1 : index
    %c0_67 = arith.constant 0 : index
    %c0_68 = arith.constant 0 : index
    %c0_69 = arith.constant 0 : index
    %81 = vector.load %arg19[%c1_65, %c1_66, %c0_67, %c0_68, %c0_69] : memref<2x2x9x16x4xbf16, #tpu.memory_space<vmem>>, vector<1x1x8x8x4xbf16>
    %82 = vector.shape_cast %81 : vector<1x1x8x8x4xbf16> to vector<8x8x4xbf16>
    %83 = vector.shape_cast %82 : vector<8x8x4xbf16> to vector<64x4xbf16>
    %c0_70 = arith.constant 0 : index
    %c0_71 = arith.constant 0 : index
    %84 = vector.load %arg20[%c0_70, %c0_71] : memref<64x36xbf16, #tpu.memory_space<vmem>>, vector<64x4xbf16>
    tpu.vector_store %arg20[%c0_70, %c0_71], %83 {strides = array<i32>} : memref<64x36xbf16, #tpu.memory_space<vmem>>, vector<64x4xbf16>,
    %c1_72 = arith.constant 1 : index
    %c0_73 = arith.constant 0 : index
    %c0_74 = arith.constant 0 : index
    %c1_75 = arith.constant 1 : index
    %c0_76 = arith.constant 0 : index
    %85 = vector.load %arg19[%c1_72, %c0_73, %c0_74, %c1_75, %c0_76] : memref<2x2x9x16x4xbf16, #tpu.memory_space<vmem>>, vector<1x1x8x8x4xbf16>
    %86 = vector.shape_cast %85 : vector<1x1x8x8x4xbf16> to vector<8x8x4xbf16>
    %87 = vector.shape_cast %86 : vector<8x8x4xbf16> to vector<64x4xbf16>
    %c0_77 = arith.constant 0 : index
    %c4 = arith.constant 4 : index
    %88 = vector.load %arg20[%c0_77, %c4] : memref<64x36xbf16, #tpu.memory_space<vmem>>, vector<64x4xbf16>
    tpu.vector_store %arg20[%c0_77, %c4], %87 {strides = array<i32>} : memref<64x36xbf16, #tpu.memory_space<vmem>>, vector<64x4xbf16>,
    %c1_78 = arith.constant 1 : index
    %c1_79 = arith.constant 1 : index
    %c0_80 = arith.constant 0 : index
    %c1_81 = arith.constant 1 : index
    %c0_82 = arith.constant 0 : index
    %89 = vector.load %arg19[%c1_78, %c1_79, %c0_80, %c1_81, %c0_82] : memref<2x2x9x16x4xbf16, #tpu.memory_space<vmem>>, vector<1x1x8x8x4xbf16>
    %90 = vector.shape_cast %89 : vector<1x1x8x8x4xbf16> to vector<8x8x4xbf16>
    %91 = vector.shape_cast %90 : vector<8x8x4xbf16> to vector<64x4xbf16>
    %c0_83 = arith.constant 0 : index
    %c8 = arith.constant 8 : index
    %92 = vector.load %arg20[%c0_83, %c8] : memref<64x36xbf16, #tpu.memory_space<vmem>>, vector<64x4xbf16>
    tpu.vector_store %arg20[%c0_83, %c8], %91 {strides = array<i32>} : memref<64x36xbf16, #tpu.memory_space<vmem>>, vector<64x4xbf16>,
    %c0_84 = arith.constant 0 : index
    %c1_85 = arith.constant 1 : index
    %c1_86 = arith.constant 1 : index
    %c0_87 = arith.constant 0 : index
    %c0_88 = arith.constant 0 : index
    %93 = vector.load %arg19[%c0_84, %c1_85, %c1_86, %c0_87, %c0_88] : memref<2x2x9x16x4xbf16, #tpu.memory_space<vmem>>, vector<1x1x8x8x4xbf16>
    %94 = vector.shape_cast %93 : vector<1x1x8x8x4xbf16> to vector<8x8x4xbf16>
    %95 = vector.shape_cast %94 : vector<8x8x4xbf16> to vector<64x4xbf16>
    %c0_89 = arith.constant 0 : index
    %c12 = arith.constant 12 : index
    %96 = vector.load %arg20[%c0_89, %c12] : memref<64x36xbf16, #tpu.memory_space<vmem>>, vector<64x4xbf16>
    tpu.vector_store %arg20[%c0_89, %c12], %95 {strides = array<i32>} : memref<64x36xbf16, #tpu.memory_space<vmem>>, vector<64x4xbf16>,
    %c0_90 = arith.constant 0 : index
    %c0_91 = arith.constant 0 : index
    %c1_92 = arith.constant 1 : index
    %c1_93 = arith.constant 1 : index
    %c0_94 = arith.constant 0 : index
    %97 = vector.load %arg19[%c0_90, %c0_91, %c1_92, %c1_93, %c0_94] : memref<2x2x9x16x4xbf16, #tpu.memory_space<vmem>>, vector<1x1x8x8x4xbf16>
    %98 = vector.shape_cast %97 : vector<1x1x8x8x4xbf16> to vector<8x8x4xbf16>
    %99 = vector.shape_cast %98 : vector<8x8x4xbf16> to vector<64x4xbf16>
    %c0_95 = arith.constant 0 : index
    %c16 = arith.constant 16 : index
    %100 = vector.load %arg20[%c0_95, %c16] : memref<64x36xbf16, #tpu.memory_space<vmem>>, vector<64x4xbf16>
    tpu.vector_store %arg20[%c0_95, %c16], %99 {strides = array<i32>} : memref<64x36xbf16, #tpu.memory_space<vmem>>, vector<64x4xbf16>,
    %c0_96 = arith.constant 0 : index
    %c1_97 = arith.constant 1 : index
    %c1_98 = arith.constant 1 : index
    %c1_99 = arith.constant 1 : index
    %c0_100 = arith.constant 0 : index
    %101 = vector.load %arg19[%c0_96, %c1_97, %c1_98, %c1_99, %c0_100] : memref<2x2x9x16x4xbf16, #tpu.memory_space<vmem>>, vector<1x1x8x8x4xbf16>
    %102 = vector.shape_cast %101 : vector<1x1x8x8x4xbf16> to vector<8x8x4xbf16>
    %103 = vector.shape_cast %102 : vector<8x8x4xbf16> to vector<64x4xbf16>
    %c0_101 = arith.constant 0 : index
    %c20 = arith.constant 20 : index
    %104 = vector.load %arg20[%c0_101, %c20] : memref<64x36xbf16, #tpu.memory_space<vmem>>, vector<64x4xbf16>
    tpu.vector_store %arg20[%c0_101, %c20], %103 {strides = array<i32>} : memref<64x36xbf16, #tpu.memory_space<vmem>>, vector<64x4xbf16>,
    %c1_102 = arith.constant 1 : index
    %c1_103 = arith.constant 1 : index
    %c1_104 = arith.constant 1 : index
    %c0_105 = arith.constant 0 : index
    %c0_106 = arith.constant 0 : index
    %105 = vector.load %arg19[%c1_102, %c1_103, %c1_104, %c0_105, %c0_106] : memref<2x2x9x16x4xbf16, #tpu.memory_space<vmem>>, vector<1x1x8x8x4xbf16>
    %106 = vector.shape_cast %105 : vector<1x1x8x8x4xbf16> to vector<8x8x4xbf16>
    %107 = vector.shape_cast %106 : vector<8x8x4xbf16> to vector<64x4xbf16>
    %c0_107 = arith.constant 0 : index
    %c24 = arith.constant 24 : index
    %108 = vector.load %arg20[%c0_107, %c24] : memref<64x36xbf16, #tpu.memory_space<vmem>>, vector<64x4xbf16>
    tpu.vector_store %arg20[%c0_107, %c24], %107 {strides = array<i32>} : memref<64x36xbf16, #tpu.memory_space<vmem>>, vector<64x4xbf16>,
    %c1_108 = arith.constant 1 : index
    %c0_109 = arith.constant 0 : index
    %c1_110 = arith.constant 1 : index
    %c1_111 = arith.constant 1 : index
    %c0_112 = arith.constant 0 : index
    %109 = vector.load %arg19[%c1_108, %c0_109, %c1_110, %c1_111, %c0_112] : memref<2x2x9x16x4xbf16, #tpu.memory_space<vmem>>, vector<1x1x8x8x4xbf16>
    %110 = vector.shape_cast %109 : vector<1x1x8x8x4xbf16> to vector<8x8x4xbf16>
    %111 = vector.shape_cast %110 : vector<8x8x4xbf16> to vector<64x4xbf16>
    %c0_113 = arith.constant 0 : index
    %c28 = arith.constant 28 : index
    %112 = vector.load %arg20[%c0_113, %c28] : memref<64x36xbf16, #tpu.memory_space<vmem>>, vector<64x4xbf16>
    tpu.vector_store %arg20[%c0_113, %c28], %111 {strides = array<i32>} : memref<64x36xbf16, #tpu.memory_space<vmem>>, vector<64x4xbf16>,
    %c1_114 = arith.constant 1 : index
    %c1_115 = arith.constant 1 : index
    %c1_116 = arith.constant 1 : index
    %c1_117 = arith.constant 1 : index
    %c0_118 = arith.constant 0 : index
    %113 = vector.load %arg19[%c1_114, %c1_115, %c1_116, %c1_117, %c0_118] : memref<2x2x9x16x4xbf16, #tpu.memory_space<vmem>>, vector<1x1x8x8x4xbf16>
    %114 = vector.shape_cast %113 : vector<1x1x8x8x4xbf16> to vector<8x8x4xbf16>
    %115 = vector.shape_cast %114 : vector<8x8x4xbf16> to vector<64x4xbf16>
    %c0_119 = arith.constant 0 : index
    %c32 = arith.constant 32 : index
    %116 = vector.load %arg20[%c0_119, %c32] : memref<64x36xbf16, #tpu.memory_space<vmem>>, vector<64x4xbf16>
    tpu.vector_store %arg20[%c0_119, %c32], %115 {strides = array<i32>} : memref<64x36xbf16, #tpu.memory_space<vmem>>, vector<64x4xbf16>,
    %c0_120 = arith.constant 0 : index
    %c0_121 = arith.constant 0 : index
    %117 = vector.load %arg20[%c0_120, %c0_121] : memref<64x36xbf16, #tpu.memory_space<vmem>>, vector<64x36xbf16>
    %c0_122 = arith.constant 0 : index
    %c0_123 = arith.constant 0 : index
    %118 = vector.load %arg6[%c0_122, %c0_123] : memref<36x8xbf16, #tpu.memory_space<vmem>>, vector<36x8xbf16>
    %cst_124 = arith.constant dense<0.000000e+00> : vector<64x8xf32>
    %119 = tpu.matmul %117, %118, %cst_124 {dimension_numbers = #tpu.dot_dimension_numbers<[1], [0], [0], [1], [0, 0, 1, 1], [], []>} : vector<64x36xbf16>, vector<36x8xbf16>, vector<64x8xf32> -> vector<64x8xf32>
    %c0_125 = arith.constant 0 : index
    %c0_126 = arith.constant 0 : index
    %120 = vector.load %arg7[%c0_125, %c0_126] : memref<1x8xf32, #tpu.memory_space<vmem>>, vector<1x8xf32>
    %121 = vector.broadcast %120 : vector<1x8xf32> to vector<64x8xf32>
    %122 = arith.addf %119, %121 : vector<64x8xf32>
    %c0_127 = arith.constant 0 : index
    %c0_128 = arith.constant 0 : index
    %123 = vector.load %arg8[%c0_127, %c0_128] : memref<8x2xf32, #tpu.memory_space<vmem>>, vector<8x2xf32>
    %c0_129 = arith.constant 0 : index
    %c0_130 = arith.constant 0 : index
    %124 = vector.load %arg9[%c0_129, %c0_130] : memref<2x8xf32, #tpu.memory_space<vmem>>, vector<2x8xf32>
    %cst_131 = arith.constant dense<0.000000e+00> : vector<8xf32>
    %125 = vector.multi_reduction <add>, %122, %cst_131 [0] : vector<64x8xf32> to vector<8xf32>
    %126 = vector.shape_cast %125 : vector<8xf32> to vector<1x8xf32>
    %cst_132 = arith.constant dense<0.000000e+00> : vector<1x2xf32>
    %127 = tpu.matmul %126, %123, %cst_132 {dimension_numbers = #tpu.dot_dimension_numbers<[1], [0], [0], [1], [0, 0, 1, 1], [], []>} : vector<1x8xf32>, vector<8x2xf32>, vector<1x2xf32> -> vector<1x2xf32>
    %cst_133 = arith.constant dense<0.000000e+00> : vector<1x8xf32>
    %128 = tpu.matmul %127, %124, %cst_133 {dimension_numbers = #tpu.dot_dimension_numbers<[1], [0], [0], [1], [0, 0, 1, 1], [], []>} : vector<1x2xf32>, vector<2x8xf32>, vector<1x8xf32> -> vector<1x8xf32>
    %129 = vector.broadcast %128 : vector<1x8xf32> to vector<64x8xf32>
    %130 = arith.subf %122, %129 : vector<64x8xf32>
    %131 = arith.mulf %130, %130 : vector<64x8xf32>
    %cst_134 = arith.constant dense<0.000000e+00> : vector<8xf32>
    %132 = vector.multi_reduction <add>, %131, %cst_134 [0] : vector<64x8xf32> to vector<8xf32>
    %133 = vector.shape_cast %132 : vector<8xf32> to vector<1x8xf32>
    %cst_135 = arith.constant dense<0.000000e+00> : vector<1x2xf32>
    %134 = tpu.matmul %133, %123, %cst_135 {dimension_numbers = #tpu.dot_dimension_numbers<[1], [0], [0], [1], [0, 0, 1, 1], [], []>} : vector<1x8xf32>, vector<8x2xf32>, vector<1x2xf32> -> vector<1x2xf32>
    %cst_136 = arith.constant dense<0.000000e+00> : vector<1x8xf32>
    %135 = tpu.matmul %134, %124, %cst_136 {dimension_numbers = #tpu.dot_dimension_numbers<[1], [0], [0], [1], [0, 0, 1, 1], [], []>} : vector<1x2xf32>, vector<2x8xf32>, vector<1x8xf32> -> vector<1x8xf32>
    %cst_137 = arith.constant 9.99999974E-6 : f32
    %136 = vector.broadcast %cst_137 : f32 to vector<1x8xf32>
    %137 = arith.addf %135, %136 : vector<1x8xf32>
    %138 = math.rsqrt %137 : vector<1x8xf32>
    %139 = vector.broadcast %138 : vector<1x8xf32> to vector<64x8xf32>
    %140 = arith.mulf %130, %139 : vector<64x8xf32>
    %c0_138 = arith.constant 0 : index
    %c0_139 = arith.constant 0 : index
    %141 = vector.load %arg10[%c0_138, %c0_139] : memref<1x8xf32, #tpu.memory_space<vmem>>, vector<1x8xf32>
    %142 = vector.broadcast %141 : vector<1x8xf32> to vector<64x8xf32>
    %143 = arith.mulf %140, %142 : vector<64x8xf32>
    %c0_140 = arith.constant 0 : index
    %c0_141 = arith.constant 0 : index
    %144 = vector.load %arg11[%c0_140, %c0_141] : memref<1x8xf32, #tpu.memory_space<vmem>>, vector<1x8xf32>
    %145 = vector.broadcast %144 : vector<1x8xf32> to vector<64x8xf32>
    %146 = arith.addf %143, %145 : vector<64x8xf32>
    %cst_142 = arith.constant 5.000000e-01 : f32
    %147 = vector.broadcast %cst_142 : f32 to vector<64x8xf32>
    %148 = arith.mulf %147, %146 : vector<64x8xf32>
    %cst_143 = arith.constant 1.41421354 : f32
    %149 = vector.broadcast %cst_143 : f32 to vector<64x8xf32>
    %150 = arith.divf %146, %149 : vector<64x8xf32>
    %151 = math.absf %150 : vector<64x8xf32>
    %cst_144 = arith.constant 0.327591091 : f32
    %152 = vector.broadcast %cst_144 : f32 to vector<64x8xf32>
    %153 = arith.mulf %152, %151 : vector<64x8xf32>
    %cst_145 = arith.constant 1.000000e+00 : f32
    %154 = vector.broadcast %cst_145 : f32 to vector<64x8xf32>
    %155 = arith.addf %154, %153 : vector<64x8xf32>
    %cst_146 = arith.constant 1.000000e+00 : f32
    %156 = vector.broadcast %cst_146 : f32 to vector<64x8xf32>
    %157 = arith.divf %156, %155 : vector<64x8xf32>
    %cst_147 = arith.constant 1.06140542 : f32
    %158 = vector.broadcast %cst_147 : f32 to vector<64x8xf32>
    %159 = arith.mulf %158, %157 : vector<64x8xf32>
    %cst_148 = arith.constant -1.45315206 : f32
    %160 = vector.broadcast %cst_148 : f32 to vector<64x8xf32>
    %161 = arith.addf %159, %160 : vector<64x8xf32>
    %162 = arith.mulf %161, %157 : vector<64x8xf32>
    %cst_149 = arith.constant 1.42141378 : f32
    %163 = vector.broadcast %cst_149 : f32 to vector<64x8xf32>
    %164 = arith.addf %162, %163 : vector<64x8xf32>
    %165 = arith.mulf %164, %157 : vector<64x8xf32>
    %cst_150 = arith.constant -0.284496725 : f32
    %166 = vector.broadcast %cst_150 : f32 to vector<64x8xf32>
    %167 = arith.addf %165, %166 : vector<64x8xf32>
    %168 = arith.mulf %167, %157 : vector<64x8xf32>
    %cst_151 = arith.constant 0.254829586 : f32
    %169 = vector.broadcast %cst_151 : f32 to vector<64x8xf32>
    %170 = arith.addf %168, %169 : vector<64x8xf32>
    %171 = arith.mulf %170, %157 : vector<64x8xf32>
    %cst_152 = arith.constant 0.000000e+00 : f32
    %172 = vector.broadcast %cst_152 : f32 to vector<64x8xf32>
    %173 = arith.subf %172, %151 : vector<64x8xf32>
    %174 = arith.mulf %173, %151 : vector<64x8xf32>
    %175 = math.exp %174 : vector<64x8xf32>
    %176 = arith.mulf %171, %175 : vector<64x8xf32>
    %cst_153 = arith.constant 1.000000e+00 : f32
    %177 = vector.broadcast %cst_153 : f32 to vector<64x8xf32>
    %178 = arith.subf %177, %176 : vector<64x8xf32>
    %cst_154 = arith.constant 0.000000e+00 : f32
    %179 = vector.broadcast %cst_154 : f32 to vector<64x8xf32>
    %180 = arith.cmpf oge, %150, %179 : vector<64x8xf32>
    %cst_155 = arith.constant 0.000000e+00 : f32
    %181 = vector.broadcast %cst_155 : f32 to vector<64x8xf32>
    %182 = arith.subf %181, %178 : vector<64x8xf32>
    %183 = arith.select %180, %178, %182 : vector<64x8xi1>, vector<64x8xf32>
    %cst_156 = arith.constant 1.000000e+00 : f32
    %184 = vector.broadcast %cst_156 : f32 to vector<64x8xf32>
    %185 = arith.addf %184, %183 : vector<64x8xf32>
    %186 = arith.mulf %148, %185 : vector<64x8xf32>
    %187 = arith.truncf %186 : vector<64x8xf32> to vector<64x8xbf16>
    %188 = vector.shape_cast %187 : vector<64x8xbf16> to vector<8x8x8xbf16>
    %c1_157 = arith.constant 1 : index
    %c1_158 = arith.constant 1 : index
    %c0_159 = arith.constant 0 : index
    %189 = vector.load %arg21[%c1_157, %c1_158, %c0_159] : memref<10x16x8xbf16, #tpu.memory_space<vmem>>, vector<8x8x8xbf16>
    tpu.vector_store %arg21[%c1_157, %c1_158, %c0_159], %188 {strides = array<i32>} : memref<10x16x8xbf16, #tpu.memory_space<vmem>>, vector<8x8x8xbf16>,
    %c0_160 = arith.constant 0 : index
    %c0_161 = arith.constant 0 : index
    %c0_162 = arith.constant 0 : index
    %190 = vector.load %arg21[%c0_160, %c0_161, %c0_162] : memref<10x16x8xbf16, #tpu.memory_space<vmem>>, vector<8x8x8xbf16>
    %191 = vector.shape_cast %190 : vector<8x8x8xbf16> to vector<64x8xbf16>
    %c0_163 = arith.constant 0 : index
    %c0_164 = arith.constant 0 : index
    %192 = vector.load %arg22[%c0_163, %c0_164] : memref<64x72xbf16, #tpu.memory_space<vmem>>, vector<64x8xbf16>
    tpu.vector_store %arg22[%c0_163, %c0_164], %191 {strides = array<i32>} : memref<64x72xbf16, #tpu.memory_space<vmem>>, vector<64x8xbf16>,
    %c0_165 = arith.constant 0 : index
    %c1_166 = arith.constant 1 : index
    %c0_167 = arith.constant 0 : index
    %193 = vector.load %arg21[%c0_165, %c1_166, %c0_167] : memref<10x16x8xbf16, #tpu.memory_space<vmem>>, vector<8x8x8xbf16>
    %194 = vector.shape_cast %193 : vector<8x8x8xbf16> to vector<64x8xbf16>
    %c0_168 = arith.constant 0 : index
    %c8_169 = arith.constant 8 : index
    %195 = vector.load %arg22[%c0_168, %c8_169] : memref<64x72xbf16, #tpu.memory_space<vmem>>, vector<64x8xbf16>
    tpu.vector_store %arg22[%c0_168, %c8_169], %194 {strides = array<i32>} : memref<64x72xbf16, #tpu.memory_space<vmem>>, vector<64x8xbf16>,
    %c0_170 = arith.constant 0 : index
    %c2 = arith.constant 2 : index
    %c0_171 = arith.constant 0 : index
    %196 = vector.load %arg21[%c0_170, %c2, %c0_171] : memref<10x16x8xbf16, #tpu.memory_space<vmem>>, vector<8x8x8xbf16>
    %197 = vector.shape_cast %196 : vector<8x8x8xbf16> to vector<64x8xbf16>
    %c0_172 = arith.constant 0 : index
    %c16_173 = arith.constant 16 : index
    %198 = vector.load %arg22[%c0_172, %c16_173] : memref<64x72xbf16, #tpu.memory_space<vmem>>, vector<64x8xbf16>
    tpu.vector_store %arg22[%c0_172, %c16_173], %197 {strides = array<i32>} : memref<64x72xbf16, #tpu.memory_space<vmem>>, vector<64x8xbf16>,
    %c1_174 = arith.constant 1 : index
    %c0_175 = arith.constant 0 : index
    %c0_176 = arith.constant 0 : index
    %199 = vector.load %arg21[%c1_174, %c0_175, %c0_176] : memref<10x16x8xbf16, #tpu.memory_space<vmem>>, vector<8x8x8xbf16>
    %200 = vector.shape_cast %199 : vector<8x8x8xbf16> to vector<64x8xbf16>
    %c0_177 = arith.constant 0 : index
    %c24_178 = arith.constant 24 : index
    %201 = vector.load %arg22[%c0_177, %c24_178] : memref<64x72xbf16, #tpu.memory_space<vmem>>, vector<64x8xbf16>
    tpu.vector_store %arg22[%c0_177, %c24_178], %200 {strides = array<i32>} : memref<64x72xbf16, #tpu.memory_space<vmem>>, vector<64x8xbf16>,
    %c1_179 = arith.constant 1 : index
    %c1_180 = arith.constant 1 : index
    %c0_181 = arith.constant 0 : index
    %202 = vector.load %arg21[%c1_179, %c1_180, %c0_181] : memref<10x16x8xbf16, #tpu.memory_space<vmem>>, vector<8x8x8xbf16>
    %203 = vector.shape_cast %202 : vector<8x8x8xbf16> to vector<64x8xbf16>
    %c0_182 = arith.constant 0 : index
    %c32_183 = arith.constant 32 : index
    %204 = vector.load %arg22[%c0_182, %c32_183] : memref<64x72xbf16, #tpu.memory_space<vmem>>, vector<64x8xbf16>
    tpu.vector_store %arg22[%c0_182, %c32_183], %203 {strides = array<i32>} : memref<64x72xbf16, #tpu.memory_space<vmem>>, vector<64x8xbf16>,
    %c1_184 = arith.constant 1 : index
    %c2_185 = arith.constant 2 : index
    %c0_186 = arith.constant 0 : index
    %205 = vector.load %arg21[%c1_184, %c2_185, %c0_186] : memref<10x16x8xbf16, #tpu.memory_space<vmem>>, vector<8x8x8xbf16>
    %206 = vector.shape_cast %205 : vector<8x8x8xbf16> to vector<64x8xbf16>
    %c0_187 = arith.constant 0 : index
    %c40 = arith.constant 40 : index
    %207 = vector.load %arg22[%c0_187, %c40] : memref<64x72xbf16, #tpu.memory_space<vmem>>, vector<64x8xbf16>
    tpu.vector_store %arg22[%c0_187, %c40], %206 {strides = array<i32>} : memref<64x72xbf16, #tpu.memory_space<vmem>>, vector<64x8xbf16>,
    %c2_188 = arith.constant 2 : index
    %c0_189 = arith.constant 0 : index
    %c0_190 = arith.constant 0 : index
    %208 = vector.load %arg21[%c2_188, %c0_189, %c0_190] : memref<10x16x8xbf16, #tpu.memory_space<vmem>>, vector<8x8x8xbf16>
    %209 = vector.shape_cast %208 : vector<8x8x8xbf16> to vector<64x8xbf16>
    %c0_191 = arith.constant 0 : index
    %c48 = arith.constant 48 : index
    %210 = vector.load %arg22[%c0_191, %c48] : memref<64x72xbf16, #tpu.memory_space<vmem>>, vector<64x8xbf16>
    tpu.vector_store %arg22[%c0_191, %c48], %209 {strides = array<i32>} : memref<64x72xbf16, #tpu.memory_space<vmem>>, vector<64x8xbf16>,
    %c2_192 = arith.constant 2 : index
    %c1_193 = arith.constant 1 : index
    %c0_194 = arith.constant 0 : index
    %211 = vector.load %arg21[%c2_192, %c1_193, %c0_194] : memref<10x16x8xbf16, #tpu.memory_space<vmem>>, vector<8x8x8xbf16>
    %212 = vector.shape_cast %211 : vector<8x8x8xbf16> to vector<64x8xbf16>
    %c0_195 = arith.constant 0 : index
    %c56 = arith.constant 56 : index
    %213 = vector.load %arg22[%c0_195, %c56] : memref<64x72xbf16, #tpu.memory_space<vmem>>, vector<64x8xbf16>
    tpu.vector_store %arg22[%c0_195, %c56], %212 {strides = array<i32>} : memref<64x72xbf16, #tpu.memory_space<vmem>>, vector<64x8xbf16>,
    %c2_196 = arith.constant 2 : index
    %c2_197 = arith.constant 2 : index
    %c0_198 = arith.constant 0 : index
    %214 = vector.load %arg21[%c2_196, %c2_197, %c0_198] : memref<10x16x8xbf16, #tpu.memory_space<vmem>>, vector<8x8x8xbf16>
    %215 = vector.shape_cast %214 : vector<8x8x8xbf16> to vector<64x8xbf16>
    %c0_199 = arith.constant 0 : index
    %c64 = arith.constant 64 : index
    %216 = vector.load %arg22[%c0_199, %c64] : memref<64x72xbf16, #tpu.memory_space<vmem>>, vector<64x8xbf16>
    tpu.vector_store %arg22[%c0_199, %c64], %215 {strides = array<i32>} : memref<64x72xbf16, #tpu.memory_space<vmem>>, vector<64x8xbf16>,
    %c0_200 = arith.constant 0 : index
    %c0_201 = arith.constant 0 : index
    %217 = vector.load %arg22[%c0_200, %c0_201] : memref<64x72xbf16, #tpu.memory_space<vmem>>, vector<64x72xbf16>
    %c0_202 = arith.constant 0 : index
    %c0_203 = arith.constant 0 : index
    %218 = vector.load %arg12[%c0_202, %c0_203] : memref<72x8xbf16, #tpu.memory_space<vmem>>, vector<72x8xbf16>
    %cst_204 = arith.constant dense<0.000000e+00> : vector<64x8xf32>
    %219 = tpu.matmul %217, %218, %cst_204 {dimension_numbers = #tpu.dot_dimension_numbers<[1], [0], [0], [1], [0, 0, 1, 1], [], []>} : vector<64x72xbf16>, vector<72x8xbf16>, vector<64x8xf32> -> vector<64x8xf32>
    %c0_205 = arith.constant 0 : index
    %c0_206 = arith.constant 0 : index
    %220 = vector.load %arg13[%c0_205, %c0_206] : memref<1x8xf32, #tpu.memory_space<vmem>>, vector<1x8xf32>
    %221 = vector.broadcast %220 : vector<1x8xf32> to vector<64x8xf32>
    %222 = arith.addf %219, %221 : vector<64x8xf32>
    %223 = vector.extract_strided_slice %31 {offsets = [0, 0], sizes = [64, 4], strides = [1, 1]} : vector<256x4xf32> to vector<64x4xf32>
    %c0_207 = arith.constant 0 : index
    %c0_208 = arith.constant 0 : index
    %224 = vector.load %arg14[%c0_207, %c0_208] : memref<1x4xf32, #tpu.memory_space<vmem>>, vector<1x4xf32>
    %225 = vector.broadcast %224 : vector<1x4xf32> to vector<64x4xf32>
    %226 = arith.mulf %223, %225 : vector<64x4xf32>
    %c0_209 = arith.constant 0 : index
    %c0_210 = arith.constant 0 : index
    %227 = vector.load %arg15[%c0_209, %c0_210] : memref<1x4xf32, #tpu.memory_space<vmem>>, vector<1x4xf32>
    %228 = vector.broadcast %227 : vector<1x4xf32> to vector<64x4xf32>
    %229 = arith.addf %226, %228 : vector<64x4xf32>
    %230 = arith.truncf %229 : vector<64x4xf32> to vector<64x4xbf16>
    %c0_211 = arith.constant 0 : index
    %c0_212 = arith.constant 0 : index
    %231 = vector.load %arg16[%c0_211, %c0_212] : memref<4x8xbf16, #tpu.memory_space<vmem>>, vector<4x8xbf16>
    %cst_213 = arith.constant dense<0.000000e+00> : vector<64x8xf32>
    %232 = tpu.matmul %230, %231, %cst_213 {dimension_numbers = #tpu.dot_dimension_numbers<[1], [0], [0], [1], [0, 0, 1, 1], [], []>} : vector<64x4xbf16>, vector<4x8xbf16>, vector<64x8xf32> -> vector<64x8xf32>
    %c0_214 = arith.constant 0 : index
    %c0_215 = arith.constant 0 : index
    %233 = vector.load %arg17[%c0_214, %c0_215] : memref<1x8xf32, #tpu.memory_space<vmem>>, vector<1x8xf32>
    %234 = vector.broadcast %233 : vector<1x8xf32> to vector<64x8xf32>
    %235 = arith.addf %232, %234 : vector<64x8xf32>
    %236 = arith.addf %222, %235 : vector<64x8xf32>
    %237 = tpu.transpose %236, [1, 0] : vector<64x8xf32> -> vector<8x64xf32>
    %238 = vector.shape_cast %237 : vector<8x64xf32> to vector<1x8x64xf32>
    %c0_216 = arith.constant 0 : index
    %c0_217 = arith.constant 0 : index
    %c0_218 = arith.constant 0 : index
    %239 = vector.load %arg18[%c0_216, %c0_217, %c0_218] : memref<1x8x64xf32, #tpu.memory_space<vmem>>, vector<1x8x64xf32>
    tpu.vector_store %arg18[%c0_216, %c0_217, %c0_218], %238 {strides = array<i32>} : memref<1x8x64xf32, #tpu.memory_space<vmem>>, vector<1x8x64xf32>,
    return
  }
  func.func @transform_0(%arg0: i32) -> (i32, i32, i32, i32, i32, i32) {
    %c0_i32 = arith.constant 0 : i32
    %c0_i32_0 = arith.constant 0 : i32
    %c0_i32_1 = arith.constant 0 : i32
    %c0_i32_2 = arith.constant 0 : i32
    %c0_i32_3 = arith.constant 0 : i32
    %c0_i32_4 = arith.constant 0 : i32
    return %arg0, %c0_i32, %c0_i32_0, %c0_i32_1, %c0_i32_2, %c0_i32_3 : i32, i32, i32, i32, i32, i32
  }
  func.func @transform_1(%arg0: i32) -> (i32, i32) {
    %c0_i32 = arith.constant 0 : i32
    %c0_i32_0 = arith.constant 0 : i32
    %c0_i32_1 = arith.constant 0 : i32
    return %c0_i32, %c0_i32_0 : i32, i32
  }
  func.func @transform_2(%arg0: i32) -> (i32, i32) {
    %c0_i32 = arith.constant 0 : i32
    %c0_i32_0 = arith.constant 0 : i32
    %c0_i32_1 = arith.constant 0 : i32
    return %c0_i32, %c0_i32_0 : i32, i32
  }
  func.func @transform_3(%arg0: i32) -> (i32, i32) {
    %c0_i32 = arith.constant 0 : i32
    %c0_i32_0 = arith.constant 0 : i32
    %c0_i32_1 = arith.constant 0 : i32
    return %c0_i32, %c0_i32_0 : i32, i32
  }
  func.func @transform_4(%arg0: i32) -> (i32, i32) {
    %c0_i32 = arith.constant 0 : i32
    %c0_i32_0 = arith.constant 0 : i32
    %c0_i32_1 = arith.constant 0 : i32
    return %c0_i32, %c0_i32_0 : i32, i32
  }
  func.func @transform_5(%arg0: i32) -> (i32, i32) {
    %c0_i32 = arith.constant 0 : i32
    %c0_i32_0 = arith.constant 0 : i32
    %c0_i32_1 = arith.constant 0 : i32
    return %c0_i32, %c0_i32_0 : i32, i32
  }
  func.func @transform_6(%arg0: i32) -> (i32, i32) {
    %c0_i32 = arith.constant 0 : i32
    %c0_i32_0 = arith.constant 0 : i32
    %c0_i32_1 = arith.constant 0 : i32
    return %c0_i32, %c0_i32_0 : i32, i32
  }
  func.func @transform_7(%arg0: i32) -> (i32, i32) {
    %c0_i32 = arith.constant 0 : i32
    %c0_i32_0 = arith.constant 0 : i32
    %c0_i32_1 = arith.constant 0 : i32
    return %c0_i32, %c0_i32_0 : i32, i32
  }
  func.func @transform_8(%arg0: i32) -> (i32, i32) {
    %c0_i32 = arith.constant 0 : i32
    %c0_i32_0 = arith.constant 0 : i32
    %c0_i32_1 = arith.constant 0 : i32
    return %c0_i32, %c0_i32_0 : i32, i32
  }
  func.func @transform_9(%arg0: i32) -> (i32, i32) {
    %c0_i32 = arith.constant 0 : i32
    %c0_i32_0 = arith.constant 0 : i32
    %c0_i32_1 = arith.constant 0 : i32
    return %c0_i32, %c0_i32_0 : i32, i32
  }
  func.func @transform_10(%arg0: i32) -> (i32, i32) {
    %c0_i32 = arith.constant 0 : i32
    %c0_i32_0 = arith.constant 0 : i32
    %c0_i32_1 = arith.constant 0 : i32
    return %c0_i32, %c0_i32_0 : i32, i32
  }
  func.func @transform_11(%arg0: i32) -> (i32, i32) {
    %c0_i32 = arith.constant 0 : i32
    %c0_i32_0 = arith.constant 0 : i32
    %c0_i32_1 = arith.constant 0 : i32
    return %c0_i32, %c0_i32_0 : i32, i32
  }
  func.func @transform_12(%arg0: i32) -> (i32, i32) {
    %c0_i32 = arith.constant 0 : i32
    %c0_i32_0 = arith.constant 0 : i32
    %c0_i32_1 = arith.constant 0 : i32
    return %c0_i32, %c0_i32_0 : i32, i32
  }
  func.func @transform_13(%arg0: i32) -> (i32, i32) {
    %c0_i32 = arith.constant 0 : i32
    %c0_i32_0 = arith.constant 0 : i32
    %c0_i32_1 = arith.constant 0 : i32
    return %c0_i32, %c0_i32_0 : i32, i32
  }
  func.func @transform_14(%arg0: i32) -> (i32, i32) {
    %c0_i32 = arith.constant 0 : i32
    %c0_i32_0 = arith.constant 0 : i32
    %c0_i32_1 = arith.constant 0 : i32
    return %c0_i32, %c0_i32_0 : i32, i32
  }
  func.func @transform_15(%arg0: i32) -> (i32, i32) {
    %c0_i32 = arith.constant 0 : i32
    %c0_i32_0 = arith.constant 0 : i32
    %c0_i32_1 = arith.constant 0 : i32
    return %c0_i32, %c0_i32_0 : i32, i32
  }
  func.func @transform_16(%arg0: i32) -> (i32, i32) {
    %c0_i32 = arith.constant 0 : i32
    %c0_i32_0 = arith.constant 0 : i32
    %c0_i32_1 = arith.constant 0 : i32
    return %c0_i32, %c0_i32_0 : i32, i32
  }
  func.func @transform_17(%arg0: i32) -> (i32, i32, i32) {
    %c0_i32 = arith.constant 0 : i32
    %c0_i32_0 = arith.constant 0 : i32
    %c0_i32_1 = arith.constant 0 : i32
    return %arg0, %c0_i32, %c0_i32_0 : i32, i32, i32
  }
}

</mosaic_0001>

<llo_original>
// kernel: residual_block_forward.1
$region0: #{residual_block_forward.1}
  #allocation0 [shape = 'u32[]', space=smem, size = 0x4, offset = 0x4, fixed_abs, tag = 'smem constant byte address 0x4 - core index']
  #allocation1 [shape = 'u32[144,128]{1,0:T(1,128)}', space=vmem, size = 0x12000, scoped, tag = 'internal scratch']
  #allocation2 [shape = 'bf16[2,2,9,16,4]{4,3,2,1,0:T(16,128)(2,1)}', space=vmem, size = 0x24000, scoped, tag = 'scratch operand']
  #allocation3 [shape = 'bf16[64,36]{1,0:T(16,128)(2,1)}', space=vmem, size = 0x4000, scoped, tag = 'scratch operand']
  #allocation4 [shape = 'bf16[10,16,8]{2,1,0:T(16,128)(2,1)}', space=vmem, size = 0xa000, scoped, tag = 'scratch operand']
  #allocation5 [shape = 'bf16[64,72]{1,0:T(16,128)(2,1)}', space=vmem, size = 0x4000, scoped, tag = 'scratch operand']
  %s0 = inlined_call_operand.vmem [shape: f32[2,2,2,8,8,4], index: 0, kind: input, shape index: {}]
  %s1 = inlined_call_operand.vmem [shape: f32[4,2], index: 1, kind: input, shape index: {}]
  %s2 = inlined_call_operand.vmem [shape: f32[2,4], index: 2, kind: input, shape index: {}]
  %s3 = inlined_call_operand.vmem [shape: f32[1,4], index: 3, kind: input, shape index: {}]
  %s4 = inlined_call_operand.vmem [shape: f32[1,4], index: 4, kind: input, shape index: {}]
  %s5 = inlined_call_operand.vmem [shape: bf16[36,8], index: 5, kind: input, shape index: {}]
  %s6 = inlined_call_operand.vmem [shape: f32[1,8], index: 6, kind: input, shape index: {}]
  %s7 = inlined_call_operand.vmem [shape: f32[8,2], index: 7, kind: input, shape index: {}]
  %s8 = inlined_call_operand.vmem [shape: f32[2,8], index: 8, kind: input, shape index: {}]
  %s9 = inlined_call_operand.vmem [shape: f32[1,8], index: 9, kind: input, shape index: {}]
  %s10 = inlined_call_operand.vmem [shape: f32[1,8], index: 10, kind: input, shape index: {}]
  %s11 = inlined_call_operand.vmem [shape: bf16[72,8], index: 11, kind: input, shape index: {}]
  %s12 = inlined_call_operand.vmem [shape: f32[1,8], index: 12, kind: input, shape index: {}]
  %s13 = inlined_call_operand.vmem [shape: f32[1,4], index: 13, kind: input, shape index: {}]
  %s14 = inlined_call_operand.vmem [shape: f32[1,4], index: 14, kind: input, shape index: {}]
  %s15 = inlined_call_operand.vmem [shape: bf16[4,8], index: 15, kind: input, shape index: {}]
  %s16 = inlined_call_operand.vmem [shape: f32[1,8], index: 16, kind: input, shape index: {}]
  %s17 = inlined_call_operand.vmem [shape: f32[2,8,64], index: 17, kind: output, shape index: {}]
  %s18 = sld [smem:[#allocation0]]
  $region101: #{residual_block_forward.1} parent=0
    _
  %s20 = ssub.s32 1, %s18
  %s21 = scalar_select 0, %s20, %s18
  loop: start=0, step=1, limit=4
  $region2: #{residual_block_forward.1} parent=0 // loop_pre_header
    _
  $region3: #{residual_block_forward.1} parent=0 // loop_header
    %s23 = sphi 0, %s27
    %p24 = scmp.ge.s32.totalorder %s23, 4
    %s33 = sphi 0, %s35
    %s36 = sphi 0, %s33
    %s37 = sphi 0, %s36
    %s53 = sphi 0, %s37
    %s57 = sphi 0, %s57
    %s59 = sphi 0, %s57
    %s60 = sphi 0, %s59
    %s74 = sphi 0, %s60
    %s78 = sphi 0, %s78
    %s80 = sphi 0, %s78
    %s81 = sphi 0, %s80
    %s95 = sphi 0, %s81
    %s99 = sphi 0, %s99
    %s101 = sphi 0, %s99
    %s102 = sphi 0, %s101
    %s116 = sphi 0, %s102
    %s120 = sphi 0, %s120
    %s122 = sphi 0, %s120
    %s123 = sphi 0, %s122
    %s137 = sphi 0, %s123
    %s141 = sphi 0, %s141
    %s143 = sphi 0, %s141
    %s144 = sphi 0, %s143
    %s158 = sphi 0, %s144
    %s162 = sphi 0, %s162
    %s164 = sphi 0, %s162
    %s165 = sphi 0, %s164
    %s179 = sphi 0, %s165
    %s183 = sphi 0, %s183
    %s185 = sphi 0, %s183
    %s186 = sphi 0, %s185
    %s200 = sphi 0, %s186
    %s204 = sphi 0, %s204
    %s206 = sphi 0, %s204
    %s207 = sphi 0, %s206
    %s221 = sphi 0, %s207
    %s225 = sphi 0, %s225
    %s227 = sphi 0, %s225
    %s228 = sphi 0, %s227
    %s242 = sphi 0, %s228
    %s246 = sphi 0, %s246
    %s248 = sphi 0, %s246
    %s249 = sphi 0, %s248
    %s263 = sphi 0, %s249
    %s267 = sphi 0, %s267
    %s269 = sphi 0, %s267
    %s270 = sphi 0, %s269
    %s284 = sphi 0, %s270
    %s288 = sphi 0, %s288
    %s290 = sphi 0, %s288
    %s291 = sphi 0, %s290
    %s305 = sphi 0, %s291
    %s309 = sphi 0, %s309
    %s311 = sphi 0, %s309
    %s312 = sphi 0, %s311
    %s326 = sphi 0, %s312
    %s330 = sphi 0, %s330
    %s332 = sphi 0, %s330
    %s333 = sphi 0, %s332
    %s347 = sphi 0, %s333
    %s351 = sphi 0, %s351
    %s353 = sphi 0, %s351
    %s354 = sphi 0, %s353
    %s368 = sphi 0, %s354
    %s372 = sphi 0, %s372
    %s374 = sphi 0, %s372
    %s375 = sphi 0, %s374
    %s389 = sphi 0, %s375
    %s395 = sphi 0, %s397
    %s398 = sphi 0, %s395
    %s399 = sphi 0, %s398
    %s415 = sphi 0, %s399
  $region4: #{residual_block_forward.1} parent=0 // loop_header_branch
    %26 = sbr.rel (%p24) target = $region8
  $region5: #{residual_block_forward.1} parent=0 // loop_body
    %s28 = ssub.s32 %s23, 1
    %s29 = ssub.s32 %s23, 2
    %s30 = sadd.s32 %s23, 1
    %s31 = ssub.s32 %s23, %s30
    %p32 = scmp.eq.s32.totalorder %s31, 0
    %s34 = sadd.s32 %s33, 1
    %s35 = scalar_select %p32, %s33, %s34
    %p38 = pneg %p32
    %p39 = scmp.eq.s32.totalorder %s23, 1
    %p40 = por %p38, %p39
    %p41 = scmp.ne.s32.totalorder %s33, %s36
    %p42 = scmp.eq.s32.totalorder %s23, 0
    %p43 = por %p41, %p42
    %p44 = scmp.ne.s32.totalorder %s33, %s36
    %p45 = scmp.eq.s32.totalorder %s28, 1
    %p46 = por %p44, %p45
    %p47 = scmp.ne.s32.totalorder %s36, %s37
    %p48 = scmp.eq.s32.totalorder %s28, 0
    %p49 = por %p47, %p48
    %p50 = scmp.ne.s32.totalorder %s36, %s37
    %p51 = scmp.eq.s32.totalorder %s29, 1
    %p52 = por %p50, %p51
    %p54 = scmp.ne.s32.totalorder %s37, %s53
    %p55 = scmp.eq.s32.totalorder %s29, 0
    %p56 = por %p54, %p55
    %s58 = sadd.s32 %s57, 1
    %p61 = scmp.eq.s32.totalorder %s23, 1
    %p62 = scmp.ne.s32.totalorder %s57, %s59
    %p63 = scmp.eq.s32.totalorder %s23, 0
    %p64 = por %p62, %p63
    %p65 = scmp.ne.s32.totalorder %s57, %s59
    %p66 = scmp.eq.s32.totalorder %s28, 1
    %p67 = por %p65, %p66
    %p68 = scmp.ne.s32.totalorder %s59, %s60
    %p69 = scmp.eq.s32.totalorder %s28, 0
    %p70 = por %p68, %p69
    %p71 = scmp.ne.s32.totalorder %s59, %s60
    %p72 = scmp.eq.s32.totalorder %s29, 1
    %p73 = por %p71, %p72
    %p75 = scmp.ne.s32.totalorder %s60, %s74
    %p76 = scmp.eq.s32.totalorder %s29, 0
    %p77 = por %p75, %p76
    %s79 = sadd.s32 %s78, 1
    %p82 = scmp.eq.s32.totalorder %s23, 1
    %p83 = scmp.ne.s32.totalorder %s78, %s80
    %p84 = scmp.eq.s32.totalorder %s23, 0
    %p85 = por %p83, %p84
    %p86 = scmp.ne.s32.totalorder %s78, %s80
    %p87 = scmp.eq.s32.totalorder %s28, 1
    %p88 = por %p86, %p87
    %p89 = scmp.ne.s32.totalorder %s80, %s81
    %p90 = scmp.eq.s32.totalorder %s28, 0
    %p91 = por %p89, %p90
    %p92 = scmp.ne.s32.totalorder %s80, %s81
    %p93 = scmp.eq.s32.totalorder %s29, 1
    %p94 = por %p92, %p93
    %p96 = scmp.ne.s32.totalorder %s81, %s95
    %p97 = scmp.eq.s32.totalorder %s29, 0
    %p98 = por %p96, %p97
    %s100 = sadd.s32 %s99, 1
    %p103 = scmp.eq.s32.totalorder %s23, 1
    %p104 = scmp.ne.s32.totalorder %s99, %s101
    %p105 = scmp.eq.s32.totalorder %s23, 0
    %p106 = por %p104, %p105
    %p107 = scmp.ne.s32.totalorder %s99, %s101
    %p108 = scmp.eq.s32.totalorder %s28, 1
    %p109 = por %p107, %p108
    %p110 = scmp.ne.s32.totalorder %s101, %s102
    %p111 = scmp.eq.s32.totalorder %s28, 0
    %p112 = por %p110, %p111
    %p113 = scmp.ne.s32.totalorder %s101, %s102
    %p114 = scmp.eq.s32.totalorder %s29, 1
    %p115 = por %p113, %p114
    %p117 = scmp.ne.s32.totalorder %s102, %s116
    %p118 = scmp.eq.s32.totalorder %s29, 0
    %p119 = por %p117, %p118
    %s121 = sadd.s32 %s120, 1
    %p124 = scmp.eq.s32.totalorder %s23, 1
    %p125 = scmp.ne.s32.totalorder %s120, %s122
    %p126 = scmp.eq.s32.totalorder %s23, 0
    %p127 = por %p125, %p126
    %p128 = scmp.ne.s32.totalorder %s120, %s122
    %p129 = scmp.eq.s32.totalorder %s28, 1
    %p130 = por %p128, %p129
    %p131 = scmp.ne.s32.totalorder %s122, %s123
    %p132 = scmp.eq.s32.totalorder %s28, 0
    %p133 = por %p131, %p132
    %p134 = scmp.ne.s32.totalorder %s122, %s123
    %p135 = scmp.eq.s32.totalorder %s29, 1
    %p136 = por %p134, %p135
    %p138 = scmp.ne.s32.totalorder %s123, %s137
    %p139 = scmp.eq.s32.totalorder %s29, 0
    %p140 = por %p138, %p139
    %s142 = sadd.s32 %s141, 1
    %p145 = scmp.eq.s32.totalorder %s23, 1
    %p146 = scmp.ne.s32.totalorder %s141, %s143
    %p147 = scmp.eq.s32.totalorder %s23, 0
    %p148 = por %p146, %p147
    %p149 = scmp.ne.s32.totalorder %s141, %s143
    %p150 = scmp.eq.s32.totalorder %s28, 1
    %p151 = por %p149, %p150
    %p152 = scmp.ne.s32.totalorder %s143, %s144
    %p153 = scmp.eq.s32.totalorder %s28, 0
    %p154 = por %p152, %p153
    %p155 = scmp.ne.s32.totalorder %s143, %s144
    %p156 = scmp.eq.s32.totalorder %s29, 1
    %p157 = por %p155, %p156
    %p159 = scmp.ne.s32.totalorder %s144, %s158
    %p160 = scmp.eq.s32.totalorder %s29, 0
    %p161 = por %p159, %p160
    %s163 = sadd.s32 %s162, 1
    %p166 = scmp.eq.s32.totalorder %s23, 1
    %p167 = scmp.ne.s32.totalorder %s162, %s164
    %p168 = scmp.eq.s32.totalorder %s23, 0
    %p169 = por %p167, %p168
    %p170 = scmp.ne.s32.totalorder %s162, %s164
    %p171 = scmp.eq.s32.totalorder %s28, 1
    %p172 = por %p170, %p171
    %p173 = scmp.ne.s32.totalorder %s164, %s165
    %p174 = scmp.eq.s32.totalorder %s28, 0
    %p175 = por %p173, %p174
    %p176 = scmp.ne.s32.totalorder %s164, %s165
    %p177 = scmp.eq.s32.totalorder %s29, 1
    %p178 = por %p176, %p177
    %p180 = scmp.ne.s32.totalorder %s165, %s179
    %p181 = scmp.eq.s32.totalorder %s29, 0
    %p182 = por %p180, %p181
    %s184 = sadd.s32 %s183, 1
    %p187 = scmp.eq.s32.totalorder %s23, 1
    %p188 = scmp.ne.s32.totalorder %s183, %s185
    %p189 = scmp.eq.s32.totalorder %s23, 0
    %p190 = por %p188, %p189
    %p191 = scmp.ne.s32.totalorder %s183, %s185
    %p192 = scmp.eq.s32.totalorder %s28, 1
    %p193 = por %p191, %p192
    %p194 = scmp.ne.s32.totalorder %s185, %s186
    %p195 = scmp.eq.s32.totalorder %s28, 0
    %p196 = por %p194, %p195
    %p197 = scmp.ne.s32.totalorder %s185, %s186
    %p198 = scmp.eq.s32.totalorder %s29, 1
    %p199 = por %p197, %p198
    %p201 = scmp.ne.s32.totalorder %s186, %s200
    %p202 = scmp.eq.s32.totalorder %s29, 0
    %p203 = por %p201, %p202
    %s205 = sadd.s32 %s204, 1
    %p208 = scmp.eq.s32.totalorder %s23, 1
    %p209 = scmp.ne.s32.totalorder %s204, %s206
    %p210 = scmp.eq.s32.totalorder %s23, 0
    %p211 = por %p209, %p210
    %p212 = scmp.ne.s32.totalorder %s204, %s206
    %p213 = scmp.eq.s32.totalorder %s28, 1
    %p214 = por %p212, %p213
    %p215 = scmp.ne.s32.totalorder %s206, %s207
    %p216 = scmp.eq.s32.totalorder %s28, 0
    %p217 = por %p215, %p216
    %p218 = scmp.ne.s32.totalorder %s206, %s207
    %p219 = scmp.eq.s32.totalorder %s29, 1
    %p220 = por %p218, %p219
    %p222 = scmp.ne.s32.totalorder %s207, %s221
    %p223 = scmp.eq.s32.totalorder %s29, 0
    %p224 = por %p222, %p223
    %s226 = sadd.s32 %s225, 1
    %p229 = scmp.eq.s32.totalorder %s23, 1
    %p230 = scmp.ne.s32.totalorder %s225, %s227
    %p231 = scmp.eq.s32.totalorder %s23, 0
    %p232 = por %p230, %p231
    %p233 = scmp.ne.s32.totalorder %s225, %s227
    %p234 = scmp.eq.s32.totalorder %s28, 1
    %p235 = por %p233, %p234
    %p236 = scmp.ne.s32.totalorder %s227, %s228
    %p237 = scmp.eq.s32.totalorder %s28, 0
    %p238 = por %p236, %p237
    %p239 = scmp.ne.s32.totalorder %s227, %s228
    %p240 = scmp.eq.s32.totalorder %s29, 1
    %p241 = por %p239, %p240
    %p243 = scmp.ne.s32.totalorder %s228, %s242
    %p244 = scmp.eq.s32.totalorder %s29, 0
    %p245 = por %p243, %p244
    %s247 = sadd.s32 %s246, 1
    %p250 = scmp.eq.s32.totalorder %s23, 1
    %p251 = scmp.ne.s32.totalorder %s246, %s248
    %p252 = scmp.eq.s32.totalorder %s23, 0
    %p253 = por %p251, %p252
    %p254 = scmp.ne.s32.totalorder %s246, %s248
    %p255 = scmp.eq.s32.totalorder %s28, 1
    %p256 = por %p254, %p255
    %p257 = scmp.ne.s32.totalorder %s248, %s249
    %p258 = scmp.eq.s32.totalorder %s28, 0
    %p259 = por %p257, %p258
    %p260 = scmp.ne.s32.totalorder %s248, %s249
    %p261 = scmp.eq.s32.totalorder %s29, 1
    %p262 = por %p260, %p261
    %p264 = scmp.ne.s32.totalorder %s249, %s263
    %p265 = scmp.eq.s32.totalorder %s29, 0
    %p266 = por %p264, %p265
    %s268 = sadd.s32 %s267, 1
    %p271 = scmp.eq.s32.totalorder %s23, 1
    %p272 = scmp.ne.s32.totalorder %s267, %s269
    %p273 = scmp.eq.s32.totalorder %s23, 0
    %p274 = por %p272, %p273
    %p275 = scmp.ne.s32.totalorder %s267, %s269
    %p276 = scmp.eq.s32.totalorder %s28, 1
    %p277 = por %p275, %p276
    %p278 = scmp.ne.s32.totalorder %s269, %s270
    %p279 = scmp.eq.s32.totalorder %s28, 0
    %p280 = por %p278, %p279
    %p281 = scmp.ne.s32.totalorder %s269, %s270
    %p282 = scmp.eq.s32.totalorder %s29, 1
    %p283 = por %p281, %p282
    %p285 = scmp.ne.s32.totalorder %s270, %s284
    %p286 = scmp.eq.s32.totalorder %s29, 0
    %p287 = por %p285, %p286
    %s289 = sadd.s32 %s288, 1
    %p292 = scmp.eq.s32.totalorder %s23, 1
    %p293 = scmp.ne.s32.totalorder %s288, %s290
    %p294 = scmp.eq.s32.totalorder %s23, 0
    %p295 = por %p293, %p294
    %p296 = scmp.ne.s32.totalorder %s288, %s290
    %p297 = scmp.eq.s32.totalorder %s28, 1
    %p298 = por %p296, %p297
    %p299 = scmp.ne.s32.totalorder %s290, %s291
    %p300 = scmp.eq.s32.totalorder %s28, 0
    %p301 = por %p299, %p300
    %p302 = scmp.ne.s32.totalorder %s290, %s291
    %p303 = scmp.eq.s32.totalorder %s29, 1
    %p304 = por %p302, %p303
    %p306 = scmp.ne.s32.totalorder %s291, %s305
    %p307 = scmp.eq.s32.totalorder %s29, 0
    %p308 = por %p306, %p307
    %s310 = sadd.s32 %s309, 1
    %p313 = scmp.eq.s32.totalorder %s23, 1
    %p314 = scmp.ne.s32.totalorder %s309, %s311
    %p315 = scmp.eq.s32.totalorder %s23, 0
    %p316 = por %p314, %p315
    %p317 = scmp.ne.s32.totalorder %s309, %s311
    %p318 = scmp.eq.s32.totalorder %s28, 1
    %p319 = por %p317, %p318
    %p320 = scmp.ne.s32.totalorder %s311, %s312
    %p321 = scmp.eq.s32.totalorder %s28, 0
    %p322 = por %p320, %p321
    %p323 = scmp.ne.s32.totalorder %s311, %s312
    %p324 = scmp.eq.s32.totalorder %s29, 1
    %p325 = por %p323, %p324
    %p327 = scmp.ne.s32.totalorder %s312, %s326
    %p328 = scmp.eq.s32.totalorder %s29, 0
    %p329 = por %p327, %p328
    %s331 = sadd.s32 %s330, 1
    %p334 = scmp.eq.s32.totalorder %s23, 1
    %p335 = scmp.ne.s32.totalorder %s330, %s332
    %p336 = scmp.eq.s32.totalorder %s23, 0
    %p337 = por %p335, %p336
    %p338 = scmp.ne.s32.totalorder %s330, %s332
    %p339 = scmp.eq.s32.totalorder %s28, 1
    %p340 = por %p338, %p339
    %p341 = scmp.ne.s32.totalorder %s332, %s333
    %p342 = scmp.eq.s32.totalorder %s28, 0
    %p343 = por %p341, %p342
    %p344 = scmp.ne.s32.totalorder %s332, %s333
    %p345 = scmp.eq.s32.totalorder %s29, 1
    %p346 = por %p344, %p345
    %p348 = scmp.ne.s32.totalorder %s333, %s347
    %p349 = scmp.eq.s32.totalorder %s29, 0
    %p350 = por %p348, %p349
    %s352 = sadd.s32 %s351, 1
    %p355 = scmp.eq.s32.totalorder %s23, 1
    %p356 = scmp.ne.s32.totalorder %s351, %s353
    %p357 = scmp.eq.s32.totalorder %s23, 0
    %p358 = por %p356, %p357
    %p359 = scmp.ne.s32.totalorder %s351, %s353
    %p360 = scmp.eq.s32.totalorder %s28, 1
    %p361 = por %p359, %p360
    %p362 = scmp.ne.s32.totalorder %s353, %s354
    %p363 = scmp.eq.s32.totalorder %s28, 0
    %p364 = por %p362, %p363
    %p365 = scmp.ne.s32.totalorder %s353, %s354
    %p366 = scmp.eq.s32.totalorder %s29, 1
    %p367 = por %p365, %p366
    %p369 = scmp.ne.s32.totalorder %s354, %s368
    %p370 = scmp.eq.s32.totalorder %s29, 0
    %p371 = por %p369, %p370
    %s373 = sadd.s32 %s372, 1
    %p376 = scmp.eq.s32.totalorder %s23, 1
    %p377 = scmp.ne.s32.totalorder %s372, %s374
    %p378 = scmp.eq.s32.totalorder %s23, 0
    %p379 = por %p377, %p378
    %p380 = scmp.ne.s32.totalorder %s372, %s374
    %p381 = scmp.eq.s32.totalorder %s28, 1
    %p382 = por %p380, %p381
    %p383 = scmp.ne.s32.totalorder %s374, %s375
    %p384 = scmp.eq.s32.totalorder %s28, 0
    %p385 = por %p383, %p384
    %p386 = scmp.ne.s32.totalorder %s374, %s375
    %p387 = scmp.eq.s32.totalorder %s29, 1
    %p388 = por %p386, %p387
    %p390 = scmp.ne.s32.totalorder %s375, %s389
    %p391 = scmp.eq.s32.totalorder %s29, 0
    %p392 = por %p390, %p391
    %s393 = ssub.s32 %s23, %s30
    %p394 = scmp.eq.s32.totalorder %s393, 0
    %s396 = sadd.s32 %s395, 1
    %s397 = scalar_select %p394, %s395, %s396
    %p400 = pneg %p394
    %p401 = scmp.eq.s32.totalorder %s23, 1
    %p402 = por %p400, %p401
    %p403 = scmp.ne.s32.totalorder %s395, %s398
    %p404 = scmp.eq.s32.totalorder %s23, 0
    %p405 = por %p403, %p404
    %p406 = scmp.ne.s32.totalorder %s395, %s398
    %p407 = scmp.eq.s32.totalorder %s28, 1
    %p408 = por %p406, %p407
    %p409 = scmp.ne.s32.totalorder %s398, %s399
    %p410 = scmp.eq.s32.totalorder %s28, 0
    %p411 = por %p409, %p410
    %p412 = scmp.ne.s32.totalorder %s398, %s399
    %p413 = scmp.eq.s32.totalorder %s29, 1
    %p414 = por %p412, %p413
    %p416 = scmp.ne.s32.totalorder %s399, %s415
    %p417 = scmp.eq.s32.totalorder %s29, 0
    %p418 = por %p416, %p417
    %p419 = scmp.le.s32.totalorder 1, %s23
    %p420 = scmp.lt.s32.totalorder %s23, 3
    %p421 = pnand %p419, %p420
    %p422 = pneg %p421
    // Predicated region
    $region9: #{residual_block_forward.1} parent=5 // pred_check
      _
    $region10: #{residual_block_forward.1} parent=5 // pred_check_branch
      %424 = sbr.rel (%p421) target = $region12
    $region11: #{residual_block_forward.1} parent=5 // pred_region
      %s425 = ssub.s32 %s23, 1
      // Predicated region
      $region13: #{residual_block_forward.1} parent=11 // pred_check
        %p426 = pneg %p70
      $region14: #{residual_block_forward.1} parent=11 // pred_check_branch
        %428 = sbr.rel (%p426) target = $region16
      $region15: #{residual_block_forward.1} parent=11 // pred_region
        _
      $region16: #{residual_block_forward.1} parent=11 // pred_fallthru
        _
      // Predicated region
      $region17: #{residual_block_forward.1} parent=11 // pred_check
        %p429 = pneg %p91
      $region18: #{residual_block_forward.1} parent=11 // pred_check_branch
        %431 = sbr.rel (%p429) target = $region20
      $region19: #{residual_block_forward.1} parent=11 // pred_region
        _
      $region20: #{residual_block_forward.1} parent=11 // pred_fallthru
        _
      // Predicated region
      $region21: #{residual_block_forward.1} parent=11 // pred_check
        %p432 = pneg %p112
      $region22: #{residual_block_forward.1} parent=11 // pred_check_branch
        %434 = sbr.rel (%p432) target = $region24
      $region23: #{residual_block_forward.1} parent=11 // pred_region
        _
      $region24: #{residual_block_forward.1} parent=11 // pred_fallthru
        _
      // Predicated region
      $region25: #{residual_block_forward.1} parent=11 // pred_check
        %p435 = pneg %p133
      $region26: #{residual_block_forward.1} parent=11 // pred_check_branch
        %437 = sbr.rel (%p435) target = $region28
      $region27: #{residual_block_forward.1} parent=11 // pred_region
        _
      $region28: #{residual_block_forward.1} parent=11 // pred_fallthru
        _
      // Predicated region
      $region29: #{residual_block_forward.1} parent=11 // pred_check
        %p438 = pneg %p154
      $region30: #{residual_block_forward.1} parent=11 // pred_check_branch
        %440 = sbr.rel (%p438) target = $region32
      $region31: #{residual_block_forward.1} parent=11 // pred_region
        _
      $region32: #{residual_block_forward.1} parent=11 // pred_fallthru
        _
      // Predicated region
      $region33: #{residual_block_forward.1} parent=11 // pred_check
        %p441 = pneg %p175
      $region34: #{residual_block_forward.1} parent=11 // pred_check_branch
        %443 = sbr.rel (%p441) target = $region36
      $region35: #{residual_block_forward.1} parent=11 // pred_region
        _
      $region36: #{residual_block_forward.1} parent=11 // pred_fallthru
        _
      // Predicated region
      $region37: #{residual_block_forward.1} parent=11 // pred_check
        %p444 = pneg %p196
      $region38: #{residual_block_forward.1} parent=11 // pred_check_branch
        %446 = sbr.rel (%p444) target = $region40
      $region39: #{residual_block_forward.1} parent=11 // pred_region
        _
      $region40: #{residual_block_forward.1} parent=11 // pred_fallthru
        _
      // Predicated region
      $region41: #{residual_block_forward.1} parent=11 // pred_check
        %p447 = pneg %p217
      $region42: #{residual_block_forward.1} parent=11 // pred_check_branch
        %449 = sbr.rel (%p447) target = $region44
      $region43: #{residual_block_forward.1} parent=11 // pred_region
        _
      $region44: #{residual_block_forward.1} parent=11 // pred_fallthru
        _
      // Predicated region
      $region45: #{residual_block_forward.1} parent=11 // pred_check
        %p450 = pneg %p238
      $region46: #{residual_block_forward.1} parent=11 // pred_check_branch
        %452 = sbr.rel (%p450) target = $region48
      $region47: #{residual_block_forward.1} parent=11 // pred_region
        _
      $region48: #{residual_block_forward.1} parent=11 // pred_fallthru
        _
      // Predicated region
      $region49: #{residual_block_forward.1} parent=11 // pred_check
        %p453 = pneg %p259
      $region50: #{residual_block_forward.1} parent=11 // pred_check_branch
        %455 = sbr.rel (%p453) target = $region52
      $region51: #{residual_block_forward.1} parent=11 // pred_region
        _
      $region52: #{residual_block_forward.1} parent=11 // pred_fallthru
        _
      // Predicated region
      $region53: #{residual_block_forward.1} parent=11 // pred_check
        %p456 = pneg %p280
      $region54: #{residual_block_forward.1} parent=11 // pred_check_branch
        %458 = sbr.rel (%p456) target = $region56
      $region55: #{residual_block_forward.1} parent=11 // pred_region
        _
      $region56: #{residual_block_forward.1} parent=11 // pred_fallthru
        _
      // Predicated region
      $region57: #{residual_block_forward.1} parent=11 // pred_check
        %p459 = pneg %p301
      $region58: #{residual_block_forward.1} parent=11 // pred_check_branch
        %461 = sbr.rel (%p459) target = $region60
      $region59: #{residual_block_forward.1} parent=11 // pred_region
        _
      $region60: #{residual_block_forward.1} parent=11 // pred_fallthru
        _
      // Predicated region
      $region61: #{residual_block_forward.1} parent=11 // pred_check
        %p462 = pneg %p322
      $region62: #{residual_block_forward.1} parent=11 // pred_check_branch
        %464 = sbr.rel (%p462) target = $region64
      $region63: #{residual_block_forward.1} parent=11 // pred_region
        _
      $region64: #{residual_block_forward.1} parent=11 // pred_fallthru
        _
      // Predicated region
      $region65: #{residual_block_forward.1} parent=11 // pred_check
        %p465 = pneg %p343
      $region66: #{residual_block_forward.1} parent=11 // pred_check_branch
        %467 = sbr.rel (%p465) target = $region68
      $region67: #{residual_block_forward.1} parent=11 // pred_region
        _
      $region68: #{residual_block_forward.1} parent=11 // pred_fallthru
        _
      // Predicated region
      $region69: #{residual_block_forward.1} parent=11 // pred_check
        %p468 = pneg %p364
      $region70: #{residual_block_forward.1} parent=11 // pred_check_branch
        %470 = sbr.rel (%p468) target = $region72
      $region71: #{residual_block_forward.1} parent=11 // pred_region
        _
      $region72: #{residual_block_forward.1} parent=11 // pred_fallthru
        _
      // Predicated region
      $region73: #{residual_block_forward.1} parent=11 // pred_check
        %p471 = pneg %p385
      $region74: #{residual_block_forward.1} parent=11 // pred_check_branch
        %473 = sbr.rel (%p471) target = $region76
      $region75: #{residual_block_forward.1} parent=11 // pred_region
        _
      $region76: #{residual_block_forward.1} parent=11 // pred_fallthru
        _
    $region12: #{residual_block_forward.1} parent=5 // pred_fallthru
      _
    %p474 = scmp.lt.s32.totalorder %s23, 2
    // Predicated region
    $region77: #{residual_block_forward.1} parent=5 // pred_check
      %p475 = pneg %p474
    $region78: #{residual_block_forward.1} parent=5 // pred_check_branch
      %477 = sbr.rel (%p475) target = $region80
    $region79: #{residual_block_forward.1} parent=5 // pred_region
      // Predicated region
      $region81: #{residual_block_forward.1} parent=79 // pred_check
        %p478 = pneg %p43
      $region82: #{residual_block_forward.1} parent=79 // pred_check_branch
        %480 = sbr.rel (%p478) target = $region84
      $region83: #{residual_block_forward.1} parent=79 // pred_region
        %p481 = scmp.lt.s32.totalorder %s23, 1
        %s482 = scalar_select %p481, %s23, 1
        %s483 = smul.addr %s482, 32
        %s484 = smul.addr %s483, 8
        %s485 = scalar_lea.vmem %s0, %s484
      $region84: #{residual_block_forward.1} parent=79 // pred_fallthru
        _
    $region80: #{residual_block_forward.1} parent=5 // pred_fallthru
      _
    %p486 = scmp.le.s32.totalorder 1, %s23
    %p487 = scmp.lt.s32.totalorder %s23, 3
    %p488 = pnand %p486, %p487
    %p489 = pneg %p488
    // Predicated region
    $region85: #{residual_block_forward.1} parent=5 // pred_check
      _
    $region86: #{residual_block_forward.1} parent=5 // pred_check_branch
      %491 = sbr.rel (%p488) target = $region88
    $region87: #{residual_block_forward.1} parent=5 // pred_region
      %s492 = ssub.s32 %s23, 1
      %p493 = scmp.lt.s32.totalorder %s28, 1
      %s494 = scalar_select %p493, %s28, 1
      %s495 = smul.addr %s494, 32
      %s496 = smul.addr %s495, 8
      %s497 = scalar_lea.vmem %s0, %s496
      %p498 = pneg %p49
      %p499 = pneg %p46
      %p500 = pneg %p70
      %p501 = pneg %p67
      %p502 = pneg %p91
      %p503 = pneg %p88
      %p504 = pneg %p112
      %p505 = pneg %p109
      %p506 = pneg %p133
      %p507 = pneg %p130
      %p508 = pneg %p154
      %p509 = pneg %p151
      %p510 = pneg %p175
      %p511 = pneg %p172
      %p512 = pneg %p196
      %p513 = pneg %p193
      %p514 = pneg %p217
      %p515 = pneg %p214
      %p516 = pneg %p238
      %p517 = pneg %p235
      %p518 = pneg %p259
      %p519 = pneg %p256
      %p520 = pneg %p280
      %p521 = pneg %p277
      %p522 = pneg %p301
      %p523 = pneg %p298
      %p524 = pneg %p322
      %p525 = pneg %p319
      %p526 = pneg %p343
      %p527 = pneg %p340
      %p528 = pneg %p364
      %p529 = pneg %p361
      %p530 = pneg %p385
      %p531 = pneg %p382
      %p532 = pneg %p411
      %p533 = pneg %p408
      %p534 = scmp.lt.s32.totalorder %s28, 1
      %s535 = scalar_select %p534, %s28, 1
      %s536 = smul.addr %s535, 8
      %s537 = scalar_lea.vmem %s17, %s536
      %p538 = scmp.lt.s32.totalorder %s28, 1
      %s539 = scalar_select %p538, %s28, 1
      %s540 = smul.addr %s539, 32
      %s541 = smul.addr %s540, 8
      %s542 = scalar_lea.vmem %s0, %s541
      %p543 = scmp.lt.s32.totalorder %s28, 1
      %s544 = scalar_select %p543, %s28, 1
      %s545 = smul.addr %s544, 8
      %s546 = scalar_lea.vmem %s17, %s545
      %vm548 = vcmask 31744
      %549 = vst.msk [vmem:[#allocation2] sm:$0xff] %vm548, 0
      %550 = vst.msk [vmem:[#allocation2 + $0x48] sm:$0xff] %vm548, 0
      %551 = vst.msk [vmem:[#allocation2 + $0x90] sm:$0xff] %vm548, 0
      %552 = vst.msk [vmem:[#allocation2 + $0xd8] sm:$0xff] %vm548, 0
      %vm553 = vcmask 24576
      %vm554 = vsmask.f32 256
      %vm555 = vmand %vm553, %vm554
      %v556 = vld [vmem:[#allocation2] sm:$0x1]
      %v557 = vsel %vm555, 0, %v556
      %558 = vst [vmem:[#allocation2] sm:$0x1] %v557
      %v559 = vld [vmem:[#allocation2 + $0x8] sm:$0x1]
      %v560 = vsel %vm555, 0, %v559
      %561 = vst [vmem:[#allocation2 + $0x8] sm:$0x1] %v560
      %v562 = vld [vmem:[#allocation2 + $0x10] sm:$0x1]
      %v563 = vsel %vm555, 0, %v562
      %564 = vst [vmem:[#allocation2 + $0x10] sm:$0x1] %v563
      %v565 = vld [vmem:[#allocation2 + $0x18] sm:$0x1]
      %v566 = vsel %vm555, 0, %v565
      %567 = vst [vmem:[#allocation2 + $0x18] sm:$0x1] %v566
      %v568 = vld [vmem:[#allocation2 + $0x20] sm:$0x1]
      %v569 = vsel %vm555, 0, %v568
      %570 = vst [vmem:[#allocation2 + $0x20] sm:$0x1] %v569
      %v571 = vld [vmem:[#allocation2 + $0x28] sm:$0x1]
      %v572 = vsel %vm555, 0, %v571
      %573 = vst [vmem:[#allocation2 + $0x28] sm:$0x1] %v572
      %v574 = vld [vmem:[#allocation2 + $0x30] sm:$0x1]
      %v575 = vsel %vm555, 0, %v574
      %576 = vst [vmem:[#allocation2 + $0x30] sm:$0x1] %v575
      %v577 = vld [vmem:[#allocation2 + $0x38] sm:$0x1]
      %v578 = vsel %vm555, 0, %v577
      %579 = vst [vmem:[#allocation2 + $0x38] sm:$0x1] %v578
      %v580 = vld [vmem:[#allocation2 + $0x40] sm:$0x1]
      %v581 = vsel %vm555, 0, %v580
      %582 = vst [vmem:[#allocation2 + $0x40] sm:$0x1] %v581
      %v583 = vld [vmem:[#allocation2 + $0x48] sm:$0x1]
      %v584 = vsel %vm555, 0, %v583
      %585 = vst [vmem:[#allocation2 + $0x48] sm:$0x1] %v584
      %v586 = vld [vmem:[#allocation2 + $0x50] sm:$0x1]
      %v587 = vsel %vm555, 0, %v586
      %588 = vst [vmem:[#allocation2 + $0x50] sm:$0x1] %v587
      %v589 = vld [vmem:[#allocation2 + $0x58] sm:$0x1]
      %v590 = vsel %vm555, 0, %v589
      %591 = vst [vmem:[#allocation2 + $0x58] sm:$0x1] %v590
      %v592 = vld [vmem:[#allocation2 + $0x60] sm:$0x1]
      %v593 = vsel %vm555, 0, %v592
      %594 = vst [vmem:[#allocation2 + $0x60] sm:$0x1] %v593
      %v595 = vld [vmem:[#allocation2 + $0x68] sm:$0x1]
      %v596 = vsel %vm555, 0, %v595
      %597 = vst [vmem:[#allocation2 + $0x68] sm:$0x1] %v596
      %v598 = vld [vmem:[#allocation2 + $0x70] sm:$0x1]
      %v599 = vsel %vm555, 0, %v598
      %600 = vst [vmem:[#allocation2 + $0x70] sm:$0x1] %v599
      %v601 = vld [vmem:[#allocation2 + $0x78] sm:$0x1]
      %v602 = vsel %vm555, 0, %v601
      %603 = vst [vmem:[#allocation2 + $0x78] sm:$0x1] %v602
      %v604 = vld [vmem:[#allocation2 + $0x80] sm:$0x1]
      %v605 = vsel %vm555, 0, %v604
      %606 = vst [vmem:[#allocation2 + $0x80] sm:$0x1] %v605
      %v607 = vld [vmem:[#allocation2 + $0x88] sm:$0x1]
      %v608 = vsel %vm555, 0, %v607
      %609 = vst [vmem:[#allocation2 + $0x88] sm:$0x1] %v608
      %v610 = vld [vmem:[#allocation2 + $0x90] sm:$0x1]
      %v611 = vsel %vm555, 0, %v610
      %612 = vst [vmem:[#allocation2 + $0x90] sm:$0x1] %v611
      %v613 = vld [vmem:[#allocation2 + $0x98] sm:$0x1]
      %v614 = vsel %vm555, 0, %v613
      %615 = vst [vmem:[#allocation2 + $0x98] sm:$0x1] %v614
      %v616 = vld [vmem:[#allocation2 + $0xa0] sm:$0x1]
      %v617 = vsel %vm555, 0, %v616
      %618 = vst [vmem:[#allocation2 + $0xa0] sm:$0x1] %v617
      %v619 = vld [vmem:[#allocation2 + $0xa8] sm:$0x1]
      %v620 = vsel %vm555, 0, %v619
      %621 = vst [vmem:[#allocation2 + $0xa8] sm:$0x1] %v620
      %v622 = vld [vmem:[#allocation2 + $0xb0] sm:$0x1]
      %v623 = vsel %vm555, 0, %v622
      %624 = vst [vmem:[#allocation2 + $0xb0] sm:$0x1] %v623
      %v625 = vld [vmem:[#allocation2 + $0xb8] sm:$0x1]
      %v626 = vsel %vm555, 0, %v625
      %627 = vst [vmem:[#allocation2 + $0xb8] sm:$0x1] %v626
      %v628 = vld [vmem:[#allocation2 + $0xc0] sm:$0x1]
      %v629 = vsel %vm555, 0, %v628
      %630 = vst [vmem:[#allocation2 + $0xc0] sm:$0x1] %v629
      %v631 = vld [vmem:[#allocation2 + $0xc8] sm:$0x1]
      %v632 = vsel %vm555, 0, %v631
      %633 = vst [vmem:[#allocation2 + $0xc8] sm:$0x1] %v632
      %v634 = vld [vmem:[#allocation2 + $0xd0] sm:$0x1]
      %v635 = vsel %vm555, 0, %v634
      %636 = vst [vmem:[#allocation2 + $0xd0] sm:$0x1] %v635
      %v637 = vld [vmem:[#allocation2 + $0xd8] sm:$0x1]
      %v638 = vsel %vm555, 0, %v637
      %639 = vst [vmem:[#allocation2 + $0xd8] sm:$0x1] %v638
      %v640 = vld [vmem:[#allocation2 + $0xe0] sm:$0x1]
      %v641 = vsel %vm555, 0, %v640
      %642 = vst [vmem:[#allocation2 + $0xe0] sm:$0x1] %v641
      %v643 = vld [vmem:[#allocation2 + $0xe8] sm:$0x1]
      %v644 = vsel %vm555, 0, %v643
      %645 = vst [vmem:[#allocation2 + $0xe8] sm:$0x1] %v644
      %v646 = vld [vmem:[#allocation2 + $0xf0] sm:$0x1]
      %v647 = vsel %vm555, 0, %v646
      %648 = vst [vmem:[#allocation2 + $0xf0] sm:$0x1] %v647
      %v649 = vld [vmem:[#allocation2 + $0xf8] sm:$0x1]
      %v650 = vsel %vm555, 0, %v649
      %651 = vst [vmem:[#allocation2 + $0xf8] sm:$0x1] %v650
      %v652 = vld [vmem:[#allocation2 + $0x100] sm:$0x1]
      %v653 = vsel %vm555, 0, %v652
      %654 = vst [vmem:[#allocation2 + $0x100] sm:$0x1] %v653
      %v655 = vld [vmem:[#allocation2 + $0x108] sm:$0x1]
      %v656 = vsel %vm555, 0, %v655
      %657 = vst [vmem:[#allocation2 + $0x108] sm:$0x1] %v656
      %v658 = vld [vmem:[#allocation2 + $0x110] sm:$0x1]
      %v659 = vsel %vm555, 0, %v658
      %660 = vst [vmem:[#allocation2 + $0x110] sm:$0x1] %v659
      %v661 = vld [vmem:[#allocation2 + $0x118] sm:$0x1]
      %v662 = vsel %vm555, 0, %v661
      %663 = vst [vmem:[#allocation2 + $0x118] sm:$0x1] %v662
      %vm664 = vcmask 64512
      %665 = vst.msk [vmem:[#allocation4] sm:$0xff] %vm664, 0
      %s666 = scalar_lea.vmem [#allocation4], 72
      %667 = vst.msk [vmem:[%s666] sm:$0xff] %vm664, 0
      %vm668 = vcmask 57344
      %vm669 = vmand %vm668, %vm554
      %v670 = vld [vmem:[#allocation4] sm:$0x1]
      %v671 = vsel %vm669, 0, %v670
      %672 = vst [vmem:[#allocation4] sm:$0x1] %v671
      %v673 = vld [vmem:[#allocation4 + $0x8] sm:$0x1]
      %v674 = vsel %vm669, 0, %v673
      %675 = vst [vmem:[#allocation4 + $0x8] sm:$0x1] %v674
      %v676 = vld [vmem:[#allocation4 + $0x10] sm:$0x1]
      %v677 = vsel %vm669, 0, %v676
      %678 = vst [vmem:[#allocation4 + $0x10] sm:$0x1] %v677
      %v679 = vld [vmem:[#allocation4 + $0x18] sm:$0x1]
      %v680 = vsel %vm669, 0, %v679
      %681 = vst [vmem:[#allocation4 + $0x18] sm:$0x1] %v680
      %v682 = vld [vmem:[#allocation4 + $0x20] sm:$0x1]
      %v683 = vsel %vm669, 0, %v682
      %684 = vst [vmem:[#allocation4 + $0x20] sm:$0x1] %v683
      %v685 = vld [vmem:[#allocation4 + $0x28] sm:$0x1]
      %v686 = vsel %vm669, 0, %v685
      %687 = vst [vmem:[#allocation4 + $0x28] sm:$0x1] %v686
      %v688 = vld [vmem:[#allocation4 + $0x30] sm:$0x1]
      %v689 = vsel %vm669, 0, %v688
      %690 = vst [vmem:[#allocation4 + $0x30] sm:$0x1] %v689
      %v691 = vld [vmem:[#allocation4 + $0x38] sm:$0x1]
      %v692 = vsel %vm669, 0, %v691
      %693 = vst [vmem:[#allocation4 + $0x38] sm:$0x1] %v692
      %v694 = vld [vmem:[#allocation4 + $0x40] sm:$0x1]
      %v695 = vsel %vm669, 0, %v694
      %696 = vst [vmem:[#allocation4 + $0x40] sm:$0x1] %v695
      %v697 = vld [vmem:[#allocation4 + $0x48] sm:$0x1]
      %v698 = vsel %vm669, 0, %v697
      %699 = vst [vmem:[#allocation4 + $0x48] sm:$0x1] %v698
      %vm700 = vcmask 61444
      %vm701 = vsmask.f32 7954
      %vm702 = vmand %vm700, %vm701
      %v703 = vld [vmem:[#allocation4] sm:$0x10]
      %v704 = vsel %vm702, 0, %v703
      %705 = vst [vmem:[#allocation4] sm:$0x10] %v704
      %v706 = vld [vmem:[#allocation4 + $0x8] sm:$0x10]
      %v707 = vsel %vm702, 0, %v706
      %708 = vst [vmem:[#allocation4 + $0x8] sm:$0x10] %v707
      %v709 = vld [vmem:[#allocation4 + $0x10] sm:$0x10]
      %v710 = vsel %vm702, 0, %v709
      %711 = vst [vmem:[#allocation4 + $0x10] sm:$0x10] %v710
      %v712 = vld [vmem:[#allocation4 + $0x18] sm:$0x10]
      %v713 = vsel %vm702, 0, %v712
      %714 = vst [vmem:[#allocation4 + $0x18] sm:$0x10] %v713
      %v715 = vld [vmem:[#allocation4 + $0x20] sm:$0x10]
      %v716 = vsel %vm702, 0, %v715
      %717 = vst [vmem:[#allocation4 + $0x20] sm:$0x10] %v716
      %v718 = vld [vmem:[#allocation4 + $0x28] sm:$0x10]
      %v719 = vsel %vm702, 0, %v718
      %720 = vst [vmem:[#allocation4 + $0x28] sm:$0x10] %v719
      %v721 = vld [vmem:[#allocation4 + $0x30] sm:$0x10]
      %v722 = vsel %vm702, 0, %v721
      %723 = vst [vmem:[#allocation4 + $0x30] sm:$0x10] %v722
      %v724 = vld [vmem:[#allocation4 + $0x38] sm:$0x10]
      %v725 = vsel %vm702, 0, %v724
      %726 = vst [vmem:[#allocation4 + $0x38] sm:$0x10] %v725
      %v727 = vld [vmem:[#allocation4 + $0x40] sm:$0x10]
      %v728 = vsel %vm702, 0, %v727
      %729 = vst [vmem:[#allocation4 + $0x40] sm:$0x10] %v728
      %v730 = vld [vmem:[#allocation4 + $0x48] sm:$0x10]
      %v731 = vsel %vm702, 0, %v730
      %732 = vst [vmem:[#allocation4 + $0x48] sm:$0x10] %v731
      %v733 = vld [vmem:[%s542] sm:$0xff]
      %v734 = vld [vmem:[%s542 + $0x8] sm:$0xff]
      %v735 = vld [vmem:[%s542 + $0x10] sm:$0xff]
      %v736 = vld [vmem:[%s542 + $0x18] sm:$0xff]
      %v737 = vld [vmem:[%s542 + $0x20] sm:$0xff]
      %v738 = vld [vmem:[%s542 + $0x28] sm:$0xff]
      %v739 = vld [vmem:[%s542 + $0x30] sm:$0xff]
      %v740 = vld [vmem:[%s542 + $0x38] sm:$0xff]
      %v741 = vld [vmem:[%s542 + $0x40] sm:$0xff]
      %v742 = vld [vmem:[%s542 + $0x48] sm:$0xff]
      %v743 = vld [vmem:[%s542 + $0x50] sm:$0xff]
      %v744 = vld [vmem:[%s542 + $0x58] sm:$0xff]
      %v745 = vld [vmem:[%s542 + $0x60] sm:$0xff]
      %v746 = vld [vmem:[%s542 + $0x68] sm:$0xff]
      %v747 = vld [vmem:[%s542 + $0x70] sm:$0xff]
      %v748 = vld [vmem:[%s542 + $0x78] sm:$0xff]
      %v749 = vld [vmem:[%s542 + $0x80] sm:$0xff]
      %v750 = vld [vmem:[%s542 + $0x88] sm:$0xff]
      %v751 = vld [vmem:[%s542 + $0x90] sm:$0xff]
      %v752 = vld [vmem:[%s542 + $0x98] sm:$0xff]
      %v753 = vld [vmem:[%s542 + $0xa0] sm:$0xff]
      %v754 = vld [vmem:[%s542 + $0xa8] sm:$0xff]
      %v755 = vld [vmem:[%s542 + $0xb0] sm:$0xff]
      %v756 = vld [vmem:[%s542 + $0xb8] sm:$0xff]
      %v757 = vld [vmem:[%s542 + $0xc0] sm:$0xff]
      %v758 = vld [vmem:[%s542 + $0xc8] sm:$0xff]
      %v759 = vld [vmem:[%s542 + $0xd0] sm:$0xff]
      %v760 = vld [vmem:[%s542 + $0xd8] sm:$0xff]
      %v761 = vld [vmem:[%s542 + $0xe0] sm:$0xff]
      %v762 = vld [vmem:[%s542 + $0xe8] sm:$0xff]
      %v763 = vld [vmem:[%s542 + $0xf0] sm:$0xff]
      %v764 = vld [vmem:[%s542 + $0xf8] sm:$0xff]
      %v765 = vld [vmem:[%s1] sm:$0xf]
      %v766 = vld [vmem:[%s2] sm:$0x3]
      %v767 = vsel %vm548, %v733, 0.0
      %v768 = vsel %vm548, %v734, 0.0
      %v769 = vadd.f32 %v767, %v768
      %v770 = vsel %vm548, %v735, 0.0
      %v771 = vadd.f32 %v769, %v770
      %v772 = vsel %vm548, %v736, 0.0
      %v773 = vadd.f32 %v771, %v772
      %v774 = vsel %vm548, %v737, 0.0
      %v775 = vadd.f32 %v773, %v774
      %v776 = vsel %vm548, %v738, 0.0
      %v777 = vadd.f32 %v775, %v776
      %v778 = vsel %vm548, %v739, 0.0
      %v779 = vadd.f32 %v777, %v778
      %v780 = vsel %vm548, %v740, 0.0
      %v781 = vadd.f32 %v779, %v780
      %v782 = vsel %vm548, %v741, 0.0
      %v783 = vadd.f32 %v781, %v782
      %v784 = vsel %vm548, %v742, 0.0
      %v785 = vadd.f32 %v783, %v784
      %v786 = vsel %vm548, %v743, 0.0
      %v787 = vadd.f32 %v785, %v786
      %v788 = vsel %vm548, %v744, 0.0
      %v789 = vadd.f32 %v787, %v788
      %v790 = vsel %vm548, %v745, 0.0
      %v791 = vadd.f32 %v789, %v790
      %v792 = vsel %vm548, %v746, 0.0
      %v793 = vadd.f32 %v791, %v792
      %v794 = vsel %vm548, %v747, 0.0
      %v795 = vadd.f32 %v793, %v794
      %v796 = vsel %vm548, %v748, 0.0
      %v797 = vadd.f32 %v795, %v796
      %v798 = vsel %vm548, %v749, 0.0
      %v799 = vadd.f32 %v797, %v798
      %v800 = vsel %vm548, %v750, 0.0
      %v801 = vadd.f32 %v799, %v800
      %v802 = vsel %vm548, %v751, 0.0
      %v803 = vadd.f32 %v801, %v802
      %v804 = vsel %vm548, %v752, 0.0
      %v805 = vadd.f32 %v803, %v804
      %v806 = vsel %vm548, %v753, 0.0
      %v807 = vadd.f32 %v805, %v806
      %v808 = vsel %vm548, %v754, 0.0
      %v809 = vadd.f32 %v807, %v808
      %v810 = vsel %vm548, %v755, 0.0
      %v811 = vadd.f32 %v809, %v810
      %v812 = vsel %vm548, %v756, 0.0
      %v813 = vadd.f32 %v811, %v812
      %v814 = vsel %vm548, %v757, 0.0
      %v815 = vadd.f32 %v813, %v814
      %v816 = vsel %vm548, %v758, 0.0
      %v817 = vadd.f32 %v815, %v816
      %v818 = vsel %vm548, %v759, 0.0
      %v819 = vadd.f32 %v817, %v818
      %v820 = vsel %vm548, %v760, 0.0
      %v821 = vadd.f32 %v819, %v820
      %v822 = vsel %vm548, %v761, 0.0
      %v823 = vadd.f32 %v821, %v822
      %v824 = vsel %vm548, %v762, 0.0
      %v825 = vadd.f32 %v823, %v824
      %v826 = vsel %vm548, %v763, 0.0
      %v827 = vadd.f32 %v825, %v826
      %v828 = vsel %vm548, %v764, 0.0
      %v829 = vadd.f32 %v827, %v828
      %v830 = vrot.slane %v829, 4
      %v831 = vadd.f32 %v829, %v830
      %v832 = vrot.slane %v831, 2
      %v833 = vadd.f32 %v831, %v832
      %v834 = vrot.slane %v833, 1
      %v835 = vadd.f32 %v833, %v834
      %v837 = vsel %vm548, %v835, 0
      %vm839 = vcmask 1043456
      %v841 = vsel %vm839, %v765, 0
      %843 = vmatprep.subr.mxu0 0.0
      %844 = vmatpush1.msra.mxu0 %v841
      %845 = vmatprep.subr.mxu0 0.0
      %846 = vmatpush1.msra.mxu0 0.0
      %847 = vmatprep.subr.mxu0 0.0
      %848 = vmatpush1.msra.mxu0 0.0
      %849 = vmatprep.subr.mxu0 0.0
      %850 = vmatpush1.msra.mxu0 0.0
      %851 = vmatprep.subr.mxu0 0.0
      %852 = vmatpush1.msra.mxu0 0.0
      %853 = vmatprep.subr.mxu0 0.0
      %854 = vmatpush1.msra.mxu0 0.0
      %855 = vmatprep.subr.mxu0 0.0
      %856 = vmatpush1.msra.mxu0 0.0
      %857 = vmatprep.subr.mxu0 0.0
      %858 = vmatpush1.msra.mxu0 0.0
      %859 = vmatprep.subr.mxu0 0.0
      %860 = vmatpush1.msra.mxu0 0.0
      %861 = vmatprep.subr.mxu0 0.0
      %862 = vmatpush1.msra.mxu0 0.0
      %863 = vmatprep.subr.mxu0 0.0
      %864 = vmatpush1.msra.mxu0 0.0
      %865 = vmatprep.subr.mxu0 0.0
      %866 = vmatpush1.msra.mxu0 0.0
      %867 = vmatprep.subr.mxu0 0.0
      %868 = vmatpush1.msra.mxu0 0.0
      %869 = vmatprep.subr.mxu0 0.0
      %870 = vmatpush1.msra.mxu0 0.0
      %871 = vmatprep.subr.mxu0 0.0
      %872 = vmatpush1.msra.mxu0 0.0
      %873 = vmatprep.subr.mxu0 0.0
      %874 = vmatpush1.msra.mxu0 0.0
      %875 = vmatprep.subr.mxu0 0.0
      %876 = vmatpush1.msra.mxu0 0.0
      %877 = vmatprep.subr.mxu0 0.0
      %878 = vmatpush1.msra.mxu0 0.0
      %879 = vmatprep.subr.mxu0 0.0
      %880 = vmatpush1.msra.mxu0 0.0
      %881 = vmatprep.subr.mxu0 0.0
      %882 = vmatpush1.msra.mxu0 0.0
      %883 = vmatprep.subr.mxu0 0.0
      %884 = vmatpush1.msra.mxu0 0.0
      %885 = vmatprep.subr.mxu0 0.0
      %886 = vmatpush1.msra.mxu0 0.0
      %887 = vmatprep.subr.mxu0 0.0
      %888 = vmatpush1.msra.mxu0 0.0
      %889 = vmatprep.subr.mxu0 0.0
      %890 = vmatpush1.msra.mxu0 0.0
      %891 = vmatprep.subr.mxu0 0.0
      %892 = vmatpush1.msra.mxu0 0.0
      %893 = vmatprep.subr.mxu0 0.0
      %894 = vmatpush1.msra.mxu0 0.0
      %895 = vmatprep.subr.mxu0 0.0
      %896 = vmatpush1.msra.mxu0 0.0
      %897 = vmatprep.subr.mxu0 0.0
      %898 = vmatpush1.msra.mxu0 0.0
      %899 = vmatprep.subr.mxu0 0.0
      %900 = vmatpush1.msra.mxu0 0.0
      %901 = vmatprep.subr.mxu0 0.0
      %902 = vmatpush1.msra.mxu0 0.0
      %903 = vmatprep.subr.mxu0 0.0
      %904 = vmatpush1.msra.mxu0 0.0
      %905 = vmatprep.subr.mxu0 0.0
      %906 = vmatpush1.msra.mxu0 0.0
      %907 = vmatprep.mubr.f32.mxu0 0.0
      %908 = vmatmul.mubr.f32.gmra.mrb[0].mxu0 %v837
      %v909 = vpop.f32.mrb[0].mxu0
      %v910 = vadd.f32 0.0, %v909
      %v911 = vpop.f32.mrb[0].mxu0
      %912 = vdwg.mxu0
      %vm913 = vcmask 15360
      %v915 = vsel %vm913, %v910, 0
      %vm917 = vcmask 1041408
      %v919 = vsel %vm917, %v766, 0
      %921 = vmatprep.subr.mxu0 0.0
      %922 = vmatpush1.msra.mxu0 %v919
      %923 = vmatprep.subr.mxu0 0.0
      %924 = vmatpush1.msra.mxu0 0.0
      %925 = vmatprep.subr.mxu0 0.0
      %926 = vmatpush1.msra.mxu0 0.0
      %927 = vmatprep.subr.mxu0 0.0
      %928 = vmatpush1.msra.mxu0 0.0
      %929 = vmatprep.subr.mxu0 0.0
      %930 = vmatpush1.msra.mxu0 0.0
      %931 = vmatprep.subr.mxu0 0.0
      %932 = vmatpush1.msra.mxu0 0.0
      %933 = vmatprep.subr.mxu0 0.0
      %934 = vmatpush1.msra.mxu0 0.0
      %935 = vmatprep.subr.mxu0 0.0
      %936 = vmatpush1.msra.mxu0 0.0
      %937 = vmatprep.subr.mxu0 0.0
      %938 = vmatpush1.msra.mxu0 0.0
      %939 = vmatprep.subr.mxu0 0.0
      %940 = vmatpush1.msra.mxu0 0.0
      %941 = vmatprep.subr.mxu0 0.0
      %942 = vmatpush1.msra.mxu0 0.0
      %943 = vmatprep.subr.mxu0 0.0
      %944 = vmatpush1.msra.mxu0 0.0
      %945 = vmatprep.subr.mxu0 0.0
      %946 = vmatpush1.msra.mxu0 0.0
      %947 = vmatprep.subr.mxu0 0.0
      %948 = vmatpush1.msra.mxu0 0.0
      %949 = vmatprep.subr.mxu0 0.0
      %950 = vmatpush1.msra.mxu0 0.0
      %951 = vmatprep.subr.mxu0 0.0
      %952 = vmatpush1.msra.mxu0 0.0
      %953 = vmatprep.subr.mxu0 0.0
      %954 = vmatpush1.msra.mxu0 0.0
      %955 = vmatprep.subr.mxu0 0.0
      %956 = vmatpush1.msra.mxu0 0.0
      %957 = vmatprep.subr.mxu0 0.0
      %958 = vmatpush1.msra.mxu0 0.0
      %959 = vmatprep.subr.mxu0 0.0
      %960 = vmatpush1.msra.mxu0 0.0
      %961 = vmatprep.subr.mxu0 0.0
      %962 = vmatpush1.msra.mxu0 0.0
      %963 = vmatprep.subr.mxu0 0.0
      %964 = vmatpush1.msra.mxu0 0.0
      %965 = vmatprep.subr.mxu0 0.0
      %966 = vmatpush1.msra.mxu0 0.0
      %967 = vmatprep.subr.mxu0 0.0
      %968 = vmatpush1.msra.mxu0 0.0
      %969 = vmatprep.subr.mxu0 0.0
      %970 = vmatpush1.msra.mxu0 0.0
      %971 = vmatprep.subr.mxu0 0.0
      %972 = vmatpush1.msra.mxu0 0.0
      %973 = vmatprep.subr.mxu0 0.0
      %974 = vmatpush1.msra.mxu0 0.0
      %975 = vmatprep.subr.mxu0 0.0
      %976 = vmatpush1.msra.mxu0 0.0
      %977 = vmatprep.subr.mxu0 0.0
      %978 = vmatpush1.msra.mxu0 0.0
      %979 = vmatprep.subr.mxu0 0.0
      %980 = vmatpush1.msra.mxu0 0.0
      %981 = vmatprep.subr.mxu0 0.0
      %982 = vmatpush1.msra.mxu0 0.0
      %983 = vmatprep.subr.mxu0 0.0
      %984 = vmatpush1.msra.mxu0 0.0
      %985 = vmatprep.mubr.f32.mxu0 0.0
      %986 = vmatmul.mubr.f32.gmra.mrb[0].mxu0 %v915
      %v987 = vpop.f32.mrb[0].mxu0
      %v988 = vadd.f32 0.0, %v987
      %v989 = vpop.f32.mrb[0].mxu0
      %990 = vdwg.mxu0
      %v991 = vlaneseq
      %v992 = vshrl.u32 %v991, 7
      %v993 = vsub.s32 0, %v992
      %v994 = vrot.slane %v988, %v993
      %v995 = vsub.f32 %v733, %v994
      %v996 = vsub.f32 %v734, %v994
      %v997 = vsub.f32 %v735, %v994
      %v998 = vsub.f32 %v736, %v994
      %v999 = vsub.f32 %v737, %v994
      %v1000 = vsub.f32 %v738, %v994
      %v1001 = vsub.f32 %v739, %v994
      %v1002 = vsub.f32 %v740, %v994
      %v1003 = vsub.f32 %v741, %v994
      %v1004 = vsub.f32 %v742, %v994
      %v1005 = vsub.f32 %v743, %v994
      %v1006 = vsub.f32 %v744, %v994
      %v1007 = vsub.f32 %v745, %v994
      %v1008 = vsub.f32 %v746, %v994
      %v1009 = vsub.f32 %v747, %v994
      %v1010 = vsub.f32 %v748, %v994
      %v1011 = vsub.f32 %v749, %v994
      %v1012 = vsub.f32 %v750, %v994
      %v1013 = vsub.f32 %v751, %v994
      %v1014 = vsub.f32 %v752, %v994
      %v1015 = vsub.f32 %v753, %v994
      %v1016 = vsub.f32 %v754, %v994
      %v1017 = vsub.f32 %v755, %v994
      %v1018 = vsub.f32 %v756, %v994
      %v1019 = vsub.f32 %v757, %v994
      %v1020 = vsub.f32 %v758, %v994
      %v1021 = vsub.f32 %v759, %v994
      %v1022 = vsub.f32 %v760, %v994
      %v1023 = vsub.f32 %v761, %v994
      %v1024 = vsub.f32 %v762, %v994
      %v1025 = vsub.f32 %v763, %v994
      %v1026 = vsub.f32 %v764, %v994
      %v1027 = vmul.f32 %v995, %v995
      %v1028 = vmul.f32 %v996, %v996
      %v1029 = vmul.f32 %v997, %v997
      %v1030 = vmul.f32 %v998, %v998
      %v1031 = vmul.f32 %v999, %v999
      %v1032 = vmul.f32 %v1000, %v1000
      %v1033 = vmul.f32 %v1001, %v1001
      %v1034 = vmul.f32 %v1002, %v1002
      %v1035 = vmul.f32 %v1003, %v1003
      %v1036 = vmul.f32 %v1004, %v1004
      %v1037 = vmul.f32 %v1005, %v1005
      %v1038 = vmul.f32 %v1006, %v1006
      %v1039 = vmul.f32 %v1007, %v1007
      %v1040 = vmul.f32 %v1008, %v1008
      %v1041 = vmul.f32 %v1009, %v1009
      %v1042 = vmul.f32 %v1010, %v1010
      %v1043 = vmul.f32 %v1011, %v1011
      %v1044 = vmul.f32 %v1012, %v1012
      %v1045 = vmul.f32 %v1013, %v1013
      %v1046 = vmul.f32 %v1014, %v1014
      %v1047 = vmul.f32 %v1015, %v1015
      %v1048 = vmul.f32 %v1016, %v1016
      %v1049 = vmul.f32 %v1017, %v1017
      %v1050 = vmul.f32 %v1018, %v1018
      %v1051 = vmul.f32 %v1019, %v1019
      %v1052 = vmul.f32 %v1020, %v1020
      %v1053 = vmul.f32 %v1021, %v1021
      %v1054 = vmul.f32 %v1022, %v1022
      %v1055 = vmul.f32 %v1023, %v1023
      %v1056 = vmul.f32 %v1024, %v1024
      %v1057 = vmul.f32 %v1025, %v1025
      %v1058 = vmul.f32 %v1026, %v1026
      %v1059 = vsel %vm548, %v1027, 0.0
      %v1060 = vsel %vm548, %v1028, 0.0
      %v1061 = vadd.f32 %v1059, %v1060
      %v1062 = vsel %vm548, %v1029, 0.0
      %v1063 = vadd.f32 %v1061, %v1062
      %v1064 = vsel %vm548, %v1030, 0.0
      %v1065 = vadd.f32 %v1063, %v1064
      %v1066 = vsel %vm548, %v1031, 0.0
      %v1067 = vadd.f32 %v1065, %v1066
      %v1068 = vsel %vm548, %v1032, 0.0
      %v1069 = vadd.f32 %v1067, %v1068
      %v1070 = vsel %vm548, %v1033, 0.0
      %v1071 = vadd.f32 %v1069, %v1070
      %v1072 = vsel %vm548, %v1034, 0.0
      %v1073 = vadd.f32 %v1071, %v1072
      %v1074 = vsel %vm548, %v1035, 0.0
      %v1075 = vadd.f32 %v1073, %v1074
      %v1076 = vsel %vm548, %v1036, 0.0
      %v1077 = vadd.f32 %v1075, %v1076
      %v1078 = vsel %vm548, %v1037, 0.0
      %v1079 = vadd.f32 %v1077, %v1078
      %v1080 = vsel %vm548, %v1038, 0.0
      %v1081 = vadd.f32 %v1079, %v1080
      %v1082 = vsel %vm548, %v1039, 0.0
      %v1083 = vadd.f32 %v1081, %v1082
      %v1084 = vsel %vm548, %v1040, 0.0
      %v1085 = vadd.f32 %v1083, %v1084
      %v1086 = vsel %vm548, %v1041, 0.0
      %v1087 = vadd.f32 %v1085, %v1086
      %v1088 = vsel %vm548, %v1042, 0.0
      %v1089 = vadd.f32 %v1087, %v1088
      %v1090 = vsel %vm548, %v1043, 0.0
      %v1091 = vadd.f32 %v1089, %v1090
      %v1092 = vsel %vm548, %v1044, 0.0
      %v1093 = vadd.f32 %v1091, %v1092
      %v1094 = vsel %vm548, %v1045, 0.0
      %v1095 = vadd.f32 %v1093, %v1094
      %v1096 = vsel %vm548, %v1046, 0.0
      %v1097 = vadd.f32 %v1095, %v1096
      %v1098 = vsel %vm548, %v1047, 0.0
      %v1099 = vadd.f32 %v1097, %v1098
      %v1100 = vsel %vm548, %v1048, 0.0
      %v1101 = vadd.f32 %v1099, %v1100
      %v1102 = vsel %vm548, %v1049, 0.0
      %v1103 = vadd.f32 %v1101, %v1102
      %v1104 = vsel %vm548, %v1050, 0.0
      %v1105 = vadd.f32 %v1103, %v1104
      %v1106 = vsel %vm548, %v1051, 0.0
      %v1107 = vadd.f32 %v1105, %v1106
      %v1108 = vsel %vm548, %v1052, 0.0
      %v1109 = vadd.f32 %v1107, %v1108
      %v1110 = vsel %vm548, %v1053, 0.0
      %v1111 = vadd.f32 %v1109, %v1110
      %v1112 = vsel %vm548, %v1054, 0.0
      %v1113 = vadd.f32 %v1111, %v1112
      %v1114 = vsel %vm548, %v1055, 0.0
      %v1115 = vadd.f32 %v1113, %v1114
      %v1116 = vsel %vm548, %v1056, 0.0
      %v1117 = vadd.f32 %v1115, %v1116
      %v1118 = vsel %vm548, %v1057, 0.0
      %v1119 = vadd.f32 %v1117, %v1118
      %v1120 = vsel %vm548, %v1058, 0.0
      %v1121 = vadd.f32 %v1119, %v1120
      %v1122 = vrot.slane %v1121, 4
      %v1123 = vadd.f32 %v1121, %v1122
      %v1124 = vrot.slane %v1123, 2
      %v1125 = vadd.f32 %v1123, %v1124
      %v1126 = vrot.slane %v1125, 1
      %v1127 = vadd.f32 %v1125, %v1126
      %v1129 = vsel %vm548, %v1127, 0
      %1131 = vmatprep.subr.mxu0 0.0
      %1132 = vmatpush1.msra.mxu0 %v841
      %1133 = vmatprep.subr.mxu0 0.0
      %1134 = vmatpush1.msra.mxu0 0.0
      %1135 = vmatprep.subr.mxu0 0.0
      %1136 = vmatpush1.msra.mxu0 0.0
      %1137 = vmatprep.subr.mxu0 0.0
      %1138 = vmatpush1.msra.mxu0 0.0
      %1139 = vmatprep.subr.mxu0 0.0
      %1140 = vmatpush1.msra.mxu0 0.0
      %1141 = vmatprep.subr.mxu0 0.0
      %1142 = vmatpush1.msra.mxu0 0.0
      %1143 = vmatprep.subr.mxu0 0.0
      %1144 = vmatpush1.msra.mxu0 0.0
      %1145 = vmatprep.subr.mxu0 0.0
      %1146 = vmatpush1.msra.mxu0 0.0
      %1147 = vmatprep.subr.mxu0 0.0
      %1148 = vmatpush1.msra.mxu0 0.0
      %1149 = vmatprep.subr.mxu0 0.0
      %1150 = vmatpush1.msra.mxu0 0.0
      %1151 = vmatprep.subr.mxu0 0.0
      %1152 = vmatpush1.msra.mxu0 0.0
      %1153 = vmatprep.subr.mxu0 0.0
      %1154 = vmatpush1.msra.mxu0 0.0
      %1155 = vmatprep.subr.mxu0 0.0
      %1156 = vmatpush1.msra.mxu0 0.0
      %1157 = vmatprep.subr.mxu0 0.0
      %1158 = vmatpush1.msra.mxu0 0.0
      %1159 = vmatprep.subr.mxu0 0.0
      %1160 = vmatpush1.msra.mxu0 0.0
      %1161 = vmatprep.subr.mxu0 0.0
      %1162 = vmatpush1.msra.mxu0 0.0
      %1163 = vmatprep.subr.mxu0 0.0
      %1164 = vmatpush1.msra.mxu0 0.0
      %1165 = vmatprep.subr.mxu0 0.0
      %1166 = vmatpush1.msra.mxu0 0.0
      %1167 = vmatprep.subr.mxu0 0.0
      %1168 = vmatpush1.msra.mxu0 0.0
      %1169 = vmatprep.subr.mxu0 0.0
      %1170 = vmatpush1.msra.mxu0 0.0
      %1171 = vmatprep.subr.mxu0 0.0
      %1172 = vmatpush1.msra.mxu0 0.0
      %1173 = vmatprep.subr.mxu0 0.0
      %1174 = vmatpush1.msra.mxu0 0.0
      %1175 = vmatprep.subr.mxu0 0.0
      %1176 = vmatpush1.msra.mxu0 0.0
      %1177 = vmatprep.subr.mxu0 0.0
      %1178 = vmatpush1.msra.mxu0 0.0
      %1179 = vmatprep.subr.mxu0 0.0
      %1180 = vmatpush1.msra.mxu0 0.0
      %1181 = vmatprep.subr.mxu0 0.0
      %1182 = vmatpush1.msra.mxu0 0.0
      %1183 = vmatprep.subr.mxu0 0.0
      %1184 = vmatpush1.msra.mxu0 0.0
      %1185 = vmatprep.subr.mxu0 0.0
      %1186 = vmatpush1.msra.mxu0 0.0
      %1187 = vmatprep.subr.mxu0 0.0
      %1188 = vmatpush1.msra.mxu0 0.0
      %1189 = vmatprep.subr.mxu0 0.0
      %1190 = vmatpush1.msra.mxu0 0.0
      %1191 = vmatprep.subr.mxu0 0.0
      %1192 = vmatpush1.msra.mxu0 0.0
      %1193 = vmatprep.subr.mxu0 0.0
      %1194 = vmatpush1.msra.mxu0 0.0
      %1195 = vmatprep.mubr.f32.mxu0 0.0
      %1196 = vmatmul.mubr.f32.gmra.mrb[0].mxu0 %v1129
      %v1197 = vpop.f32.mrb[0].mxu0
      %v1198 = vadd.f32 0.0, %v1197
      %v1199 = vpop.f32.mrb[0].mxu0
      %1200 = vdwg.mxu0
      %v1202 = vsel %vm913, %v1198, 0
      %1204 = vmatprep.subr.mxu0 0.0
      %1205 = vmatpush1.msra.mxu0 %v919
      %1206 = vmatprep.subr.mxu0 0.0
      %1207 = vmatpush1.msra.mxu0 0.0
      %1208 = vmatprep.subr.mxu0 0.0
      %1209 = vmatpush1.msra.mxu0 0.0
      %1210 = vmatprep.subr.mxu0 0.0
      %1211 = vmatpush1.msra.mxu0 0.0
      %1212 = vmatprep.subr.mxu0 0.0
      %1213 = vmatpush1.msra.mxu0 0.0
      %1214 = vmatprep.subr.mxu0 0.0
      %1215 = vmatpush1.msra.mxu0 0.0
      %1216 = vmatprep.subr.mxu0 0.0
      %1217 = vmatpush1.msra.mxu0 0.0
      %1218 = vmatprep.subr.mxu0 0.0
      %1219 = vmatpush1.msra.mxu0 0.0
      %1220 = vmatprep.subr.mxu0 0.0
      %1221 = vmatpush1.msra.mxu0 0.0
      %1222 = vmatprep.subr.mxu0 0.0
      %1223 = vmatpush1.msra.mxu0 0.0
      %1224 = vmatprep.subr.mxu0 0.0
      %1225 = vmatpush1.msra.mxu0 0.0
      %1226 = vmatprep.subr.mxu0 0.0
      %1227 = vmatpush1.msra.mxu0 0.0
      %1228 = vmatprep.subr.mxu0 0.0
      %1229 = vmatpush1.msra.mxu0 0.0
      %1230 = vmatprep.subr.mxu0 0.0
      %1231 = vmatpush1.msra.mxu0 0.0
      %1232 = vmatprep.subr.mxu0 0.0
      %1233 = vmatpush1.msra.mxu0 0.0
      %1234 = vmatprep.subr.mxu0 0.0
      %1235 = vmatpush1.msra.mxu0 0.0
      %1236 = vmatprep.subr.mxu0 0.0
      %1237 = vmatpush1.msra.mxu0 0.0
      %1238 = vmatprep.subr.mxu0 0.0
      %1239 = vmatpush1.msra.mxu0 0.0
      %1240 = vmatprep.subr.mxu0 0.0
      %1241 = vmatpush1.msra.mxu0 0.0
      %1242 = vmatprep.subr.mxu0 0.0
      %1243 = vmatpush1.msra.mxu0 0.0
      %1244 = vmatprep.subr.mxu0 0.0
      %1245 = vmatpush1.msra.mxu0 0.0
      %1246 = vmatprep.subr.mxu0 0.0
      %1247 = vmatpush1.msra.mxu0 0.0
      %1248 = vmatprep.subr.mxu0 0.0
      %1249 = vmatpush1.msra.mxu0 0.0
      %1250 = vmatprep.subr.mxu0 0.0
      %1251 = vmatpush1.msra.mxu0 0.0
      %1252 = vmatprep.subr.mxu0 0.0
      %1253 = vmatpush1.msra.mxu0 0.0
      %1254 = vmatprep.subr.mxu0 0.0
      %1255 = vmatpush1.msra.mxu0 0.0
      %1256 = vmatprep.subr.mxu0 0.0
      %1257 = vmatpush1.msra.mxu0 0.0
      %1258 = vmatprep.subr.mxu0 0.0
      %1259 = vmatpush1.msra.mxu0 0.0
      %1260 = vmatprep.subr.mxu0 0.0
      %1261 = vmatpush1.msra.mxu0 0.0
      %1262 = vmatprep.subr.mxu0 0.0
      %1263 = vmatpush1.msra.mxu0 0.0
      %1264 = vmatprep.subr.mxu0 0.0
      %1265 = vmatpush1.msra.mxu0 0.0
      %1266 = vmatprep.subr.mxu0 0.0
      %1267 = vmatpush1.msra.mxu0 0.0
      %1268 = vmatprep.mubr.f32.mxu0 0.0
      %1269 = vmatmul.mubr.f32.gmra.mrb[0].mxu0 %v1202
      %v1270 = vpop.f32.mrb[0].mxu0
      %v1271 = vadd.f32 1e-05, %v1270
      %v1272 = vpop.f32.mrb[0].mxu0
      %1273 = vdwg.mxu0
      %v1274 = vrsqrt.pop %v1271
      %v1275 = vlaneseq
      %v1276 = vshrl.u32 %v1275, 7
      %v1277 = vsub.s32 0, %v1276
      %v1278 = vrot.slane %v1274, %v1277
      %v1279 = vmul.f32 %v995, %v1278
      %v1280 = vmul.f32 %v996, %v1278
      %v1281 = vmul.f32 %v997, %v1278
      %v1282 = vmul.f32 %v998, %v1278
      %v1283 = vmul.f32 %v999, %v1278
      %v1284 = vmul.f32 %v1000, %v1278
      %v1285 = vmul.f32 %v1001, %v1278
      %v1286 = vmul.f32 %v1002, %v1278
      %v1287 = vmul.f32 %v1003, %v1278
      %v1288 = vmul.f32 %v1004, %v1278
      %v1289 = vmul.f32 %v1005, %v1278
      %v1290 = vmul.f32 %v1006, %v1278
      %v1291 = vmul.f32 %v1007, %v1278
      %v1292 = vmul.f32 %v1008, %v1278
      %v1293 = vmul.f32 %v1009, %v1278
      %v1294 = vmul.f32 %v1010, %v1278
      %v1295 = vmul.f32 %v1011, %v1278
      %v1296 = vmul.f32 %v1012, %v1278
      %v1297 = vmul.f32 %v1013, %v1278
      %v1298 = vmul.f32 %v1014, %v1278
      %v1299 = vmul.f32 %v1015, %v1278
      %v1300 = vmul.f32 %v1016, %v1278
      %v1301 = vmul.f32 %v1017, %v1278
      %v1302 = vmul.f32 %v1018, %v1278
      %v1303 = vmul.f32 %v1019, %v1278
      %v1304 = vmul.f32 %v1020, %v1278
      %v1305 = vmul.f32 %v1021, %v1278
      %v1306 = vmul.f32 %v1022, %v1278
      %v1307 = vmul.f32 %v1023, %v1278
      %v1308 = vmul.f32 %v1024, %v1278
      %v1309 = vmul.f32 %v1025, %v1278
      %v1310 = vmul.f32 %v1026, %v1278
      %v1311 = vld [vmem:[%s3] sm:$0x1]
      %v1313 = vlaneseq
      %v1314 = vshrl.u32 %v1313, 7
      %v1315 = vsub.s32 0, %v1314
      %v1316 = vrot.slane %v1311, %v1315
      %v1318 = vmul.f32 %v1279, %v1316
      %v1319 = vmul.f32 %v1280, %v1316
      %v1320 = vmul.f32 %v1281, %v1316
      %v1321 = vmul.f32 %v1282, %v1316
      %v1322 = vmul.f32 %v1283, %v1316
      %v1323 = vmul.f32 %v1284, %v1316
      %v1324 = vmul.f32 %v1285, %v1316
      %v1325 = vmul.f32 %v1286, %v1316
      %v1326 = vmul.f32 %v1287, %v1316
      %v1327 = vmul.f32 %v1288, %v1316
      %v1328 = vmul.f32 %v1289, %v1316
      %v1329 = vmul.f32 %v1290, %v1316
      %v1330 = vmul.f32 %v1291, %v1316
      %v1331 = vmul.f32 %v1292, %v1316
      %v1332 = vmul.f32 %v1293, %v1316
      %v1333 = vmul.f32 %v1294, %v1316
      %v1334 = vmul.f32 %v1295, %v1316
      %v1335 = vmul.f32 %v1296, %v1316
      %v1336 = vmul.f32 %v1297, %v1316
      %v1337 = vmul.f32 %v1298, %v1316
      %v1338 = vmul.f32 %v1299, %v1316
      %v1339 = vmul.f32 %v1300, %v1316
      %v1340 = vmul.f32 %v1301, %v1316
      %v1341 = vmul.f32 %v1302, %v1316
      %v1342 = vmul.f32 %v1303, %v1316
      %v1343 = vmul.f32 %v1304, %v1316
      %v1344 = vmul.f32 %v1305, %v1316
      %v1345 = vmul.f32 %v1306, %v1316
      %v1346 = vmul.f32 %v1307, %v1316
      %v1347 = vmul.f32 %v1308, %v1316
      %v1348 = vmul.f32 %v1309, %v1316
      %v1349 = vmul.f32 %v1310, %v1316
      %v1350 = vld [vmem:[%s4] sm:$0x1]
      %v1352 = vlaneseq
      %v1353 = vshrl.u32 %v1352, 7
      %v1354 = vsub.s32 0, %v1353
      %v1355 = vrot.slane %v1350, %v1354
      %v1357 = vadd.f32 %v1318, %v1355
      %v1358 = vadd.f32 %v1319, %v1355
      %v1359 = vadd.f32 %v1320, %v1355
      %v1360 = vadd.f32 %v1321, %v1355
      %v1361 = vadd.f32 %v1322, %v1355
      %v1362 = vadd.f32 %v1323, %v1355
      %v1363 = vadd.f32 %v1324, %v1355
      %v1364 = vadd.f32 %v1325, %v1355
      %v1365 = vadd.f32 %v1326, %v1355
      %v1366 = vadd.f32 %v1327, %v1355
      %v1367 = vadd.f32 %v1328, %v1355
      %v1368 = vadd.f32 %v1329, %v1355
      %v1369 = vadd.f32 %v1330, %v1355
      %v1370 = vadd.f32 %v1331, %v1355
      %v1371 = vadd.f32 %v1332, %v1355
      %v1372 = vadd.f32 %v1333, %v1355
      %v1373 = vadd.f32 %v1334, %v1355
      %v1374 = vadd.f32 %v1335, %v1355
      %v1375 = vadd.f32 %v1336, %v1355
      %v1376 = vadd.f32 %v1337, %v1355
      %v1377 = vadd.f32 %v1338, %v1355
      %v1378 = vadd.f32 %v1339, %v1355
      %v1379 = vadd.f32 %v1340, %v1355
      %v1380 = vadd.f32 %v1341, %v1355
      %v1381 = vadd.f32 %v1342, %v1355
      %v1382 = vadd.f32 %v1343, %v1355
      %v1383 = vadd.f32 %v1344, %v1355
      %v1384 = vadd.f32 %v1345, %v1355
      %v1385 = vadd.f32 %v1346, %v1355
      %v1386 = vadd.f32 %v1347, %v1355
      %v1387 = vadd.f32 %v1348, %v1355
      %v1388 = vadd.f32 %v1349, %v1355
      %v1389 = vmul.f32 %v1357, 0.5
      %v1390 = vmul.f32 %v1358, 0.5
      %v1391 = vmul.f32 %v1359, 0.5
      %v1392 = vmul.f32 %v1360, 0.5
      %v1393 = vmul.f32 %v1361, 0.5
      %v1394 = vmul.f32 %v1362, 0.5
      %v1395 = vmul.f32 %v1363, 0.5
      %v1396 = vmul.f32 %v1364, 0.5
      %v1397 = vmul.f32 %v1365, 0.5
      %v1398 = vmul.f32 %v1366, 0.5
      %v1399 = vmul.f32 %v1367, 0.5
      %v1400 = vmul.f32 %v1368, 0.5
      %v1401 = vmul.f32 %v1369, 0.5
      %v1402 = vmul.f32 %v1370, 0.5
      %v1403 = vmul.f32 %v1371, 0.5
      %v1404 = vmul.f32 %v1372, 0.5
      %v1405 = vmul.f32 %v1373, 0.5
      %v1406 = vmul.f32 %v1374, 0.5
      %v1407 = vmul.f32 %v1375, 0.5
      %v1408 = vmul.f32 %v1376, 0.5
      %v1409 = vmul.f32 %v1377, 0.5
      %v1410 = vmul.f32 %v1378, 0.5
      %v1411 = vmul.f32 %v1379, 0.5
      %v1412 = vmul.f32 %v1380, 0.5
      %v1413 = vmul.f32 %v1381, 0.5
      %v1414 = vmul.f32 %v1382, 0.5
      %v1415 = vmul.f32 %v1383, 0.5
      %v1416 = vmul.f32 %v1384, 0.5
      %v1417 = vmul.f32 %v1385, 0.5
      %v1418 = vmul.f32 %v1386, 0.5
      %v1419 = vmul.f32 %v1387, 0.5
      %v1420 = vmul.f32 %v1388, 0.5
      %v1421 = vrcp.pop 1.4142135
      %v1422 = vmul.f32 %v1357, %v1421
      %v1423 = vmul.f32 %v1358, %v1421
      %v1424 = vmul.f32 %v1359, %v1421
      %v1425 = vmul.f32 %v1360, %v1421
      %v1426 = vmul.f32 %v1361, %v1421
      %v1427 = vmul.f32 %v1362, %v1421
      %v1428 = vmul.f32 %v1363, %v1421
      %v1429 = vmul.f32 %v1364, %v1421
      %v1430 = vmul.f32 %v1365, %v1421
      %v1431 = vmul.f32 %v1366, %v1421
      %v1432 = vmul.f32 %v1367, %v1421
      %v1433 = vmul.f32 %v1368, %v1421
      %v1434 = vmul.f32 %v1369, %v1421
      %v1435 = vmul.f32 %v1370, %v1421
      %v1436 = vmul.f32 %v1371, %v1421
      %v1437 = vmul.f32 %v1372, %v1421
      %v1438 = vmul.f32 %v1373, %v1421
      %v1439 = vmul.f32 %v1374, %v1421
      %v1440 = vmul.f32 %v1375, %v1421
      %v1441 = vmul.f32 %v1376, %v1421
      %v1442 = vmul.f32 %v1377, %v1421
      %v1443 = vmul.f32 %v1378, %v1421
      %v1444 = vmul.f32 %v1379, %v1421
      %v1445 = vmul.f32 %v1380, %v1421
      %v1446 = vmul.f32 %v1381, %v1421
      %v1447 = vmul.f32 %v1382, %v1421
      %v1448 = vmul.f32 %v1383, %v1421
      %v1449 = vmul.f32 %v1384, %v1421
      %v1450 = vmul.f32 %v1385, %v1421
      %v1451 = vmul.f32 %v1386, %v1421
      %v1452 = vmul.f32 %v1387, %v1421
      %v1453 = vmul.f32 %v1388, %v1421
      %v1454 = vand.u32 2147483647, %v1422
      %v1455 = vand.u32 2147483647, %v1423
      %v1456 = vand.u32 2147483647, %v1424
      %v1457 = vand.u32 2147483647, %v1425
      %v1458 = vand.u32 2147483647, %v1426
      %v1459 = vand.u32 2147483647, %v1427
      %v1460 = vand.u32 2147483647, %v1428
      %v1461 = vand.u32 2147483647, %v1429
      %v1462 = vand.u32 2147483647, %v1430
      %v1463 = vand.u32 2147483647, %v1431
      %v1464 = vand.u32 2147483647, %v1432
      %v1465 = vand.u32 2147483647, %v1433
      %v1466 = vand.u32 2147483647, %v1434
      %v1467 = vand.u32 2147483647, %v1435
      %v1468 = vand.u32 2147483647, %v1436
      %v1469 = vand.u32 2147483647, %v1437
      %v1470 = vand.u32 2147483647, %v1438
      %v1471 = vand.u32 2147483647, %v1439
      %v1472 = vand.u32 2147483647, %v1440
      %v1473 = vand.u32 2147483647, %v1441
      %v1474 = vand.u32 2147483647, %v1442
      %v1475 = vand.u32 2147483647, %v1443
      %v1476 = vand.u32 2147483647, %v1444
      %v1477 = vand.u32 2147483647, %v1445
      %v1478 = vand.u32 2147483647, %v1446
      %v1479 = vand.u32 2147483647, %v1447
      %v1480 = vand.u32 2147483647, %v1448
      %v1481 = vand.u32 2147483647, %v1449
      %v1482 = vand.u32 2147483647, %v1450
      %v1483 = vand.u32 2147483647, %v1451
      %v1484 = vand.u32 2147483647, %v1452
      %v1485 = vand.u32 2147483647, %v1453
      %v1486 = vmul.f32 %v1454, 0.3275911
      %v1487 = vmul.f32 %v1455, 0.3275911
      %v1488 = vmul.f32 %v1456, 0.3275911
      %v1489 = vmul.f32 %v1457, 0.3275911
      %v1490 = vmul.f32 %v1458, 0.3275911
      %v1491 = vmul.f32 %v1459, 0.3275911
      %v1492 = vmul.f32 %v1460, 0.3275911
      %v1493 = vmul.f32 %v1461, 0.3275911
      %v1494 = vmul.f32 %v1462, 0.3275911
      %v1495 = vmul.f32 %v1463, 0.3275911
      %v1496 = vmul.f32 %v1464, 0.3275911
      %v1497 = vmul.f32 %v1465, 0.3275911
      %v1498 = vmul.f32 %v1466, 0.3275911
      %v1499 = vmul.f32 %v1467, 0.3275911
      %v1500 = vmul.f32 %v1468, 0.3275911
      %v1501 = vmul.f32 %v1469, 0.3275911
      %v1502 = vmul.f32 %v1470, 0.3275911
      %v1503 = vmul.f32 %v1471, 0.3275911
      %v1504 = vmul.f32 %v1472, 0.3275911
      %v1505 = vmul.f32 %v1473, 0.3275911
      %v1506 = vmul.f32 %v1474, 0.3275911
      %v1507 = vmul.f32 %v1475, 0.3275911
      %v1508 = vmul.f32 %v1476, 0.3275911
      %v1509 = vmul.f32 %v1477, 0.3275911
      %v1510 = vmul.f32 %v1478, 0.3275911
      %v1511 = vmul.f32 %v1479, 0.3275911
      %v1512 = vmul.f32 %v1480, 0.3275911
      %v1513 = vmul.f32 %v1481, 0.3275911
      %v1514 = vmul.f32 %v1482, 0.3275911
      %v1515 = vmul.f32 %v1483, 0.3275911
      %v1516 = vmul.f32 %v1484, 0.3275911
      %v1517 = vmul.f32 %v1485, 0.3275911
      %v1518 = vadd.f32 %v1486, 1.0
      %v1519 = vadd.f32 %v1487, 1.0
      %v1520 = vadd.f32 %v1488, 1.0
      %v1521 = vadd.f32 %v1489, 1.0
      %v1522 = vadd.f32 %v1490, 1.0
      %v1523 = vadd.f32 %v1491, 1.0
      %v1524 = vadd.f32 %v1492, 1.0
      %v1525 = vadd.f32 %v1493, 1.0
      %v1526 = vadd.f32 %v1494, 1.0
      %v1527 = vadd.f32 %v1495, 1.0
      %v1528 = vadd.f32 %v1496, 1.0
      %v1529 = vadd.f32 %v1497, 1.0
      %v1530 = vadd.f32 %v1498, 1.0
      %v1531 = vadd.f32 %v1499, 1.0
      %v1532 = vadd.f32 %v1500, 1.0
      %v1533 = vadd.f32 %v1501, 1.0
      %v1534 = vadd.f32 %v1502, 1.0
      %v1535 = vadd.f32 %v1503, 1.0
      %v1536 = vadd.f32 %v1504, 1.0
      %v1537 = vadd.f32 %v1505, 1.0
      %v1538 = vadd.f32 %v1506, 1.0
      %v1539 = vadd.f32 %v1507, 1.0
      %v1540 = vadd.f32 %v1508, 1.0
      %v1541 = vadd.f32 %v1509, 1.0
      %v1542 = vadd.f32 %v1510, 1.0
      %v1543 = vadd.f32 %v1511, 1.0
      %v1544 = vadd.f32 %v1512, 1.0
      %v1545 = vadd.f32 %v1513, 1.0
      %v1546 = vadd.f32 %v1514, 1.0
      %v1547 = vadd.f32 %v1515, 1.0
      %v1548 = vadd.f32 %v1516, 1.0
      %v1549 = vadd.f32 %v1517, 1.0
      %v1550 = vrcp.pop %v1518
      %v1551 = vmul.f32 1.0, %v1550
      %v1552 = vrcp.pop %v1519
      %v1553 = vmul.f32 1.0, %v1552
      %v1554 = vrcp.pop %v1520
      %v1555 = vmul.f32 1.0, %v1554
      %v1556 = vrcp.pop %v1521
      %v1557 = vmul.f32 1.0, %v1556
      %v1558 = vrcp.pop %v1522
      %v1559 = vmul.f32 1.0, %v1558
      %v1560 = vrcp.pop %v1523
      %v1561 = vmul.f32 1.0, %v1560
      %v1562 = vrcp.pop %v1524
      %v1563 = vmul.f32 1.0, %v1562
      %v1564 = vrcp.pop %v1525
      %v1565 = vmul.f32 1.0, %v1564
      %v1566 = vrcp.pop %v1526
      %v1567 = vmul.f32 1.0, %v1566
      %v1568 = vrcp.pop %v1527
      %v1569 = vmul.f32 1.0, %v1568
      %v1570 = vrcp.pop %v1528
      %v1571 = vmul.f32 1.0, %v1570
      %v1572 = vrcp.pop %v1529
      %v1573 = vmul.f32 1.0, %v1572
      %v1574 = vrcp.pop %v1530
      %v1575 = vmul.f32 1.0, %v1574
      %v1576 = vrcp.pop %v1531
      %v1577 = vmul.f32 1.0, %v1576
      %v1578 = vrcp.pop %v1532
      %v1579 = vmul.f32 1.0, %v1578
      %v1580 = vrcp.pop %v1533
      %v1581 = vmul.f32 1.0, %v1580
      %v1582 = vrcp.pop %v1534
      %v1583 = vmul.f32 1.0, %v1582
      %v1584 = vrcp.pop %v1535
      %v1585 = vmul.f32 1.0, %v1584
      %v1586 = vrcp.pop %v1536
      %v1587 = vmul.f32 1.0, %v1586
      %v1588 = vrcp.pop %v1537
      %v1589 = vmul.f32 1.0, %v1588
      %v1590 = vrcp.pop %v1538
      %v1591 = vmul.f32 1.0, %v1590
      %v1592 = vrcp.pop %v1539
      %v1593 = vmul.f32 1.0, %v1592
      %v1594 = vrcp.pop %v1540
      %v1595 = vmul.f32 1.0, %v1594
      %v1596 = vrcp.pop %v1541
      %v1597 = vmul.f32 1.0, %v1596
      %v1598 = vrcp.pop %v1542
      %v1599 = vmul.f32 1.0, %v1598
      %v1600 = vrcp.pop %v1543
      %v1601 = vmul.f32 1.0, %v1600
      %v1602 = vrcp.pop %v1544
      %v1603 = vmul.f32 1.0, %v1602
      %v1604 = vrcp.pop %v1545
      %v1605 = vmul.f32 1.0, %v1604
      %v1606 = vrcp.pop %v1546
      %v1607 = vmul.f32 1.0, %v1606
      %v1608 = vrcp.pop %v1547
      %v1609 = vmul.f32 1.0, %v1608
      %v1610 = vrcp.pop %v1548
      %v1611 = vmul.f32 1.0, %v1610
      %v1612 = vrcp.pop %v1549
      %v1613 = vmul.f32 1.0, %v1612
      %v1614 = vmul.f32 %v1551, 1.0614054
      %v1615 = vmul.f32 %v1553, 1.0614054
      %v1616 = vmul.f32 %v1555, 1.0614054
      %v1617 = vmul.f32 %v1557, 1.0614054
      %v1618 = vmul.f32 %v1559, 1.0614054
      %v1619 = vmul.f32 %v1561, 1.0614054
      %v1620 = vmul.f32 %v1563, 1.0614054
      %v1621 = vmul.f32 %v1565, 1.0614054
      %v1622 = vmul.f32 %v1567, 1.0614054
      %v1623 = vmul.f32 %v1569, 1.0614054
      %v1624 = vmul.f32 %v1571, 1.0614054
      %v1625 = vmul.f32 %v1573, 1.0614054
      %v1626 = vmul.f32 %v1575, 1.0614054
      %v1627 = vmul.f32 %v1577, 1.0614054
      %v1628 = vmul.f32 %v1579, 1.0614054
      %v1629 = vmul.f32 %v1581, 1.0614054
      %v1630 = vmul.f32 %v1583, 1.0614054
      %v1631 = vmul.f32 %v1585, 1.0614054
      %v1632 = vmul.f32 %v1587, 1.0614054
      %v1633 = vmul.f32 %v1589, 1.0614054
      %v1634 = vmul.f32 %v1591, 1.0614054
      %v1635 = vmul.f32 %v1593, 1.0614054
      %v1636 = vmul.f32 %v1595, 1.0614054
      %v1637 = vmul.f32 %v1597, 1.0614054
      %v1638 = vmul.f32 %v1599, 1.0614054
      %v1639 = vmul.f32 %v1601, 1.0614054
      %v1640 = vmul.f32 %v1603, 1.0614054
      %v1641 = vmul.f32 %v1605, 1.0614054
      %v1642 = vmul.f32 %v1607, 1.0614054
      %v1643 = vmul.f32 %v1609, 1.0614054
      %v1644 = vmul.f32 %v1611, 1.0614054
      %v1645 = vmul.f32 %v1613, 1.0614054
      %v1646 = vadd.f32 %v1614, -1.4531521
      %v1647 = vadd.f32 %v1615, -1.4531521
      %v1648 = vadd.f32 %v1616, -1.4531521
      %v1649 = vadd.f32 %v1617, -1.4531521
      %v1650 = vadd.f32 %v1618, -1.4531521
      %v1651 = vadd.f32 %v1619, -1.4531521
      %v1652 = vadd.f32 %v1620, -1.4531521
      %v1653 = vadd.f32 %v1621, -1.4531521
      %v1654 = vadd.f32 %v1622, -1.4531521
      %v1655 = vadd.f32 %v1623, -1.4531521
      %v1656 = vadd.f32 %v1624, -1.4531521
      %v1657 = vadd.f32 %v1625, -1.4531521
      %v1658 = vadd.f32 %v1626, -1.4531521
      %v1659 = vadd.f32 %v1627, -1.4531521
      %v1660 = vadd.f32 %v1628, -1.4531521
      %v1661 = vadd.f32 %v1629, -1.4531521
      %v1662 = vadd.f32 %v1630, -1.4531521
      %v1663 = vadd.f32 %v1631, -1.4531521
      %v1664 = vadd.f32 %v1632, -1.4531521
      %v1665 = vadd.f32 %v1633, -1.4531521
      %v1666 = vadd.f32 %v1634, -1.4531521
      %v1667 = vadd.f32 %v1635, -1.4531521
      %v1668 = vadd.f32 %v1636, -1.4531521
      %v1669 = vadd.f32 %v1637, -1.4531521
      %v1670 = vadd.f32 %v1638, -1.4531521
      %v1671 = vadd.f32 %v1639, -1.4531521
      %v1672 = vadd.f32 %v1640, -1.4531521
      %v1673 = vadd.f32 %v1641, -1.4531521
      %v1674 = vadd.f32 %v1642, -1.4531521
      %v1675 = vadd.f32 %v1643, -1.4531521
      %v1676 = vadd.f32 %v1644, -1.4531521
      %v1677 = vadd.f32 %v1645, -1.4531521
      %v1678 = vmul.f32 %v1646, %v1551
      %v1679 = vmul.f32 %v1647, %v1553
      %v1680 = vmul.f32 %v1648, %v1555
      %v1681 = vmul.f32 %v1649, %v1557
      %v1682 = vmul.f32 %v1650, %v1559
      %v1683 = vmul.f32 %v1651, %v1561
      %v1684 = vmul.f32 %v1652, %v1563
      %v1685 = vmul.f32 %v1653, %v1565
      %v1686 = vmul.f32 %v1654, %v1567
      %v1687 = vmul.f32 %v1655, %v1569
      %v1688 = vmul.f32 %v1656, %v1571
      %v1689 = vmul.f32 %v1657, %v1573
      %v1690 = vmul.f32 %v1658, %v1575
      %v1691 = vmul.f32 %v1659, %v1577
      %v1692 = vmul.f32 %v1660, %v1579
      %v1693 = vmul.f32 %v1661, %v1581
      %v1694 = vmul.f32 %v1662, %v1583
      %v1695 = vmul.f32 %v1663, %v1585
      %v1696 = vmul.f32 %v1664, %v1587
      %v1697 = vmul.f32 %v1665, %v1589
      %v1698 = vmul.f32 %v1666, %v1591
      %v1699 = vmul.f32 %v1667, %v1593
      %v1700 = vmul.f32 %v1668, %v1595
      %v1701 = vmul.f32 %v1669, %v1597
      %v1702 = vmul.f32 %v1670, %v1599
      %v1703 = vmul.f32 %v1671, %v1601
      %v1704 = vmul.f32 %v1672, %v1603
      %v1705 = vmul.f32 %v1673, %v1605
      %v1706 = vmul.f32 %v1674, %v1607
      %v1707 = vmul.f32 %v1675, %v1609
      %v1708 = vmul.f32 %v1676, %v1611
      %v1709 = vmul.f32 %v1677, %v1613
      %v1710 = vadd.f32 %v1678, 1.4214138
      %v1711 = vadd.f32 %v1679, 1.4214138
      %v1712 = vadd.f32 %v1680, 1.4214138
      %v1713 = vadd.f32 %v1681, 1.4214138
      %v1714 = vadd.f32 %v1682, 1.4214138
      %v1715 = vadd.f32 %v1683, 1.4214138
      %v1716 = vadd.f32 %v1684, 1.4214138
      %v1717 = vadd.f32 %v1685, 1.4214138
      %v1718 = vadd.f32 %v1686, 1.4214138
      %v1719 = vadd.f32 %v1687, 1.4214138
      %v1720 = vadd.f32 %v1688, 1.4214138
      %v1721 = vadd.f32 %v1689, 1.4214138
      %v1722 = vadd.f32 %v1690, 1.4214138
      %v1723 = vadd.f32 %v1691, 1.4214138
      %v1724 = vadd.f32 %v1692, 1.4214138
      %v1725 = vadd.f32 %v1693, 1.4214138
      %v1726 = vadd.f32 %v1694, 1.4214138
      %v1727 = vadd.f32 %v1695, 1.4214138
      %v1728 = vadd.f32 %v1696, 1.4214138
      %v1729 = vadd.f32 %v1697, 1.4214138
      %v1730 = vadd.f32 %v1698, 1.4214138
      %v1731 = vadd.f32 %v1699, 1.4214138
      %v1732 = vadd.f32 %v1700, 1.4214138
      %v1733 = vadd.f32 %v1701, 1.4214138
      %v1734 = vadd.f32 %v1702, 1.4214138
      %v1735 = vadd.f32 %v1703, 1.4214138
      %v1736 = vadd.f32 %v1704, 1.4214138
      %v1737 = vadd.f32 %v1705, 1.4214138
      %v1738 = vadd.f32 %v1706, 1.4214138
      %v1739 = vadd.f32 %v1707, 1.4214138
      %v1740 = vadd.f32 %v1708, 1.4214138
      %v1741 = vadd.f32 %v1709, 1.4214138
      %v1742 = vmul.f32 %v1710, %v1551
      %v1743 = vmul.f32 %v1711, %v1553
      %v1744 = vmul.f32 %v1712, %v1555
      %v1745 = vmul.f32 %v1713, %v1557
      %v1746 = vmul.f32 %v1714, %v1559
      %v1747 = vmul.f32 %v1715, %v1561
      %v1748 = vmul.f32 %v1716, %v1563
      %v1749 = vmul.f32 %v1717, %v1565
      %v1750 = vmul.f32 %v1718, %v1567
      %v1751 = vmul.f32 %v1719, %v1569
      %v1752 = vmul.f32 %v1720, %v1571
      %v1753 = vmul.f32 %v1721, %v1573
      %v1754 = vmul.f32 %v1722, %v1575
      %v1755 = vmul.f32 %v1723, %v1577
      %v1756 = vmul.f32 %v1724, %v1579
      %v1757 = vmul.f32 %v1725, %v1581
      %v1758 = vmul.f32 %v1726, %v1583
      %v1759 = vmul.f32 %v1727, %v1585
      %v1760 = vmul.f32 %v1728, %v1587
      %v1761 = vmul.f32 %v1729, %v1589
      %v1762 = vmul.f32 %v1730, %v1591
      %v1763 = vmul.f32 %v1731, %v1593
      %v1764 = vmul.f32 %v1732, %v1595
      %v1765 = vmul.f32 %v1733, %v1597
      %v1766 = vmul.f32 %v1734, %v1599
      %v1767 = vmul.f32 %v1735, %v1601
      %v1768 = vmul.f32 %v1736, %v1603
      %v1769 = vmul.f32 %v1737, %v1605
      %v1770 = vmul.f32 %v1738, %v1607
      %v1771 = vmul.f32 %v1739, %v1609
      %v1772 = vmul.f32 %v1740, %v1611
      %v1773 = vmul.f32 %v1741, %v1613
      %v1774 = vadd.f32 %v1742, -0.28449672
      %v1775 = vadd.f32 %v1743, -0.28449672
      %v1776 = vadd.f32 %v1744, -0.28449672
      %v1777 = vadd.f32 %v1745, -0.28449672
      %v1778 = vadd.f32 %v1746, -0.28449672
      %v1779 = vadd.f32 %v1747, -0.28449672
      %v1780 = vadd.f32 %v1748, -0.28449672
      %v1781 = vadd.f32 %v1749, -0.28449672
      %v1782 = vadd.f32 %v1750, -0.28449672
      %v1783 = vadd.f32 %v1751, -0.28449672
      %v1784 = vadd.f32 %v1752, -0.28449672
      %v1785 = vadd.f32 %v1753, -0.28449672
      %v1786 = vadd.f32 %v1754, -0.28449672
      %v1787 = vadd.f32 %v1755, -0.28449672
      %v1788 = vadd.f32 %v1756, -0.28449672
      %v1789 = vadd.f32 %v1757, -0.28449672
      %v1790 = vadd.f32 %v1758, -0.28449672
      %v1791 = vadd.f32 %v1759, -0.28449672
      %v1792 = vadd.f32 %v1760, -0.28449672
      %v1793 = vadd.f32 %v1761, -0.28449672
      %v1794 = vadd.f32 %v1762, -0.28449672
      %v1795 = vadd.f32 %v1763, -0.28449672
      %v1796 = vadd.f32 %v1764, -0.28449672
      %v1797 = vadd.f32 %v1765, -0.28449672
      %v1798 = vadd.f32 %v1766, -0.28449672
      %v1799 = vadd.f32 %v1767, -0.28449672
      %v1800 = vadd.f32 %v1768, -0.28449672
      %v1801 = vadd.f32 %v1769, -0.28449672
      %v1802 = vadd.f32 %v1770, -0.28449672
      %v1803 = vadd.f32 %v1771, -0.28449672
      %v1804 = vadd.f32 %v1772, -0.28449672
      %v1805 = vadd.f32 %v1773, -0.28449672
      %v1806 = vmul.f32 %v1774, %v1551
      %v1807 = vmul.f32 %v1775, %v1553
      %v1808 = vmul.f32 %v1776, %v1555
      %v1809 = vmul.f32 %v1777, %v1557
      %v1810 = vmul.f32 %v1778, %v1559
      %v1811 = vmul.f32 %v1779, %v1561
      %v1812 = vmul.f32 %v1780, %v1563
      %v1813 = vmul.f32 %v1781, %v1565
      %v1814 = vmul.f32 %v1782, %v1567
      %v1815 = vmul.f32 %v1783, %v1569
      %v1816 = vmul.f32 %v1784, %v1571
      %v1817 = vmul.f32 %v1785, %v1573
      %v1818 = vmul.f32 %v1786, %v1575
      %v1819 = vmul.f32 %v1787, %v1577
      %v1820 = vmul.f32 %v1788, %v1579
      %v1821 = vmul.f32 %v1789, %v1581
      %v1822 = vmul.f32 %v1790, %v1583
      %v1823 = vmul.f32 %v1791, %v1585
      %v1824 = vmul.f32 %v1792, %v1587
      %v1825 = vmul.f32 %v1793, %v1589
      %v1826 = vmul.f32 %v1794, %v1591
      %v1827 = vmul.f32 %v1795, %v1593
      %v1828 = vmul.f32 %v1796, %v1595
      %v1829 = vmul.f32 %v1797, %v1597
      %v1830 = vmul.f32 %v1798, %v1599
      %v1831 = vmul.f32 %v1799, %v1601
      %v1832 = vmul.f32 %v1800, %v1603
      %v1833 = vmul.f32 %v1801, %v1605
      %v1834 = vmul.f32 %v1802, %v1607
      %v1835 = vmul.f32 %v1803, %v1609
      %v1836 = vmul.f32 %v1804, %v1611
      %v1837 = vmul.f32 %v1805, %v1613
      %v1838 = vadd.f32 %v1806, 0.2548296
      %v1839 = vadd.f32 %v1807, 0.2548296
      %v1840 = vadd.f32 %v1808, 0.2548296
      %v1841 = vadd.f32 %v1809, 0.2548296
      %v1842 = vadd.f32 %v1810, 0.2548296
      %v1843 = vadd.f32 %v1811, 0.2548296
      %v1844 = vadd.f32 %v1812, 0.2548296
      %v1845 = vadd.f32 %v1813, 0.2548296
      %v1846 = vadd.f32 %v1814, 0.2548296
      %v1847 = vadd.f32 %v1815, 0.2548296
      %v1848 = vadd.f32 %v1816, 0.2548296
      %v1849 = vadd.f32 %v1817, 0.2548296
      %v1850 = vadd.f32 %v1818, 0.2548296
      %v1851 = vadd.f32 %v1819, 0.2548296
      %v1852 = vadd.f32 %v1820, 0.2548296
      %v1853 = vadd.f32 %v1821, 0.2548296
      %v1854 = vadd.f32 %v1822, 0.2548296
      %v1855 = vadd.f32 %v1823, 0.2548296
      %v1856 = vadd.f32 %v1824, 0.2548296
      %v1857 = vadd.f32 %v1825, 0.2548296
      %v1858 = vadd.f32 %v1826, 0.2548296
      %v1859 = vadd.f32 %v1827, 0.2548296
      %v1860 = vadd.f32 %v1828, 0.2548296
      %v1861 = vadd.f32 %v1829, 0.2548296
      %v1862 = vadd.f32 %v1830, 0.2548296
      %v1863 = vadd.f32 %v1831, 0.2548296
      %v1864 = vadd.f32 %v1832, 0.2548296
      %v1865 = vadd.f32 %v1833, 0.2548296
      %v1866 = vadd.f32 %v1834, 0.2548296
      %v1867 = vadd.f32 %v1835, 0.2548296
      %v1868 = vadd.f32 %v1836, 0.2548296
      %v1869 = vadd.f32 %v1837, 0.2548296
      %v1870 = vmul.f32 %v1838, %v1551
      %v1871 = vmul.f32 %v1839, %v1553
      %v1872 = vmul.f32 %v1840, %v1555
      %v1873 = vmul.f32 %v1841, %v1557
      %v1874 = vmul.f32 %v1842, %v1559
      %v1875 = vmul.f32 %v1843, %v1561
      %v1876 = vmul.f32 %v1844, %v1563
      %v1877 = vmul.f32 %v1845, %v1565
      %v1878 = vmul.f32 %v1846, %v1567
      %v1879 = vmul.f32 %v1847, %v1569
      %v1880 = vmul.f32 %v1848, %v1571
      %v1881 = vmul.f32 %v1849, %v1573
      %v1882 = vmul.f32 %v1850, %v1575
      %v1883 = vmul.f32 %v1851, %v1577
      %v1884 = vmul.f32 %v1852, %v1579
      %v1885 = vmul.f32 %v1853, %v1581
      %v1886 = vmul.f32 %v1854, %v1583
      %v1887 = vmul.f32 %v1855, %v1585
      %v1888 = vmul.f32 %v1856, %v1587
      %v1889 = vmul.f32 %v1857, %v1589
      %v1890 = vmul.f32 %v1858, %v1591
      %v1891 = vmul.f32 %v1859, %v1593
      %v1892 = vmul.f32 %v1860, %v1595
      %v1893 = vmul.f32 %v1861, %v1597
      %v1894 = vmul.f32 %v1862, %v1599
      %v1895 = vmul.f32 %v1863, %v1601
      %v1896 = vmul.f32 %v1864, %v1603
      %v1897 = vmul.f32 %v1865, %v1605
      %v1898 = vmul.f32 %v1866, %v1607
      %v1899 = vmul.f32 %v1867, %v1609
      %v1900 = vmul.f32 %v1868, %v1611
      %v1901 = vmul.f32 %v1869, %v1613
      %v1902 = vsub.f32 0.0, %v1454
      %v1903 = vsub.f32 0.0, %v1455
      %v1904 = vsub.f32 0.0, %v1456
      %v1905 = vsub.f32 0.0, %v1457
      %v1906 = vsub.f32 0.0, %v1458
      %v1907 = vsub.f32 0.0, %v1459
      %v1908 = vsub.f32 0.0, %v1460
      %v1909 = vsub.f32 0.0, %v1461
      %v1910 = vsub.f32 0.0, %v1462
      %v1911 = vsub.f32 0.0, %v1463
      %v1912 = vsub.f32 0.0, %v1464
      %v1913 = vsub.f32 0.0, %v1465
      %v1914 = vsub.f32 0.0, %v1466
      %v1915 = vsub.f32 0.0, %v1467
      %v1916 = vsub.f32 0.0, %v1468
      %v1917 = vsub.f32 0.0, %v1469
      %v1918 = vsub.f32 0.0, %v1470
      %v1919 = vsub.f32 0.0, %v1471
      %v1920 = vsub.f32 0.0, %v1472
      %v1921 = vsub.f32 0.0, %v1473
      %v1922 = vsub.f32 0.0, %v1474
      %v1923 = vsub.f32 0.0, %v1475
      %v1924 = vsub.f32 0.0, %v1476
      %v1925 = vsub.f32 0.0, %v1477
      %v1926 = vsub.f32 0.0, %v1478
      %v1927 = vsub.f32 0.0, %v1479
      %v1928 = vsub.f32 0.0, %v1480
      %v1929 = vsub.f32 0.0, %v1481
      %v1930 = vsub.f32 0.0, %v1482
      %v1931 = vsub.f32 0.0, %v1483
      %v1932 = vsub.f32 0.0, %v1484
      %v1933 = vsub.f32 0.0, %v1485
      %v1934 = vmul.f32 %v1902, %v1454
      %v1935 = vmul.f32 %v1903, %v1455
      %v1936 = vmul.f32 %v1904, %v1456
      %v1937 = vmul.f32 %v1905, %v1457
      %v1938 = vmul.f32 %v1906, %v1458
      %v1939 = vmul.f32 %v1907, %v1459
      %v1940 = vmul.f32 %v1908, %v1460
      %v1941 = vmul.f32 %v1909, %v1461
      %v1942 = vmul.f32 %v1910, %v1462
      %v1943 = vmul.f32 %v1911, %v1463
      %v1944 = vmul.f32 %v1912, %v1464
      %v1945 = vmul.f32 %v1913, %v1465
      %v1946 = vmul.f32 %v1914, %v1466
      %v1947 = vmul.f32 %v1915, %v1467
      %v1948 = vmul.f32 %v1916, %v1468
      %v1949 = vmul.f32 %v1917, %v1469
      %v1950 = vmul.f32 %v1918, %v1470
      %v1951 = vmul.f32 %v1919, %v1471
      %v1952 = vmul.f32 %v1920, %v1472
      %v1953 = vmul.f32 %v1921, %v1473
      %v1954 = vmul.f32 %v1922, %v1474
      %v1955 = vmul.f32 %v1923, %v1475
      %v1956 = vmul.f32 %v1924, %v1476
      %v1957 = vmul.f32 %v1925, %v1477
      %v1958 = vmul.f32 %v1926, %v1478
      %v1959 = vmul.f32 %v1927, %v1479
      %v1960 = vmul.f32 %v1928, %v1480
      %v1961 = vmul.f32 %v1929, %v1481
      %v1962 = vmul.f32 %v1930, %v1482
      %v1963 = vmul.f32 %v1931, %v1483
      %v1964 = vmul.f32 %v1932, %v1484
      %v1965 = vmul.f32 %v1933, %v1485
      %v1966 = vmul.f32 %v1934, 1.442695
      %v1967 = vpow.pop %v1966
      %v1968 = vmul.f32 %v1935, 1.442695
      %v1969 = vpow.pop %v1968
      %v1970 = vmul.f32 %v1936, 1.442695
      %v1971 = vpow.pop %v1970
      %v1972 = vmul.f32 %v1937, 1.442695
      %v1973 = vpow.pop %v1972
      %v1974 = vmul.f32 %v1938, 1.442695
      %v1975 = vpow.pop %v1974
      %v1976 = vmul.f32 %v1939, 1.442695
      %v1977 = vpow.pop %v1976
      %v1978 = vmul.f32 %v1940, 1.442695
      %v1979 = vpow.pop %v1978
      %v1980 = vmul.f32 %v1941, 1.442695
      %v1981 = vpow.pop %v1980
      %v1982 = vmul.f32 %v1942, 1.442695
      %v1983 = vpow.pop %v1982
      %v1984 = vmul.f32 %v1943, 1.442695
      %v1985 = vpow.pop %v1984
      %v1986 = vmul.f32 %v1944, 1.442695
      %v1987 = vpow.pop %v1986
      %v1988 = vmul.f32 %v1945, 1.442695
      %v1989 = vpow.pop %v1988
      %v1990 = vmul.f32 %v1946, 1.442695
      %v1991 = vpow.pop %v1990
      %v1992 = vmul.f32 %v1947, 1.442695
      %v1993 = vpow.pop %v1992
      %v1994 = vmul.f32 %v1948, 1.442695
      %v1995 = vpow.pop %v1994
      %v1996 = vmul.f32 %v1949, 1.442695
      %v1997 = vpow.pop %v1996
      %v1998 = vmul.f32 %v1950, 1.442695
      %v1999 = vpow.pop %v1998
      %v2000 = vmul.f32 %v1951, 1.442695
      %v2001 = vpow.pop %v2000
      %v2002 = vmul.f32 %v1952, 1.442695
      %v2003 = vpow.pop %v2002
      %v2004 = vmul.f32 %v1953, 1.442695
      %v2005 = vpow.pop %v2004
      %v2006 = vmul.f32 %v1954, 1.442695
      %v2007 = vpow.pop %v2006
      %v2008 = vmul.f32 %v1955, 1.442695
      %v2009 = vpow.pop %v2008
      %v2010 = vmul.f32 %v1956, 1.442695
      %v2011 = vpow.pop %v2010
      %v2012 = vmul.f32 %v1957, 1.442695
      %v2013 = vpow.pop %v2012
      %v2014 = vmul.f32 %v1958, 1.442695
      %v2015 = vpow.pop %v2014
      %v2016 = vmul.f32 %v1959, 1.442695
      %v2017 = vpow.pop %v2016
      %v2018 = vmul.f32 %v1960, 1.442695
      %v2019 = vpow.pop %v2018
      %v2020 = vmul.f32 %v1961, 1.442695
      %v2021 = vpow.pop %v2020
      %v2022 = vmul.f32 %v1962, 1.442695
      %v2023 = vpow.pop %v2022
      %v2024 = vmul.f32 %v1963, 1.442695
      %v2025 = vpow.pop %v2024
      %v2026 = vmul.f32 %v1964, 1.442695
      %v2027 = vpow.pop %v2026
      %v2028 = vmul.f32 %v1965, 1.442695
      %v2029 = vpow.pop %v2028
      %v2030 = vmul.f32 %v1870, %v1967
      %v2031 = vmul.f32 %v1871, %v1969
      %v2032 = vmul.f32 %v1872, %v1971
      %v2033 = vmul.f32 %v1873, %v1973
      %v2034 = vmul.f32 %v1874, %v1975
      %v2035 = vmul.f32 %v1875, %v1977
      %v2036 = vmul.f32 %v1876, %v1979
      %v2037 = vmul.f32 %v1877, %v1981
      %v2038 = vmul.f32 %v1878, %v1983
      %v2039 = vmul.f32 %v1879, %v1985
      %v2040 = vmul.f32 %v1880, %v1987
      %v2041 = vmul.f32 %v1881, %v1989
      %v2042 = vmul.f32 %v1882, %v1991
      %v2043 = vmul.f32 %v1883, %v1993
      %v2044 = vmul.f32 %v1884, %v1995
      %v2045 = vmul.f32 %v1885, %v1997
      %v2046 = vmul.f32 %v1886, %v1999
      %v2047 = vmul.f32 %v1887, %v2001
      %v2048 = vmul.f32 %v1888, %v2003
      %v2049 = vmul.f32 %v1889, %v2005
      %v2050 = vmul.f32 %v1890, %v2007
      %v2051 = vmul.f32 %v1891, %v2009
      %v2052 = vmul.f32 %v1892, %v2011
      %v2053 = vmul.f32 %v1893, %v2013
      %v2054 = vmul.f32 %v1894, %v2015
      %v2055 = vmul.f32 %v1895, %v2017
      %v2056 = vmul.f32 %v1896, %v2019
      %v2057 = vmul.f32 %v1897, %v2021
      %v2058 = vmul.f32 %v1898, %v2023
      %v2059 = vmul.f32 %v1899, %v2025
      %v2060 = vmul.f32 %v1900, %v2027
      %v2061 = vmul.f32 %v1901, %v2029
      %v2062 = vsub.f32 1.0, %v2030
      %v2063 = vsub.f32 1.0, %v2031
      %v2064 = vsub.f32 1.0, %v2032
      %v2065 = vsub.f32 1.0, %v2033
      %v2066 = vsub.f32 1.0, %v2034
      %v2067 = vsub.f32 1.0, %v2035
      %v2068 = vsub.f32 1.0, %v2036
      %v2069 = vsub.f32 1.0, %v2037
      %v2070 = vsub.f32 1.0, %v2038
      %v2071 = vsub.f32 1.0, %v2039
      %v2072 = vsub.f32 1.0, %v2040
      %v2073 = vsub.f32 1.0, %v2041
      %v2074 = vsub.f32 1.0, %v2042
      %v2075 = vsub.f32 1.0, %v2043
      %v2076 = vsub.f32 1.0, %v2044
      %v2077 = vsub.f32 1.0, %v2045
      %v2078 = vsub.f32 1.0, %v2046
      %v2079 = vsub.f32 1.0, %v2047
      %v2080 = vsub.f32 1.0, %v2048
      %v2081 = vsub.f32 1.0, %v2049
      %v2082 = vsub.f32 1.0, %v2050
      %v2083 = vsub.f32 1.0, %v2051
      %v2084 = vsub.f32 1.0, %v2052
      %v2085 = vsub.f32 1.0, %v2053
      %v2086 = vsub.f32 1.0, %v2054
      %v2087 = vsub.f32 1.0, %v2055
      %v2088 = vsub.f32 1.0, %v2056
      %v2089 = vsub.f32 1.0, %v2057
      %v2090 = vsub.f32 1.0, %v2058
      %v2091 = vsub.f32 1.0, %v2059
      %v2092 = vsub.f32 1.0, %v2060
      %v2093 = vsub.f32 1.0, %v2061
      %vm2094 = vcmp.ge.f32.partialorder %v1422, 0.0
      %vm2095 = vcmp.ge.f32.partialorder %v1423, 0.0
      %vm2096 = vcmp.ge.f32.partialorder %v1424, 0.0
      %vm2097 = vcmp.ge.f32.partialorder %v1425, 0.0
      %vm2098 = vcmp.ge.f32.partialorder %v1426, 0.0
      %vm2099 = vcmp.ge.f32.partialorder %v1427, 0.0
      %vm2100 = vcmp.ge.f32.partialorder %v1428, 0.0
      %vm2101 = vcmp.ge.f32.partialorder %v1429, 0.0
      %vm2102 = vcmp.ge.f32.partialorder %v1430, 0.0
      %vm2103 = vcmp.ge.f32.partialorder %v1431, 0.0
      %vm2104 = vcmp.ge.f32.partialorder %v1432, 0.0
      %vm2105 = vcmp.ge.f32.partialorder %v1433, 0.0
      %vm2106 = vcmp.ge.f32.partialorder %v1434, 0.0
      %vm2107 = vcmp.ge.f32.partialorder %v1435, 0.0
      %vm2108 = vcmp.ge.f32.partialorder %v1436, 0.0
      %vm2109 = vcmp.ge.f32.partialorder %v1437, 0.0
      %vm2110 = vcmp.ge.f32.partialorder %v1438, 0.0
      %vm2111 = vcmp.ge.f32.partialorder %v1439, 0.0
      %vm2112 = vcmp.ge.f32.partialorder %v1440, 0.0
      %vm2113 = vcmp.ge.f32.partialorder %v1441, 0.0
      %vm2114 = vcmp.ge.f32.partialorder %v1442, 0.0
      %vm2115 = vcmp.ge.f32.partialorder %v1443, 0.0
      %vm2116 = vcmp.ge.f32.partialorder %v1444, 0.0
      %vm2117 = vcmp.ge.f32.partialorder %v1445, 0.0
      %vm2118 = vcmp.ge.f32.partialorder %v1446, 0.0
      %vm2119 = vcmp.ge.f32.partialorder %v1447, 0.0
      %vm2120 = vcmp.ge.f32.partialorder %v1448, 0.0
      %vm2121 = vcmp.ge.f32.partialorder %v1449, 0.0
      %vm2122 = vcmp.ge.f32.partialorder %v1450, 0.0
      %vm2123 = vcmp.ge.f32.partialorder %v1451, 0.0
      %vm2124 = vcmp.ge.f32.partialorder %v1452, 0.0
      %vm2125 = vcmp.ge.f32.partialorder %v1453, 0.0
      %v2126 = vsub.f32 0.0, %v2062
      %v2127 = vsub.f32 0.0, %v2063
      %v2128 = vsub.f32 0.0, %v2064
      %v2129 = vsub.f32 0.0, %v2065
      %v2130 = vsub.f32 0.0, %v2066
      %v2131 = vsub.f32 0.0, %v2067
      %v2132 = vsub.f32 0.0, %v2068
      %v2133 = vsub.f32 0.0, %v2069
      %v2134 = vsub.f32 0.0, %v2070
      %v2135 = vsub.f32 0.0, %v2071
      %v2136 = vsub.f32 0.0, %v2072
      %v2137 = vsub.f32 0.0, %v2073
      %v2138 = vsub.f32 0.0, %v2074
      %v2139 = vsub.f32 0.0, %v2075
      %v2140 = vsub.f32 0.0, %v2076
      %v2141 = vsub.f32 0.0, %v2077
      %v2142 = vsub.f32 0.0, %v2078
      %v2143 = vsub.f32 0.0, %v2079
      %v2144 = vsub.f32 0.0, %v2080
      %v2145 = vsub.f32 0.0, %v2081
      %v2146 = vsub.f32 0.0, %v2082
      %v2147 = vsub.f32 0.0, %v2083
      %v2148 = vsub.f32 0.0, %v2084
      %v2149 = vsub.f32 0.0, %v2085
      %v2150 = vsub.f32 0.0, %v2086
      %v2151 = vsub.f32 0.0, %v2087
      %v2152 = vsub.f32 0.0, %v2088
      %v2153 = vsub.f32 0.0, %v2089
      %v2154 = vsub.f32 0.0, %v2090
      %v2155 = vsub.f32 0.0, %v2091
      %v2156 = vsub.f32 0.0, %v2092
      %v2157 = vsub.f32 0.0, %v2093
      %v2158 = vsel %vm2094, %v2062, %v2126
      %v2159 = vsel %vm2095, %v2063, %v2127
      %v2160 = vsel %vm2096, %v2064, %v2128
      %v2161 = vsel %vm2097, %v2065, %v2129
      %v2162 = vsel %vm2098, %v2066, %v2130
      %v2163 = vsel %vm2099, %v2067, %v2131
      %v2164 = vsel %vm2100, %v2068, %v2132
      %v2165 = vsel %vm2101, %v2069, %v2133
      %v2166 = vsel %vm2102, %v2070, %v2134
      %v2167 = vsel %vm2103, %v2071, %v2135
      %v2168 = vsel %vm2104, %v2072, %v2136
      %v2169 = vsel %vm2105, %v2073, %v2137
      %v2170 = vsel %vm2106, %v2074, %v2138
      %v2171 = vsel %vm2107, %v2075, %v2139
      %v2172 = vsel %vm2108, %v2076, %v2140
      %v2173 = vsel %vm2109, %v2077, %v2141
      %v2174 = vsel %vm2110, %v2078, %v2142
      %v2175 = vsel %vm2111, %v2079, %v2143
      %v2176 = vsel %vm2112, %v2080, %v2144
      %v2177 = vsel %vm2113, %v2081, %v2145
      %v2178 = vsel %vm2114, %v2082, %v2146
      %v2179 = vsel %vm2115, %v2083, %v2147
      %v2180 = vsel %vm2116, %v2084, %v2148
      %v2181 = vsel %vm2117, %v2085, %v2149
      %v2182 = vsel %vm2118, %v2086, %v2150
      %v2183 = vsel %vm2119, %v2087, %v2151
      %v2184 = vsel %vm2120, %v2088, %v2152
      %v2185 = vsel %vm2121, %v2089, %v2153
      %v2186 = vsel %vm2122, %v2090, %v2154
      %v2187 = vsel %vm2123, %v2091, %v2155
      %v2188 = vsel %vm2124, %v2092, %v2156
      %v2189 = vsel %vm2125, %v2093, %v2157
      %v2190 = vadd.f32 %v2158, 1.0
      %v2191 = vadd.f32 %v2159, 1.0
      %v2192 = vadd.f32 %v2160, 1.0
      %v2193 = vadd.f32 %v2161, 1.0
      %v2194 = vadd.f32 %v2162, 1.0
      %v2195 = vadd.f32 %v2163, 1.0
      %v2196 = vadd.f32 %v2164, 1.0
      %v2197 = vadd.f32 %v2165, 1.0
      %v2198 = vadd.f32 %v2166, 1.0
      %v2199 = vadd.f32 %v2167, 1.0
      %v2200 = vadd.f32 %v2168, 1.0
      %v2201 = vadd.f32 %v2169, 1.0
      %v2202 = vadd.f32 %v2170, 1.0
      %v2203 = vadd.f32 %v2171, 1.0
      %v2204 = vadd.f32 %v2172, 1.0
      %v2205 = vadd.f32 %v2173, 1.0
      %v2206 = vadd.f32 %v2174, 1.0
      %v2207 = vadd.f32 %v2175, 1.0
      %v2208 = vadd.f32 %v2176, 1.0
      %v2209 = vadd.f32 %v2177, 1.0
      %v2210 = vadd.f32 %v2178, 1.0
      %v2211 = vadd.f32 %v2179, 1.0
      %v2212 = vadd.f32 %v2180, 1.0
      %v2213 = vadd.f32 %v2181, 1.0
      %v2214 = vadd.f32 %v2182, 1.0
      %v2215 = vadd.f32 %v2183, 1.0
      %v2216 = vadd.f32 %v2184, 1.0
      %v2217 = vadd.f32 %v2185, 1.0
      %v2218 = vadd.f32 %v2186, 1.0
      %v2219 = vadd.f32 %v2187, 1.0
      %v2220 = vadd.f32 %v2188, 1.0
      %v2221 = vadd.f32 %v2189, 1.0
      %v2222 = vmul.f32 %v1389, %v2190
      %v2223 = vmul.f32 %v1390, %v2191
      %v2224 = vmul.f32 %v1391, %v2192
      %v2225 = vmul.f32 %v1392, %v2193
      %v2226 = vmul.f32 %v1393, %v2194
      %v2227 = vmul.f32 %v1394, %v2195
      %v2228 = vmul.f32 %v1395, %v2196
      %v2229 = vmul.f32 %v1396, %v2197
      %v2230 = vmul.f32 %v1397, %v2198
      %v2231 = vmul.f32 %v1398, %v2199
      %v2232 = vmul.f32 %v1399, %v2200
      %v2233 = vmul.f32 %v1400, %v2201
      %v2234 = vmul.f32 %v1401, %v2202
      %v2235 = vmul.f32 %v1402, %v2203
      %v2236 = vmul.f32 %v1403, %v2204
      %v2237 = vmul.f32 %v1404, %v2205
      %v2238 = vmul.f32 %v1405, %v2206
      %v2239 = vmul.f32 %v1406, %v2207
      %v2240 = vmul.f32 %v1407, %v2208
      %v2241 = vmul.f32 %v1408, %v2209
      %v2242 = vmul.f32 %v1409, %v2210
      %v2243 = vmul.f32 %v1410, %v2211
      %v2244 = vmul.f32 %v1411, %v2212
      %v2245 = vmul.f32 %v1412, %v2213
      %v2246 = vmul.f32 %v1413, %v2214
      %v2247 = vmul.f32 %v1414, %v2215
      %v2248 = vmul.f32 %v1415, %v2216
      %v2249 = vmul.f32 %v1416, %v2217
      %v2250 = vmul.f32 %v1417, %v2218
      %v2251 = vmul.f32 %v1418, %v2219
      %v2252 = vmul.f32 %v1419, %v2220
      %v2253 = vmul.f32 %v1420, %v2221
      %v2254 = vpack.c.bf16 %v2223, %v2222
      %v2255 = vpack.c.bf16 %v2225, %v2224
      %v2256 = vpack.c.bf16 %v2227, %v2226
      %v2257 = vpack.c.bf16 %v2229, %v2228
      %v2258 = vpack.c.bf16 %v2231, %v2230
      %v2259 = vpack.c.bf16 %v2233, %v2232
      %v2260 = vpack.c.bf16 %v2235, %v2234
      %v2261 = vpack.c.bf16 %v2237, %v2236
      %v2262 = vpack.c.bf16 %v2239, %v2238
      %v2263 = vpack.c.bf16 %v2241, %v2240
      %v2264 = vpack.c.bf16 %v2243, %v2242
      %v2265 = vpack.c.bf16 %v2245, %v2244
      %v2266 = vpack.c.bf16 %v2247, %v2246
      %v2267 = vpack.c.bf16 %v2249, %v2248
      %v2268 = vpack.c.bf16 %v2251, %v2250
      %v2269 = vpack.c.bf16 %v2253, %v2252
      %v2286 = vunpack.c.l.b16 %v2254
      %v2287 = vunpack.c.h.b16 %v2254
      %v2288 = vunpack.c.l.b16 %v2255
      %v2289 = vunpack.c.h.b16 %v2255
      %v2290 = vunpack.c.l.b16 %v2256
      %v2291 = vunpack.c.h.b16 %v2256
      %v2292 = vunpack.c.l.b16 %v2257
      %v2293 = vunpack.c.h.b16 %v2257
      %v2294 = vunpack.c.l.b16 %v2258
      %v2295 = vunpack.c.h.b16 %v2258
      %v2296 = vunpack.c.l.b16 %v2259
      %v2297 = vunpack.c.h.b16 %v2259
      %v2298 = vunpack.c.l.b16 %v2260
      %v2299 = vunpack.c.h.b16 %v2260
      %v2300 = vunpack.c.l.b16 %v2261
      %v2301 = vunpack.c.h.b16 %v2261
      %v2302 = vunpack.c.l.b16 %v2262
      %v2303 = vunpack.c.h.b16 %v2262
      %v2304 = vunpack.c.l.b16 %v2263
      %v2305 = vunpack.c.h.b16 %v2263
      %v2306 = vunpack.c.l.b16 %v2264
      %v2307 = vunpack.c.h.b16 %v2264
      %v2308 = vunpack.c.l.b16 %v2265
      %v2309 = vunpack.c.h.b16 %v2265
      %v2310 = vunpack.c.l.b16 %v2266
      %v2311 = vunpack.c.h.b16 %v2266
      %v2312 = vunpack.c.l.b16 %v2267
      %v2313 = vunpack.c.h.b16 %v2267
      %v2314 = vunpack.c.l.b16 %v2268
      %v2315 = vunpack.c.h.b16 %v2268
      %v2316 = vunpack.c.l.b16 %v2269
      %v2317 = vunpack.c.h.b16 %v2269
      %v2318 = vpack.c.b16 %v2286, %v2286
      %v2319 = vpack.c.b16 %v2287, %v2287
      %v2320 = vpack.c.b16 %v2288, %v2288
      %v2321 = vpack.c.b16 %v2289, %v2289
      %v2322 = vpack.c.b16 %v2290, %v2290
      %v2323 = vpack.c.b16 %v2291, %v2291
      %v2324 = vpack.c.b16 %v2292, %v2292
      %v2325 = vpack.c.b16 %v2293, %v2293
      %v2326 = vpack.c.b16 %v2294, %v2294
      %v2327 = vpack.c.b16 %v2295, %v2295
      %v2328 = vpack.c.b16 %v2296, %v2296
      %v2329 = vpack.c.b16 %v2297, %v2297
      %v2330 = vpack.c.b16 %v2298, %v2298
      %v2331 = vpack.c.b16 %v2299, %v2299
      %v2332 = vpack.c.b16 %v2300, %v2300
      %v2333 = vpack.c.b16 %v2301, %v2301
      %v2334 = vpack.c.b16 %v2302, %v2302
      %v2335 = vpack.c.b16 %v2303, %v2303
      %v2336 = vpack.c.b16 %v2304, %v2304
      %v2337 = vpack.c.b16 %v2305, %v2305
      %v2338 = vpack.c.b16 %v2306, %v2306
      %v2339 = vpack.c.b16 %v2307, %v2307
      %v2340 = vpack.c.b16 %v2308, %v2308
      %v2341 = vpack.c.b16 %v2309, %v2309
      %v2342 = vpack.c.b16 %v2310, %v2310
      %v2343 = vpack.c.b16 %v2311, %v2311
      %v2344 = vpack.c.b16 %v2312, %v2312
      %v2345 = vpack.c.b16 %v2313, %v2313
      %v2346 = vpack.c.b16 %v2314, %v2314
      %v2347 = vpack.c.b16 %v2315, %v2315
      %v2348 = vpack.c.b16 %v2316, %v2316
      %v2349 = vpack.c.b16 %v2317, %v2317
      %v2351 = vshrl.u32 %v2318, 16
      %v2353 = vrot.slane %v2351, 7
      %v2354 = vshll.u32 %v2318, 16
      %v2356 = vor.u32 %v2353, %v2354
      %v2358 = vshrl.u32 %v2319, 16
      %v2360 = vrot.slane %v2358, 7
      %v2361 = vshll.u32 %v2319, 16
      %v2363 = vor.u32 %v2360, %v2361
      %v2365 = vshrl.u32 %v2320, 16
      %v2367 = vrot.slane %v2365, 7
      %v2368 = vshll.u32 %v2320, 16
      %v2370 = vor.u32 %v2367, %v2368
      %v2372 = vshrl.u32 %v2321, 16
      %v2374 = vrot.slane %v2372, 7
      %v2375 = vshll.u32 %v2321, 16
      %v2377 = vor.u32 %v2374, %v2375
      %v2379 = vshrl.u32 %v2322, 16
      %v2381 = vrot.slane %v2379, 7
      %v2382 = vshll.u32 %v2322, 16
      %v2384 = vor.u32 %v2381, %v2382
      %v2386 = vshrl.u32 %v2323, 16
      %v2388 = vrot.slane %v2386, 7
      %v2389 = vshll.u32 %v2323, 16
      %v2391 = vor.u32 %v2388, %v2389
      %v2393 = vshrl.u32 %v2324, 16
      %v2395 = vrot.slane %v2393, 7
      %v2396 = vshll.u32 %v2324, 16
      %v2398 = vor.u32 %v2395, %v2396
      %v2400 = vshrl.u32 %v2325, 16
      %v2402 = vrot.slane %v2400, 7
      %v2403 = vshll.u32 %v2325, 16
      %v2405 = vor.u32 %v2402, %v2403
      %v2407 = vshrl.u32 %v2326, 16
      %v2409 = vrot.slane %v2407, 7
      %v2410 = vshll.u32 %v2326, 16
      %v2412 = vor.u32 %v2409, %v2410
      %v2414 = vshrl.u32 %v2327, 16
      %v2416 = vrot.slane %v2414, 7
      %v2417 = vshll.u32 %v2327, 16
      %v2419 = vor.u32 %v2416, %v2417
      %v2421 = vshrl.u32 %v2328, 16
      %v2423 = vrot.slane %v2421, 7
      %v2424 = vshll.u32 %v2328, 16
      %v2426 = vor.u32 %v2423, %v2424
      %v2428 = vshrl.u32 %v2329, 16
      %v2430 = vrot.slane %v2428, 7
      %v2431 = vshll.u32 %v2329, 16
      %v2433 = vor.u32 %v2430, %v2431
      %v2435 = vshrl.u32 %v2330, 16
      %v2437 = vrot.slane %v2435, 7
      %v2438 = vshll.u32 %v2330, 16
      %v2440 = vor.u32 %v2437, %v2438
      %v2442 = vshrl.u32 %v2331, 16
      %v2444 = vrot.slane %v2442, 7
      %v2445 = vshll.u32 %v2331, 16
      %v2447 = vor.u32 %v2444, %v2445
      %v2449 = vshrl.u32 %v2332, 16
      %v2451 = vrot.slane %v2449, 7
      %v2452 = vshll.u32 %v2332, 16
      %v2454 = vor.u32 %v2451, %v2452
      %v2456 = vshrl.u32 %v2333, 16
      %v2458 = vrot.slane %v2456, 7
      %v2459 = vshll.u32 %v2333, 16
      %v2461 = vor.u32 %v2458, %v2459
      %v2463 = vshrl.u32 %v2334, 16
      %v2465 = vrot.slane %v2463, 7
      %v2466 = vshll.u32 %v2334, 16
      %v2468 = vor.u32 %v2465, %v2466
      %v2470 = vshrl.u32 %v2335, 16
      %v2472 = vrot.slane %v2470, 7
      %v2473 = vshll.u32 %v2335, 16
      %v2475 = vor.u32 %v2472, %v2473
      %v2477 = vshrl.u32 %v2336, 16
      %v2479 = vrot.slane %v2477, 7
      %v2480 = vshll.u32 %v2336, 16
      %v2482 = vor.u32 %v2479, %v2480
      %v2484 = vshrl.u32 %v2337, 16
      %v2486 = vrot.slane %v2484, 7
      %v2487 = vshll.u32 %v2337, 16
      %v2489 = vor.u32 %v2486, %v2487
      %v2491 = vshrl.u32 %v2338, 16
      %v2493 = vrot.slane %v2491, 7
      %v2494 = vshll.u32 %v2338, 16
      %v2496 = vor.u32 %v2493, %v2494
      %v2498 = vshrl.u32 %v2339, 16
      %v2500 = vrot.slane %v2498, 7
      %v2501 = vshll.u32 %v2339, 16
      %v2503 = vor.u32 %v2500, %v2501
      %v2505 = vshrl.u32 %v2340, 16
      %v2507 = vrot.slane %v2505, 7
      %v2508 = vshll.u32 %v2340, 16
      %v2510 = vor.u32 %v2507, %v2508
      %v2512 = vshrl.u32 %v2341, 16
      %v2514 = vrot.slane %v2512, 7
      %v2515 = vshll.u32 %v2341, 16
      %v2517 = vor.u32 %v2514, %v2515
      %v2519 = vshrl.u32 %v2342, 16
      %v2521 = vrot.slane %v2519, 7
      %v2522 = vshll.u32 %v2342, 16
      %v2524 = vor.u32 %v2521, %v2522
      %v2526 = vshrl.u32 %v2343, 16
      %v2528 = vrot.slane %v2526, 7
      %v2529 = vshll.u32 %v2343, 16
      %v2531 = vor.u32 %v2528, %v2529
      %v2533 = vshrl.u32 %v2344, 16
      %v2535 = vrot.slane %v2533, 7
      %v2536 = vshll.u32 %v2344, 16
      %v2538 = vor.u32 %v2535, %v2536
      %v2540 = vshrl.u32 %v2345, 16
      %v2542 = vrot.slane %v2540, 7
      %v2543 = vshll.u32 %v2345, 16
      %v2545 = vor.u32 %v2542, %v2543
      %v2547 = vshrl.u32 %v2346, 16
      %v2549 = vrot.slane %v2547, 7
      %v2550 = vshll.u32 %v2346, 16
      %v2552 = vor.u32 %v2549, %v2550
      %v2554 = vshrl.u32 %v2347, 16
      %v2556 = vrot.slane %v2554, 7
      %v2557 = vshll.u32 %v2347, 16
      %v2559 = vor.u32 %v2556, %v2557
      %v2561 = vshrl.u32 %v2348, 16
      %v2563 = vrot.slane %v2561, 7
      %v2564 = vshll.u32 %v2348, 16
      %v2566 = vor.u32 %v2563, %v2564
      %v2568 = vshrl.u32 %v2349, 16
      %v2570 = vrot.slane %v2568, 7
      %v2571 = vshll.u32 %v2349, 16
      %v2573 = vor.u32 %v2570, %v2571
      %s2606 = scalar_lea.vmem [#allocation2], 8
      %vm2607 = vcmask 28672
      %vm2608 = vsmask.f32 4354
      %vm2609 = vmand %vm2607, %vm2608
      %v2610 = vld [vmem:[%s2606] sm:$0x1f]
      %v2611 = vsel %vm2609, %v2356, %v2610
      %2612 = vst [vmem:[%s2606] sm:$0x1f] %v2611
      %v2613 = vld [vmem:[%s2606 + $0x8] sm:$0x1f]
      %v2614 = vsel %vm2609, %v2363, %v2613
      %2615 = vst [vmem:[%s2606 + $0x8] sm:$0x1f] %v2614
      %v2616 = vld [vmem:[%s2606 + $0x10] sm:$0x1f]
      %v2617 = vsel %vm2609, %v2370, %v2616
      %2618 = vst [vmem:[%s2606 + $0x10] sm:$0x1f] %v2617
      %v2619 = vld [vmem:[%s2606 + $0x18] sm:$0x1f]
      %v2620 = vsel %vm2609, %v2377, %v2619
      %2621 = vst [vmem:[%s2606 + $0x18] sm:$0x1f] %v2620
      %v2622 = vld [vmem:[%s2606 + $0x20] sm:$0x1f]
      %v2623 = vsel %vm2609, %v2384, %v2622
      %2624 = vst [vmem:[%s2606 + $0x20] sm:$0x1f] %v2623
      %v2625 = vld [vmem:[%s2606 + $0x28] sm:$0x1f]
      %v2626 = vsel %vm2609, %v2391, %v2625
      %2627 = vst [vmem:[%s2606 + $0x28] sm:$0x1f] %v2626
      %v2628 = vld [vmem:[%s2606 + $0x30] sm:$0x1f]
      %v2629 = vsel %vm2609, %v2398, %v2628
      %2630 = vst [vmem:[%s2606 + $0x30] sm:$0x1f] %v2629
      %v2631 = vld [vmem:[%s2606 + $0x38] sm:$0x1f]
      %v2632 = vsel %vm2609, %v2405, %v2631
      %2633 = vst [vmem:[%s2606 + $0x38] sm:$0x1f] %v2632
      %v2634 = vld [vmem:[%s2606 + $0x48] sm:$0x1f]
      %v2635 = vsel %vm2609, %v2412, %v2634
      %2636 = vst [vmem:[%s2606 + $0x48] sm:$0x1f] %v2635
      %v2637 = vld [vmem:[%s2606 + $0x50] sm:$0x1f]
      %v2638 = vsel %vm2609, %v2419, %v2637
      %2639 = vst [vmem:[%s2606 + $0x50] sm:$0x1f] %v2638
      %v2640 = vld [vmem:[%s2606 + $0x58] sm:$0x1f]
      %v2641 = vsel %vm2609, %v2426, %v2640
      %2642 = vst [vmem:[%s2606 + $0x58] sm:$0x1f] %v2641
      %v2643 = vld [vmem:[%s2606 + $0x60] sm:$0x1f]
      %v2644 = vsel %vm2609, %v2433, %v2643
      %2645 = vst [vmem:[%s2606 + $0x60] sm:$0x1f] %v2644
      %v2646 = vld [vmem:[%s2606 + $0x68] sm:$0x1f]
      %v2647 = vsel %vm2609, %v2440, %v2646
      %2648 = vst [vmem:[%s2606 + $0x68] sm:$0x1f] %v2647
      %v2649 = vld [vmem:[%s2606 + $0x70] sm:$0x1f]
      %v2650 = vsel %vm2609, %v2447, %v2649
      %2651 = vst [vmem:[%s2606 + $0x70] sm:$0x1f] %v2650
      %v2652 = vld [vmem:[%s2606 + $0x78] sm:$0x1f]
      %v2653 = vsel %vm2609, %v2454, %v2652
      %2654 = vst [vmem:[%s2606 + $0x78] sm:$0x1f] %v2653
      %v2655 = vld [vmem:[%s2606 + $0x80] sm:$0x1f]
      %v2656 = vsel %vm2609, %v2461, %v2655
      %2657 = vst [vmem:[%s2606 + $0x80] sm:$0x1f] %v2656
      %v2658 = vld [vmem:[%s2606 + $0x90] sm:$0x1f]
      %v2659 = vsel %vm2609, %v2468, %v2658
      %2660 = vst [vmem:[%s2606 + $0x90] sm:$0x1f] %v2659
      %v2661 = vld [vmem:[%s2606 + $0x98] sm:$0x1f]
      %v2662 = vsel %vm2609, %v2475, %v2661
      %2663 = vst [vmem:[%s2606 + $0x98] sm:$0x1f] %v2662
      %v2664 = vld [vmem:[%s2606 + $0xa0] sm:$0x1f]
      %v2665 = vsel %vm2609, %v2482, %v2664
      %2666 = vst [vmem:[%s2606 + $0xa0] sm:$0x1f] %v2665
      %v2667 = vld [vmem:[%s2606 + $0xa8] sm:$0x1f]
      %v2668 = vsel %vm2609, %v2489, %v2667
      %2669 = vst [vmem:[%s2606 + $0xa8] sm:$0x1f] %v2668
      %v2670 = vld [vmem:[%s2606 + $0xb0] sm:$0x1f]
      %v2671 = vsel %vm2609, %v2496, %v2670
      %2672 = vst [vmem:[%s2606 + $0xb0] sm:$0x1f] %v2671
      %v2673 = vld [vmem:[%s2606 + $0xb8] sm:$0x1f]
      %v2674 = vsel %vm2609, %v2503, %v2673
      %2675 = vst [vmem:[%s2606 + $0xb8] sm:$0x1f] %v2674
      %v2676 = vld [vmem:[%s2606 + $0xc0] sm:$0x1f]
      %v2677 = vsel %vm2609, %v2510, %v2676
      %2678 = vst [vmem:[%s2606 + $0xc0] sm:$0x1f] %v2677
      %v2679 = vld [vmem:[%s2606 + $0xc8] sm:$0x1f]
      %v2680 = vsel %vm2609, %v2517, %v2679
      %2681 = vst [vmem:[%s2606 + $0xc8] sm:$0x1f] %v2680
      %v2682 = vld [vmem:[%s2606 + $0xd8] sm:$0x1f]
      %v2683 = vsel %vm2609, %v2524, %v2682
      %2684 = vst [vmem:[%s2606 + $0xd8] sm:$0x1f] %v2683
      %v2685 = vld [vmem:[%s2606 + $0xe0] sm:$0x1f]
      %v2686 = vsel %vm2609, %v2531, %v2685
      %2687 = vst [vmem:[%s2606 + $0xe0] sm:$0x1f] %v2686
      %v2688 = vld [vmem:[%s2606 + $0xe8] sm:$0x1f]
      %v2689 = vsel %vm2609, %v2538, %v2688
      %2690 = vst [vmem:[%s2606 + $0xe8] sm:$0x1f] %v2689
      %v2691 = vld [vmem:[%s2606 + $0xf0] sm:$0x1f]
      %v2692 = vsel %vm2609, %v2545, %v2691
      %2693 = vst [vmem:[%s2606 + $0xf0] sm:$0x1f] %v2692
      %v2694 = vld [vmem:[%s2606 + $0xf8] sm:$0x1f]
      %v2695 = vsel %vm2609, %v2552, %v2694
      %2696 = vst [vmem:[%s2606 + $0xf8] sm:$0x1f] %v2695
      %v2697 = vld [vmem:[%s2606 + $0x100] sm:$0x1f]
      %v2698 = vsel %vm2609, %v2559, %v2697
      %2699 = vst [vmem:[%s2606 + $0x100] sm:$0x1f] %v2698
      %v2700 = vld [vmem:[%s2606 + $0x108] sm:$0x1f]
      %v2701 = vsel %vm2609, %v2566, %v2700
      %2702 = vst [vmem:[%s2606 + $0x108] sm:$0x1f] %v2701
      %v2703 = vld [vmem:[%s2606 + $0x110] sm:$0x1f]
      %v2704 = vsel %vm2609, %v2573, %v2703
      %2705 = vst [vmem:[%s2606 + $0x110] sm:$0x1f] %v2704
      %s2706 = scalar_lea.vmem [#allocation2], 216
      %v2707 = vld [vmem:[%s2706] sm:$0xf]
      %v2708 = vld [vmem:[%s2706 + $0x8] sm:$0xf]
      %v2709 = vld [vmem:[%s2706 + $0x10] sm:$0xf]
      %v2710 = vld [vmem:[%s2706 + $0x18] sm:$0xf]
      %v2711 = vld [vmem:[%s2706 + $0x20] sm:$0xf]
      %v2712 = vld [vmem:[%s2706 + $0x28] sm:$0xf]
      %v2713 = vld [vmem:[%s2706 + $0x30] sm:$0xf]
      %v2714 = vld [vmem:[%s2706 + $0x38] sm:$0xf]
      %v2723 = vunpack.c.l.b16 %v2707
      %v2724 = vunpack.c.l.b16 %v2708
      %v2725 = vunpack.c.l.b16 %v2709
      %v2726 = vunpack.c.l.b16 %v2710
      %v2727 = vunpack.c.l.b16 %v2711
      %v2728 = vunpack.c.l.b16 %v2712
      %v2729 = vunpack.c.l.b16 %v2713
      %v2730 = vunpack.c.l.b16 %v2714
      %v2731 = vpack.c.b16 %v2724, %v2723
      %v2732 = vpack.c.b16 %v2726, %v2725
      %v2733 = vpack.c.b16 %v2728, %v2727
      %v2734 = vpack.c.b16 %v2730, %v2729
      %2739 = vst.msk [vmem:[#allocation3] sm:$0xff] %vm548, %v2731
      %2740 = vst.msk [vmem:[#allocation3 + $0x8] sm:$0xff] %vm548, %v2732
      %2741 = vst.msk [vmem:[#allocation3 + $0x10] sm:$0xff] %vm548, %v2733
      %2742 = vst.msk [vmem:[#allocation3 + $0x18] sm:$0xff] %vm548, %v2734
      %s2743 = scalar_lea.vmem [#allocation2], 144
      %v2744 = vld [vmem:[%s2743] sm:$0x1f]
      %v2745 = vld [vmem:[%s2743 + $0x8] sm:$0x1f]
      %v2746 = vld [vmem:[%s2743 + $0x10] sm:$0x1f]
      %v2747 = vld [vmem:[%s2743 + $0x18] sm:$0x1f]
      %v2748 = vld [vmem:[%s2743 + $0x20] sm:$0x1f]
      %v2749 = vld [vmem:[%s2743 + $0x28] sm:$0x1f]
      %v2750 = vld [vmem:[%s2743 + $0x30] sm:$0x1f]
      %v2751 = vld [vmem:[%s2743 + $0x38] sm:$0x1f]
      %v2760 = vunpack.c.l.b16 %v2744
      %v2761 = vunpack.c.h.b16 %v2744
      %v2762 = vunpack.c.l.b16 %v2745
      %v2763 = vunpack.c.h.b16 %v2745
      %v2764 = vunpack.c.l.b16 %v2746
      %v2765 = vunpack.c.h.b16 %v2746
      %v2766 = vunpack.c.l.b16 %v2747
      %v2767 = vunpack.c.h.b16 %v2747
      %v2768 = vunpack.c.l.b16 %v2748
      %v2769 = vunpack.c.h.b16 %v2748
      %v2770 = vunpack.c.l.b16 %v2749
      %v2771 = vunpack.c.h.b16 %v2749
      %v2772 = vunpack.c.l.b16 %v2750
      %v2773 = vunpack.c.h.b16 %v2750
      %v2774 = vunpack.c.l.b16 %v2751
      %v2775 = vunpack.c.h.b16 %v2751
      %v2776 = vpack.c.b16 %v2760, %v2760
      %v2777 = vpack.c.b16 %v2761, %v2761
      %v2778 = vpack.c.b16 %v2762, %v2762
      %v2779 = vpack.c.b16 %v2763, %v2763
      %v2780 = vpack.c.b16 %v2764, %v2764
      %v2781 = vpack.c.b16 %v2765, %v2765
      %v2782 = vpack.c.b16 %v2766, %v2766
      %v2783 = vpack.c.b16 %v2767, %v2767
      %v2784 = vpack.c.b16 %v2768, %v2768
      %v2785 = vpack.c.b16 %v2769, %v2769
      %v2786 = vpack.c.b16 %v2770, %v2770
      %v2787 = vpack.c.b16 %v2771, %v2771
      %v2788 = vpack.c.b16 %v2772, %v2772
      %v2789 = vpack.c.b16 %v2773, %v2773
      %v2790 = vpack.c.b16 %v2774, %v2774
      %v2791 = vpack.c.b16 %v2775, %v2775
      %vm2792 = vsmask.f32 3328
      %vm2793 = vsmask.f32 7440
      %vm2794 = vmor %vm2792, %vm2793
      %v2796 = vshrl.u32 %v2776, 16
      %v2798 = vrot.slane %v2796, 4
      %v2799 = vshll.u32 %v2776, 16
      %v2801 = vrot.slane %v2799, 5
      %v2802 = vor.u32 %v2798, %v2801
      %v2803 = vrot.slane %v2802, 4
      %v2805 = vshll.u32 %v2777, 16
      %v2807 = vrot.slane %v2805, 5
      %v2808 = vsel %vm2794, %v2803, %v2807
      %v2810 = vshrl.u32 %v2778, 16
      %v2812 = vrot.slane %v2810, 4
      %v2813 = vshll.u32 %v2778, 16
      %v2815 = vrot.slane %v2813, 5
      %v2816 = vor.u32 %v2812, %v2815
      %v2817 = vrot.slane %v2816, 4
      %v2819 = vshll.u32 %v2779, 16
      %v2821 = vrot.slane %v2819, 5
      %v2822 = vsel %vm2794, %v2817, %v2821
      %v2824 = vshrl.u32 %v2780, 16
      %v2826 = vrot.slane %v2824, 4
      %v2827 = vshll.u32 %v2780, 16
      %v2829 = vrot.slane %v2827, 5
      %v2830 = vor.u32 %v2826, %v2829
      %v2831 = vrot.slane %v2830, 4
      %v2833 = vshll.u32 %v2781, 16
      %v2835 = vrot.slane %v2833, 5
      %v2836 = vsel %vm2794, %v2831, %v2835
      %v2838 = vshrl.u32 %v2782, 16
      %v2840 = vrot.slane %v2838, 4
      %v2841 = vshll.u32 %v2782, 16
      %v2843 = vrot.slane %v2841, 5
      %v2844 = vor.u32 %v2840, %v2843
      %v2845 = vrot.slane %v2844, 4
      %v2847 = vshll.u32 %v2783, 16
      %v2849 = vrot.slane %v2847, 5
      %v2850 = vsel %vm2794, %v2845, %v2849
      %v2852 = vshrl.u32 %v2784, 16
      %v2854 = vrot.slane %v2852, 4
      %v2855 = vshll.u32 %v2784, 16
      %v2857 = vrot.slane %v2855, 5
      %v2858 = vor.u32 %v2854, %v2857
      %v2859 = vrot.slane %v2858, 4
      %v2861 = vshll.u32 %v2785, 16
      %v2863 = vrot.slane %v2861, 5
      %v2864 = vsel %vm2794, %v2859, %v2863
      %v2866 = vshrl.u32 %v2786, 16
      %v2868 = vrot.slane %v2866, 4
      %v2869 = vshll.u32 %v2786, 16
      %v2871 = vrot.slane %v2869, 5
      %v2872 = vor.u32 %v2868, %v2871
      %v2873 = vrot.slane %v2872, 4
      %v2875 = vshll.u32 %v2787, 16
      %v2877 = vrot.slane %v2875, 5
      %v2878 = vsel %vm2794, %v2873, %v2877
      %v2880 = vshrl.u32 %v2788, 16
      %v2882 = vrot.slane %v2880, 4
      %v2883 = vshll.u32 %v2788, 16
      %v2885 = vrot.slane %v2883, 5
      %v2886 = vor.u32 %v2882, %v2885
      %v2887 = vrot.slane %v2886, 4
      %v2889 = vshll.u32 %v2789, 16
      %v2891 = vrot.slane %v2889, 5
      %v2892 = vsel %vm2794, %v2887, %v2891
      %v2894 = vshrl.u32 %v2790, 16
      %v2896 = vrot.slane %v2894, 4
      %v2897 = vshll.u32 %v2790, 16
      %v2899 = vrot.slane %v2897, 5
      %v2900 = vor.u32 %v2896, %v2899
      %v2901 = vrot.slane %v2900, 4
      %v2903 = vshll.u32 %v2791, 16
      %v2905 = vrot.slane %v2903, 5
      %v2906 = vsel %vm2794, %v2901, %v2905
      %v2907 = vunpack.c.l.b16 %v2808
      %v2908 = vunpack.c.l.b16 %v2822
      %v2909 = vunpack.c.l.b16 %v2836
      %v2910 = vunpack.c.l.b16 %v2850
      %v2911 = vunpack.c.l.b16 %v2864
      %v2912 = vunpack.c.l.b16 %v2878
      %v2913 = vunpack.c.l.b16 %v2892
      %v2914 = vunpack.c.l.b16 %v2906
      %v2915 = vpack.c.b16 %v2908, %v2907
      %v2916 = vpack.c.b16 %v2910, %v2909
      %v2917 = vpack.c.b16 %v2912, %v2911
      %v2918 = vpack.c.b16 %v2914, %v2913
      %2919 = vrot.lane.b32.xlu0 %v2915, 4
      %v2920 = vpop.permute.xlu0 %2919
      %2921 = vrot.lane.b32.xlu0 %v2916, 4
      %v2922 = vpop.permute.xlu0 %2921
      %2923 = vrot.lane.b32.xlu0 %v2917, 4
      %v2924 = vpop.permute.xlu0 %2923
      %2925 = vrot.lane.b32.xlu0 %v2918, 4
      %v2926 = vpop.permute.xlu0 %2925
      %vm2931 = vcmask 64544
      %2932 = vst.msk [vmem:[#allocation3] sm:$0xff] %vm2931, %v2920
      %2933 = vst.msk [vmem:[#allocation3 + $0x8] sm:$0xff] %vm2931, %v2922
      %2934 = vst.msk [vmem:[#allocation3 + $0x10] sm:$0xff] %vm2931, %v2924
      %2935 = vst.msk [vmem:[#allocation3 + $0x18] sm:$0xff] %vm2931, %v2926
      %v2936 = vld [vmem:[%s2706] sm:$0x1f]
      %v2937 = vld [vmem:[%s2706 + $0x8] sm:$0x1f]
      %v2938 = vld [vmem:[%s2706 + $0x10] sm:$0x1f]
      %v2939 = vld [vmem:[%s2706 + $0x18] sm:$0x1f]
      %v2940 = vld [vmem:[%s2706 + $0x20] sm:$0x1f]
      %v2941 = vld [vmem:[%s2706 + $0x28] sm:$0x1f]
      %v2942 = vld [vmem:[%s2706 + $0x30] sm:$0x1f]
      %v2943 = vld [vmem:[%s2706 + $0x38] sm:$0x1f]
      %v2952 = vunpack.c.l.b16 %v2936
      %v2953 = vunpack.c.h.b16 %v2936
      %v2954 = vunpack.c.l.b16 %v2937
      %v2955 = vunpack.c.h.b16 %v2937
      %v2956 = vunpack.c.l.b16 %v2938
      %v2957 = vunpack.c.h.b16 %v2938
      %v2958 = vunpack.c.l.b16 %v2939
      %v2959 = vunpack.c.h.b16 %v2939
      %v2960 = vunpack.c.l.b16 %v2940
      %v2961 = vunpack.c.h.b16 %v2940
      %v2962 = vunpack.c.l.b16 %v2941
      %v2963 = vunpack.c.h.b16 %v2941
      %v2964 = vunpack.c.l.b16 %v2942
      %v2965 = vunpack.c.h.b16 %v2942
      %v2966 = vunpack.c.l.b16 %v2943
      %v2967 = vunpack.c.h.b16 %v2943
      %v2968 = vpack.c.b16 %v2952, %v2952
      %v2969 = vpack.c.b16 %v2953, %v2953
      %v2970 = vpack.c.b16 %v2954, %v2954
      %v2971 = vpack.c.b16 %v2955, %v2955
      %v2972 = vpack.c.b16 %v2956, %v2956
      %v2973 = vpack.c.b16 %v2957, %v2957
      %v2974 = vpack.c.b16 %v2958, %v2958
      %v2975 = vpack.c.b16 %v2959, %v2959
      %v2976 = vpack.c.b16 %v2960, %v2960
      %v2977 = vpack.c.b16 %v2961, %v2961
      %v2978 = vpack.c.b16 %v2962, %v2962
      %v2979 = vpack.c.b16 %v2963, %v2963
      %v2980 = vpack.c.b16 %v2964, %v2964
      %v2981 = vpack.c.b16 %v2965, %v2965
      %v2982 = vpack.c.b16 %v2966, %v2966
      %v2983 = vpack.c.b16 %v2967, %v2967
      %v2985 = vshrl.u32 %v2968, 16
      %v2987 = vrot.slane %v2985, 4
      %v2988 = vshll.u32 %v2968, 16
      %v2990 = vrot.slane %v2988, 5
      %v2991 = vor.u32 %v2987, %v2990
      %v2992 = vrot.slane %v2991, 4
      %v2994 = vshll.u32 %v2969, 16
      %v2996 = vrot.slane %v2994, 5
      %v2997 = vsel %vm2794, %v2992, %v2996
      %v2999 = vshrl.u32 %v2970, 16
      %v3001 = vrot.slane %v2999, 4
      %v3002 = vshll.u32 %v2970, 16
      %v3004 = vrot.slane %v3002, 5
      %v3005 = vor.u32 %v3001, %v3004
      %v3006 = vrot.slane %v3005, 4
      %v3008 = vshll.u32 %v2971, 16
      %v3010 = vrot.slane %v3008, 5
      %v3011 = vsel %vm2794, %v3006, %v3010
      %v3013 = vshrl.u32 %v2972, 16
      %v3015 = vrot.slane %v3013, 4
      %v3016 = vshll.u32 %v2972, 16
      %v3018 = vrot.slane %v3016, 5
      %v3019 = vor.u32 %v3015, %v3018
      %v3020 = vrot.slane %v3019, 4
      %v3022 = vshll.u32 %v2973, 16
      %v3024 = vrot.slane %v3022, 5
      %v3025 = vsel %vm2794, %v3020, %v3024
      %v3027 = vshrl.u32 %v2974, 16
      %v3029 = vrot.slane %v3027, 4
      %v3030 = vshll.u32 %v2974, 16
      %v3032 = vrot.slane %v3030, 5
      %v3033 = vor.u32 %v3029, %v3032
      %v3034 = vrot.slane %v3033, 4
      %v3036 = vshll.u32 %v2975, 16
      %v3038 = vrot.slane %v3036, 5
      %v3039 = vsel %vm2794, %v3034, %v3038
      %v3041 = vshrl.u32 %v2976, 16
      %v3043 = vrot.slane %v3041, 4
      %v3044 = vshll.u32 %v2976, 16
      %v3046 = vrot.slane %v3044, 5
      %v3047 = vor.u32 %v3043, %v3046
      %v3048 = vrot.slane %v3047, 4
      %v3050 = vshll.u32 %v2977, 16
      %v3052 = vrot.slane %v3050, 5
      %v3053 = vsel %vm2794, %v3048, %v3052
      %v3055 = vshrl.u32 %v2978, 16
      %v3057 = vrot.slane %v3055, 4
      %v3058 = vshll.u32 %v2978, 16
      %v3060 = vrot.slane %v3058, 5
      %v3061 = vor.u32 %v3057, %v3060
      %v3062 = vrot.slane %v3061, 4
      %v3064 = vshll.u32 %v2979, 16
      %v3066 = vrot.slane %v3064, 5
      %v3067 = vsel %vm2794, %v3062, %v3066
      %v3069 = vshrl.u32 %v2980, 16
      %v3071 = vrot.slane %v3069, 4
      %v3072 = vshll.u32 %v2980, 16
      %v3074 = vrot.slane %v3072, 5
      %v3075 = vor.u32 %v3071, %v3074
      %v3076 = vrot.slane %v3075, 4
      %v3078 = vshll.u32 %v2981, 16
      %v3080 = vrot.slane %v3078, 5
      %v3081 = vsel %vm2794, %v3076, %v3080
      %v3083 = vshrl.u32 %v2982, 16
      %v3085 = vrot.slane %v3083, 4
      %v3086 = vshll.u32 %v2982, 16
      %v3088 = vrot.slane %v3086, 5
      %v3089 = vor.u32 %v3085, %v3088
      %v3090 = vrot.slane %v3089, 4
      %v3092 = vshll.u32 %v2983, 16
      %v3094 = vrot.slane %v3092, 5
      %v3095 = vsel %vm2794, %v3090, %v3094
      %v3096 = vunpack.c.l.b16 %v2997
      %v3097 = vunpack.c.l.b16 %v3011
      %v3098 = vunpack.c.l.b16 %v3025
      %v3099 = vunpack.c.l.b16 %v3039
      %v3100 = vunpack.c.l.b16 %v3053
      %v3101 = vunpack.c.l.b16 %v3067
      %v3102 = vunpack.c.l.b16 %v3081
      %v3103 = vunpack.c.l.b16 %v3095
      %v3104 = vpack.c.b16 %v3097, %v3096
      %v3105 = vpack.c.b16 %v3099, %v3098
      %v3106 = vpack.c.b16 %v3101, %v3100
      %v3107 = vpack.c.b16 %v3103, %v3102
      %3108 = vrot.lane.b32.xlu0 %v3104, 8
      %v3109 = vpop.permute.xlu0 %3108
      %3110 = vrot.lane.b32.xlu0 %v3105, 8
      %v3111 = vpop.permute.xlu0 %3110
      %3112 = vrot.lane.b32.xlu0 %v3106, 8
      %v3113 = vpop.permute.xlu0 %3112
      %3114 = vrot.lane.b32.xlu0 %v3107, 8
      %v3115 = vpop.permute.xlu0 %3114
      %vm3120 = vcmask 97344
      %3121 = vst.msk [vmem:[#allocation3] sm:$0xff] %vm3120, %v3109
      %3122 = vst.msk [vmem:[#allocation3 + $0x8] sm:$0xff] %vm3120, %v3111
      %3123 = vst.msk [vmem:[#allocation3 + $0x10] sm:$0xff] %vm3120, %v3113
      %3124 = vst.msk [vmem:[#allocation3 + $0x18] sm:$0xff] %vm3120, %v3115
      %s3125 = scalar_lea.vmem [#allocation2], 80
      %v3126 = vld [vmem:[%s3125] sm:$0xf]
      %v3127 = vld [vmem:[%s3125 + $0x8] sm:$0xf]
      %v3128 = vld [vmem:[%s3125 + $0x10] sm:$0xf]
      %v3129 = vld [vmem:[%s3125 + $0x18] sm:$0xf]
      %v3130 = vld [vmem:[%s3125 + $0x20] sm:$0xf]
      %v3131 = vld [vmem:[%s3125 + $0x28] sm:$0xf]
      %v3132 = vld [vmem:[%s3125 + $0x30] sm:$0xf]
      %v3133 = vld [vmem:[%s3125 + $0x38] sm:$0xf]
      %v3142 = vunpack.c.l.b16 %v3126
      %v3143 = vunpack.c.l.b16 %v3127
      %v3144 = vunpack.c.l.b16 %v3128
      %v3145 = vunpack.c.l.b16 %v3129
      %v3146 = vunpack.c.l.b16 %v3130
      %v3147 = vunpack.c.l.b16 %v3131
      %v3148 = vunpack.c.l.b16 %v3132
      %v3149 = vunpack.c.l.b16 %v3133
      %v3150 = vpack.c.b16 %v3143, %v3142
      %v3151 = vpack.c.b16 %v3145, %v3144
      %v3152 = vpack.c.b16 %v3147, %v3146
      %v3153 = vpack.c.b16 %v3149, %v3148
      %3154 = vrot.lane.b32.xlu0 %v3150, 12
      %v3155 = vpop.permute.xlu0 %3154
      %3156 = vrot.lane.b32.xlu0 %v3151, 12
      %v3157 = vpop.permute.xlu0 %3156
      %3158 = vrot.lane.b32.xlu0 %v3152, 12
      %v3159 = vpop.permute.xlu0 %3158
      %3160 = vrot.lane.b32.xlu0 %v3153, 12
      %v3161 = vpop.permute.xlu0 %3160
      %vm3166 = vcmask 130144
      %3167 = vst.msk [vmem:[#allocation3] sm:$0xff] %vm3166, %v3155
      %3168 = vst.msk [vmem:[#allocation3 + $0x8] sm:$0xff] %vm3166, %v3157
      %3169 = vst.msk [vmem:[#allocation3 + $0x10] sm:$0xff] %vm3166, %v3159
      %3170 = vst.msk [vmem:[#allocation3 + $0x18] sm:$0xff] %vm3166, %v3161
      %v3171 = vld [vmem:[%s2606] sm:$0x1f]
      %v3172 = vld [vmem:[%s2606 + $0x8] sm:$0x1f]
      %v3173 = vld [vmem:[%s2606 + $0x10] sm:$0x1f]
      %v3174 = vld [vmem:[%s2606 + $0x18] sm:$0x1f]
      %v3175 = vld [vmem:[%s2606 + $0x20] sm:$0x1f]
      %v3176 = vld [vmem:[%s2606 + $0x28] sm:$0x1f]
      %v3177 = vld [vmem:[%s2606 + $0x30] sm:$0x1f]
      %v3178 = vld [vmem:[%s2606 + $0x38] sm:$0x1f]
      %v3187 = vunpack.c.l.b16 %v3171
      %v3188 = vunpack.c.h.b16 %v3171
      %v3189 = vunpack.c.l.b16 %v3172
      %v3190 = vunpack.c.h.b16 %v3172
      %v3191 = vunpack.c.l.b16 %v3173
      %v3192 = vunpack.c.h.b16 %v3173
      %v3193 = vunpack.c.l.b16 %v3174
      %v3194 = vunpack.c.h.b16 %v3174
      %v3195 = vunpack.c.l.b16 %v3175
      %v3196 = vunpack.c.h.b16 %v3175
      %v3197 = vunpack.c.l.b16 %v3176
      %v3198 = vunpack.c.h.b16 %v3176
      %v3199 = vunpack.c.l.b16 %v3177
      %v3200 = vunpack.c.h.b16 %v3177
      %v3201 = vunpack.c.l.b16 %v3178
      %v3202 = vunpack.c.h.b16 %v3178
      %v3203 = vpack.c.b16 %v3187, %v3187
      %v3204 = vpack.c.b16 %v3188, %v3188
      %v3205 = vpack.c.b16 %v3189, %v3189
      %v3206 = vpack.c.b16 %v3190, %v3190
      %v3207 = vpack.c.b16 %v3191, %v3191
      %v3208 = vpack.c.b16 %v3192, %v3192
      %v3209 = vpack.c.b16 %v3193, %v3193
      %v3210 = vpack.c.b16 %v3194, %v3194
      %v3211 = vpack.c.b16 %v3195, %v3195
      %v3212 = vpack.c.b16 %v3196, %v3196
      %v3213 = vpack.c.b16 %v3197, %v3197
      %v3214 = vpack.c.b16 %v3198, %v3198
      %v3215 = vpack.c.b16 %v3199, %v3199
      %v3216 = vpack.c.b16 %v3200, %v3200
      %v3217 = vpack.c.b16 %v3201, %v3201
      %v3218 = vpack.c.b16 %v3202, %v3202
      %v3220 = vshrl.u32 %v3203, 16
      %v3222 = vrot.slane %v3220, 4
      %v3223 = vshll.u32 %v3203, 16
      %v3225 = vrot.slane %v3223, 5
      %v3226 = vor.u32 %v3222, %v3225
      %v3227 = vrot.slane %v3226, 4
      %v3229 = vshll.u32 %v3204, 16
      %v3231 = vrot.slane %v3229, 5
      %v3232 = vsel %vm2794, %v3227, %v3231
      %v3234 = vshrl.u32 %v3205, 16
      %v3236 = vrot.slane %v3234, 4
      %v3237 = vshll.u32 %v3205, 16
      %v3239 = vrot.slane %v3237, 5
      %v3240 = vor.u32 %v3236, %v3239
      %v3241 = vrot.slane %v3240, 4
      %v3243 = vshll.u32 %v3206, 16
      %v3245 = vrot.slane %v3243, 5
      %v3246 = vsel %vm2794, %v3241, %v3245
      %v3248 = vshrl.u32 %v3207, 16
      %v3250 = vrot.slane %v3248, 4
      %v3251 = vshll.u32 %v3207, 16
      %v3253 = vrot.slane %v3251, 5
      %v3254 = vor.u32 %v3250, %v3253
      %v3255 = vrot.slane %v3254, 4
      %v3257 = vshll.u32 %v3208, 16
      %v3259 = vrot.slane %v3257, 5
      %v3260 = vsel %vm2794, %v3255, %v3259
      %v3262 = vshrl.u32 %v3209, 16
      %v3264 = vrot.slane %v3262, 4
      %v3265 = vshll.u32 %v3209, 16
      %v3267 = vrot.slane %v3265, 5
      %v3268 = vor.u32 %v3264, %v3267
      %v3269 = vrot.slane %v3268, 4
      %v3271 = vshll.u32 %v3210, 16
      %v3273 = vrot.slane %v3271, 5
      %v3274 = vsel %vm2794, %v3269, %v3273
      %v3276 = vshrl.u32 %v3211, 16
      %v3278 = vrot.slane %v3276, 4
      %v3279 = vshll.u32 %v3211, 16
      %v3281 = vrot.slane %v3279, 5
      %v3282 = vor.u32 %v3278, %v3281
      %v3283 = vrot.slane %v3282, 4
      %v3285 = vshll.u32 %v3212, 16
      %v3287 = vrot.slane %v3285, 5
      %v3288 = vsel %vm2794, %v3283, %v3287
      %v3290 = vshrl.u32 %v3213, 16
      %v3292 = vrot.slane %v3290, 4
      %v3293 = vshll.u32 %v3213, 16
      %v3295 = vrot.slane %v3293, 5
      %v3296 = vor.u32 %v3292, %v3295
      %v3297 = vrot.slane %v3296, 4
      %v3299 = vshll.u32 %v3214, 16
      %v3301 = vrot.slane %v3299, 5
      %v3302 = vsel %vm2794, %v3297, %v3301
      %v3304 = vshrl.u32 %v3215, 16
      %v3306 = vrot.slane %v3304, 4
      %v3307 = vshll.u32 %v3215, 16
      %v3309 = vrot.slane %v3307, 5
      %v3310 = vor.u32 %v3306, %v3309
      %v3311 = vrot.slane %v3310, 4
      %v3313 = vshll.u32 %v3216, 16
      %v3315 = vrot.slane %v3313, 5
      %v3316 = vsel %vm2794, %v3311, %v3315
      %v3318 = vshrl.u32 %v3217, 16
      %v3320 = vrot.slane %v3318, 4
      %v3321 = vshll.u32 %v3217, 16
      %v3323 = vrot.slane %v3321, 5
      %v3324 = vor.u32 %v3320, %v3323
      %v3325 = vrot.slane %v3324, 4
      %v3327 = vshll.u32 %v3218, 16
      %v3329 = vrot.slane %v3327, 5
      %v3330 = vsel %vm2794, %v3325, %v3329
      %v3331 = vunpack.c.l.b16 %v3232
      %v3332 = vunpack.c.l.b16 %v3246
      %v3333 = vunpack.c.l.b16 %v3260
      %v3334 = vunpack.c.l.b16 %v3274
      %v3335 = vunpack.c.l.b16 %v3288
      %v3336 = vunpack.c.l.b16 %v3302
      %v3337 = vunpack.c.l.b16 %v3316
      %v3338 = vunpack.c.l.b16 %v3330
      %v3339 = vpack.c.b16 %v3332, %v3331
      %v3340 = vpack.c.b16 %v3334, %v3333
      %v3341 = vpack.c.b16 %v3336, %v3335
      %v3342 = vpack.c.b16 %v3338, %v3337
      %3343 = vrot.lane.b32.xlu0 %v3339, 16
      %v3344 = vpop.permute.xlu0 %3343
      %3345 = vrot.lane.b32.xlu0 %v3340, 16
      %v3346 = vpop.permute.xlu0 %3345
      %3347 = vrot.lane.b32.xlu0 %v3341, 16
      %v3348 = vpop.permute.xlu0 %3347
      %3349 = vrot.lane.b32.xlu0 %v3342, 16
      %v3350 = vpop.permute.xlu0 %3349
      %vm3355 = vcmask 162944
      %3356 = vst.msk [vmem:[#allocation3] sm:$0xff] %vm3355, %v3344
      %3357 = vst.msk [vmem:[#allocation3 + $0x8] sm:$0xff] %vm3355, %v3346
      %3358 = vst.msk [vmem:[#allocation3 + $0x10] sm:$0xff] %vm3355, %v3348
      %3359 = vst.msk [vmem:[#allocation3 + $0x18] sm:$0xff] %vm3355, %v3350
      %v3360 = vld [vmem:[%s3125] sm:$0x1f]
      %v3361 = vld [vmem:[%s3125 + $0x8] sm:$0x1f]
      %v3362 = vld [vmem:[%s3125 + $0x10] sm:$0x1f]
      %v3363 = vld [vmem:[%s3125 + $0x18] sm:$0x1f]
      %v3364 = vld [vmem:[%s3125 + $0x20] sm:$0x1f]
      %v3365 = vld [vmem:[%s3125 + $0x28] sm:$0x1f]
      %v3366 = vld [vmem:[%s3125 + $0x30] sm:$0x1f]
      %v3367 = vld [vmem:[%s3125 + $0x38] sm:$0x1f]
      %v3376 = vunpack.c.l.b16 %v3360
      %v3377 = vunpack.c.h.b16 %v3360
      %v3378 = vunpack.c.l.b16 %v3361
      %v3379 = vunpack.c.h.b16 %v3361
      %v3380 = vunpack.c.l.b16 %v3362
      %v3381 = vunpack.c.h.b16 %v3362
      %v3382 = vunpack.c.l.b16 %v3363
      %v3383 = vunpack.c.h.b16 %v3363
      %v3384 = vunpack.c.l.b16 %v3364
      %v3385 = vunpack.c.h.b16 %v3364
      %v3386 = vunpack.c.l.b16 %v3365
      %v3387 = vunpack.c.h.b16 %v3365
      %v3388 = vunpack.c.l.b16 %v3366
      %v3389 = vunpack.c.h.b16 %v3366
      %v3390 = vunpack.c.l.b16 %v3367
      %v3391 = vunpack.c.h.b16 %v3367
      %v3392 = vpack.c.b16 %v3376, %v3376
      %v3393 = vpack.c.b16 %v3377, %v3377
      %v3394 = vpack.c.b16 %v3378, %v3378
      %v3395 = vpack.c.b16 %v3379, %v3379
      %v3396 = vpack.c.b16 %v3380, %v3380
      %v3397 = vpack.c.b16 %v3381, %v3381
      %v3398 = vpack.c.b16 %v3382, %v3382
      %v3399 = vpack.c.b16 %v3383, %v3383
      %v3400 = vpack.c.b16 %v3384, %v3384
      %v3401 = vpack.c.b16 %v3385, %v3385
      %v3402 = vpack.c.b16 %v3386, %v3386
      %v3403 = vpack.c.b16 %v3387, %v3387
      %v3404 = vpack.c.b16 %v3388, %v3388
      %v3405 = vpack.c.b16 %v3389, %v3389
      %v3406 = vpack.c.b16 %v3390, %v3390
      %v3407 = vpack.c.b16 %v3391, %v3391
      %v3409 = vshrl.u32 %v3392, 16
      %v3411 = vrot.slane %v3409, 4
      %v3412 = vshll.u32 %v3392, 16
      %v3414 = vrot.slane %v3412, 5
      %v3415 = vor.u32 %v3411, %v3414
      %v3416 = vrot.slane %v3415, 4
      %v3418 = vshll.u32 %v3393, 16
      %v3420 = vrot.slane %v3418, 5
      %v3421 = vsel %vm2794, %v3416, %v3420
      %v3423 = vshrl.u32 %v3394, 16
      %v3425 = vrot.slane %v3423, 4
      %v3426 = vshll.u32 %v3394, 16
      %v3428 = vrot.slane %v3426, 5
      %v3429 = vor.u32 %v3425, %v3428
      %v3430 = vrot.slane %v3429, 4
      %v3432 = vshll.u32 %v3395, 16
      %v3434 = vrot.slane %v3432, 5
      %v3435 = vsel %vm2794, %v3430, %v3434
      %v3437 = vshrl.u32 %v3396, 16
      %v3439 = vrot.slane %v3437, 4
      %v3440 = vshll.u32 %v3396, 16
      %v3442 = vrot.slane %v3440, 5
      %v3443 = vor.u32 %v3439, %v3442
      %v3444 = vrot.slane %v3443, 4
      %v3446 = vshll.u32 %v3397, 16
      %v3448 = vrot.slane %v3446, 5
      %v3449 = vsel %vm2794, %v3444, %v3448
      %v3451 = vshrl.u32 %v3398, 16
      %v3453 = vrot.slane %v3451, 4
      %v3454 = vshll.u32 %v3398, 16
      %v3456 = vrot.slane %v3454, 5
      %v3457 = vor.u32 %v3453, %v3456
      %v3458 = vrot.slane %v3457, 4
      %v3460 = vshll.u32 %v3399, 16
      %v3462 = vrot.slane %v3460, 5
      %v3463 = vsel %vm2794, %v3458, %v3462
      %v3465 = vshrl.u32 %v3400, 16
      %v3467 = vrot.slane %v3465, 4
      %v3468 = vshll.u32 %v3400, 16
      %v3470 = vrot.slane %v3468, 5
      %v3471 = vor.u32 %v3467, %v3470
      %v3472 = vrot.slane %v3471, 4
      %v3474 = vshll.u32 %v3401, 16
      %v3476 = vrot.slane %v3474, 5
      %v3477 = vsel %vm2794, %v3472, %v3476
      %v3479 = vshrl.u32 %v3402, 16
      %v3481 = vrot.slane %v3479, 4
      %v3482 = vshll.u32 %v3402, 16
      %v3484 = vrot.slane %v3482, 5
      %v3485 = vor.u32 %v3481, %v3484
      %v3486 = vrot.slane %v3485, 4
      %v3488 = vshll.u32 %v3403, 16
      %v3490 = vrot.slane %v3488, 5
      %v3491 = vsel %vm2794, %v3486, %v3490
      %v3493 = vshrl.u32 %v3404, 16
      %v3495 = vrot.slane %v3493, 4
      %v3496 = vshll.u32 %v3404, 16
      %v3498 = vrot.slane %v3496, 5
      %v3499 = vor.u32 %v3495, %v3498
      %v3500 = vrot.slane %v3499, 4
      %v3502 = vshll.u32 %v3405, 16
      %v3504 = vrot.slane %v3502, 5
      %v3505 = vsel %vm2794, %v3500, %v3504
      %v3507 = vshrl.u32 %v3406, 16
      %v3509 = vrot.slane %v3507, 4
      %v3510 = vshll.u32 %v3406, 16
      %v3512 = vrot.slane %v3510, 5
      %v3513 = vor.u32 %v3509, %v3512
      %v3514 = vrot.slane %v3513, 4
      %v3516 = vshll.u32 %v3407, 16
      %v3518 = vrot.slane %v3516, 5
      %v3519 = vsel %vm2794, %v3514, %v3518
      %v3520 = vunpack.c.l.b16 %v3421
      %v3521 = vunpack.c.l.b16 %v3435
      %v3522 = vunpack.c.l.b16 %v3449
      %v3523 = vunpack.c.l.b16 %v3463
      %v3524 = vunpack.c.l.b16 %v3477
      %v3525 = vunpack.c.l.b16 %v3491
      %v3526 = vunpack.c.l.b16 %v3505
      %v3527 = vunpack.c.l.b16 %v3519
      %v3528 = vpack.c.b16 %v3521, %v3520
      %v3529 = vpack.c.b16 %v3523, %v3522
      %v3530 = vpack.c.b16 %v3525, %v3524
      %v3531 = vpack.c.b16 %v3527, %v3526
      %3532 = vrot.lane.b32.xlu0 %v3528, 20
      %v3533 = vpop.permute.xlu0 %3532
      %3534 = vrot.lane.b32.xlu0 %v3529, 20
      %v3535 = vpop.permute.xlu0 %3534
      %3536 = vrot.lane.b32.xlu0 %v3530, 20
      %v3537 = vpop.permute.xlu0 %3536
      %3538 = vrot.lane.b32.xlu0 %v3531, 20
      %v3539 = vpop.permute.xlu0 %3538
      %vm3544 = vcmask 195744
      %3545 = vst.msk [vmem:[#allocation3] sm:$0xff] %vm3544, %v3533
      %3546 = vst.msk [vmem:[#allocation3 + $0x8] sm:$0xff] %vm3544, %v3535
      %3547 = vst.msk [vmem:[#allocation3 + $0x10] sm:$0xff] %vm3544, %v3537
      %3548 = vst.msk [vmem:[#allocation3 + $0x18] sm:$0xff] %vm3544, %v3539
      %s3549 = scalar_lea.vmem [#allocation2], 224
      %v3550 = vld [vmem:[%s3549] sm:$0xf]
      %v3551 = vld [vmem:[%s3549 + $0x8] sm:$0xf]
      %v3552 = vld [vmem:[%s3549 + $0x10] sm:$0xf]
      %v3553 = vld [vmem:[%s3549 + $0x18] sm:$0xf]
      %v3554 = vld [vmem:[%s3549 + $0x20] sm:$0xf]
      %v3555 = vld [vmem:[%s3549 + $0x28] sm:$0xf]
      %v3556 = vld [vmem:[%s3549 + $0x30] sm:$0xf]
      %v3557 = vld [vmem:[%s3549 + $0x38] sm:$0xf]
      %v3566 = vunpack.c.l.b16 %v3550
      %v3567 = vunpack.c.l.b16 %v3551
      %v3568 = vunpack.c.l.b16 %v3552
      %v3569 = vunpack.c.l.b16 %v3553
      %v3570 = vunpack.c.l.b16 %v3554
      %v3571 = vunpack.c.l.b16 %v3555
      %v3572 = vunpack.c.l.b16 %v3556
      %v3573 = vunpack.c.l.b16 %v3557
      %v3574 = vpack.c.b16 %v3567, %v3566
      %v3575 = vpack.c.b16 %v3569, %v3568
      %v3576 = vpack.c.b16 %v3571, %v3570
      %v3577 = vpack.c.b16 %v3573, %v3572
      %3578 = vrot.lane.b32.xlu0 %v3574, 24
      %v3579 = vpop.permute.xlu0 %3578
      %3580 = vrot.lane.b32.xlu0 %v3575, 24
      %v3581 = vpop.permute.xlu0 %3580
      %3582 = vrot.lane.b32.xlu0 %v3576, 24
      %v3583 = vpop.permute.xlu0 %3582
      %3584 = vrot.lane.b32.xlu0 %v3577, 24
      %v3585 = vpop.permute.xlu0 %3584
      %vm3590 = vcmask 228544
      %3591 = vst.msk [vmem:[#allocation3] sm:$0xff] %vm3590, %v3579
      %3592 = vst.msk [vmem:[#allocation3 + $0x8] sm:$0xff] %vm3590, %v3581
      %3593 = vst.msk [vmem:[#allocation3 + $0x10] sm:$0xff] %vm3590, %v3583
      %3594 = vst.msk [vmem:[#allocation3 + $0x18] sm:$0xff] %vm3590, %v3585
      %s3595 = scalar_lea.vmem [#allocation2], 152
      %v3596 = vld [vmem:[%s3595] sm:$0x1f]
      %v3597 = vld [vmem:[%s3595 + $0x8] sm:$0x1f]
      %v3598 = vld [vmem:[%s3595 + $0x10] sm:$0x1f]
      %v3599 = vld [vmem:[%s3595 + $0x18] sm:$0x1f]
      %v3600 = vld [vmem:[%s3595 + $0x20] sm:$0x1f]
      %v3601 = vld [vmem:[%s3595 + $0x28] sm:$0x1f]
      %v3602 = vld [vmem:[%s3595 + $0x30] sm:$0x1f]
      %v3603 = vld [vmem:[%s3595 + $0x38] sm:$0x1f]
      %v3612 = vunpack.c.l.b16 %v3596
      %v3613 = vunpack.c.h.b16 %v3596
      %v3614 = vunpack.c.l.b16 %v3597
      %v3615 = vunpack.c.h.b16 %v3597
      %v3616 = vunpack.c.l.b16 %v3598
      %v3617 = vunpack.c.h.b16 %v3598
      %v3618 = vunpack.c.l.b16 %v3599
      %v3619 = vunpack.c.h.b16 %v3599
      %v3620 = vunpack.c.l.b16 %v3600
      %v3621 = vunpack.c.h.b16 %v3600
      %v3622 = vunpack.c.l.b16 %v3601
      %v3623 = vunpack.c.h.b16 %v3601
      %v3624 = vunpack.c.l.b16 %v3602
      %v3625 = vunpack.c.h.b16 %v3602
      %v3626 = vunpack.c.l.b16 %v3603
      %v3627 = vunpack.c.h.b16 %v3603
      %v3628 = vpack.c.b16 %v3612, %v3612
      %v3629 = vpack.c.b16 %v3613, %v3613
      %v3630 = vpack.c.b16 %v3614, %v3614
      %v3631 = vpack.c.b16 %v3615, %v3615
      %v3632 = vpack.c.b16 %v3616, %v3616
      %v3633 = vpack.c.b16 %v3617, %v3617
      %v3634 = vpack.c.b16 %v3618, %v3618
      %v3635 = vpack.c.b16 %v3619, %v3619
      %v3636 = vpack.c.b16 %v3620, %v3620
      %v3637 = vpack.c.b16 %v3621, %v3621
      %v3638 = vpack.c.b16 %v3622, %v3622
      %v3639 = vpack.c.b16 %v3623, %v3623
      %v3640 = vpack.c.b16 %v3624, %v3624
      %v3641 = vpack.c.b16 %v3625, %v3625
      %v3642 = vpack.c.b16 %v3626, %v3626
      %v3643 = vpack.c.b16 %v3627, %v3627
      %v3645 = vshrl.u32 %v3628, 16
      %v3647 = vrot.slane %v3645, 4
      %v3648 = vshll.u32 %v3628, 16
      %v3650 = vrot.slane %v3648, 5
      %v3651 = vor.u32 %v3647, %v3650
      %v3652 = vrot.slane %v3651, 4
      %v3654 = vshll.u32 %v3629, 16
      %v3656 = vrot.slane %v3654, 5
      %v3657 = vsel %vm2794, %v3652, %v3656
      %v3659 = vshrl.u32 %v3630, 16
      %v3661 = vrot.slane %v3659, 4
      %v3662 = vshll.u32 %v3630, 16
      %v3664 = vrot.slane %v3662, 5
      %v3665 = vor.u32 %v3661, %v3664
      %v3666 = vrot.slane %v3665, 4
      %v3668 = vshll.u32 %v3631, 16
      %v3670 = vrot.slane %v3668, 5
      %v3671 = vsel %vm2794, %v3666, %v3670
      %v3673 = vshrl.u32 %v3632, 16
      %v3675 = vrot.slane %v3673, 4
      %v3676 = vshll.u32 %v3632, 16
      %v3678 = vrot.slane %v3676, 5
      %v3679 = vor.u32 %v3675, %v3678
      %v3680 = vrot.slane %v3679, 4
      %v3682 = vshll.u32 %v3633, 16
      %v3684 = vrot.slane %v3682, 5
      %v3685 = vsel %vm2794, %v3680, %v3684
      %v3687 = vshrl.u32 %v3634, 16
      %v3689 = vrot.slane %v3687, 4
      %v3690 = vshll.u32 %v3634, 16
      %v3692 = vrot.slane %v3690, 5
      %v3693 = vor.u32 %v3689, %v3692
      %v3694 = vrot.slane %v3693, 4
      %v3696 = vshll.u32 %v3635, 16
      %v3698 = vrot.slane %v3696, 5
      %v3699 = vsel %vm2794, %v3694, %v3698
      %v3701 = vshrl.u32 %v3636, 16
      %v3703 = vrot.slane %v3701, 4
      %v3704 = vshll.u32 %v3636, 16
      %v3706 = vrot.slane %v3704, 5
      %v3707 = vor.u32 %v3703, %v3706
      %v3708 = vrot.slane %v3707, 4
      %v3710 = vshll.u32 %v3637, 16
      %v3712 = vrot.slane %v3710, 5
      %v3713 = vsel %vm2794, %v3708, %v3712
      %v3715 = vshrl.u32 %v3638, 16
      %v3717 = vrot.slane %v3715, 4
      %v3718 = vshll.u32 %v3638, 16
      %v3720 = vrot.slane %v3718, 5
      %v3721 = vor.u32 %v3717, %v3720
      %v3722 = vrot.slane %v3721, 4
      %v3724 = vshll.u32 %v3639, 16
      %v3726 = vrot.slane %v3724, 5
      %v3727 = vsel %vm2794, %v3722, %v3726
      %v3729 = vshrl.u32 %v3640, 16
      %v3731 = vrot.slane %v3729, 4
      %v3732 = vshll.u32 %v3640, 16
      %v3734 = vrot.slane %v3732, 5
      %v3735 = vor.u32 %v3731, %v3734
      %v3736 = vrot.slane %v3735, 4
      %v3738 = vshll.u32 %v3641, 16
      %v3740 = vrot.slane %v3738, 5
      %v3741 = vsel %vm2794, %v3736, %v3740
      %v3743 = vshrl.u32 %v3642, 16
      %v3745 = vrot.slane %v3743, 4
      %v3746 = vshll.u32 %v3642, 16
      %v3748 = vrot.slane %v3746, 5
      %v3749 = vor.u32 %v3745, %v3748
      %v3750 = vrot.slane %v3749, 4
      %v3752 = vshll.u32 %v3643, 16
      %v3754 = vrot.slane %v3752, 5
      %v3755 = vsel %vm2794, %v3750, %v3754
      %v3756 = vunpack.c.l.b16 %v3657
      %v3757 = vunpack.c.l.b16 %v3671
      %v3758 = vunpack.c.l.b16 %v3685
      %v3759 = vunpack.c.l.b16 %v3699
      %v3760 = vunpack.c.l.b16 %v3713
      %v3761 = vunpack.c.l.b16 %v3727
      %v3762 = vunpack.c.l.b16 %v3741
      %v3763 = vunpack.c.l.b16 %v3755
      %v3764 = vpack.c.b16 %v3757, %v3756
      %v3765 = vpack.c.b16 %v3759, %v3758
      %v3766 = vpack.c.b16 %v3761, %v3760
      %v3767 = vpack.c.b16 %v3763, %v3762
      %3768 = vrot.lane.b32.xlu0 %v3764, 28
      %v3769 = vpop.permute.xlu0 %3768
      %3770 = vrot.lane.b32.xlu0 %v3765, 28
      %v3771 = vpop.permute.xlu0 %3770
      %3772 = vrot.lane.b32.xlu0 %v3766, 28
      %v3773 = vpop.permute.xlu0 %3772
      %3774 = vrot.lane.b32.xlu0 %v3767, 28
      %v3775 = vpop.permute.xlu0 %3774
      %vm3780 = vcmask 261344
      %3781 = vst.msk [vmem:[#allocation3] sm:$0xff] %vm3780, %v3769
      %3782 = vst.msk [vmem:[#allocation3 + $0x8] sm:$0xff] %vm3780, %v3771
      %3783 = vst.msk [vmem:[#allocation3 + $0x10] sm:$0xff] %vm3780, %v3773
      %3784 = vst.msk [vmem:[#allocation3 + $0x18] sm:$0xff] %vm3780, %v3775
      %v3785 = vld [vmem:[%s3549] sm:$0x1f]
      %v3786 = vld [vmem:[%s3549 + $0x8] sm:$0x1f]
      %v3787 = vld [vmem:[%s3549 + $0x10] sm:$0x1f]
      %v3788 = vld [vmem:[%s3549 + $0x18] sm:$0x1f]
      %v3789 = vld [vmem:[%s3549 + $0x20] sm:$0x1f]
      %v3790 = vld [vmem:[%s3549 + $0x28] sm:$0x1f]
      %v3791 = vld [vmem:[%s3549 + $0x30] sm:$0x1f]
      %v3792 = vld [vmem:[%s3549 + $0x38] sm:$0x1f]
      %v3801 = vunpack.c.l.b16 %v3785
      %v3802 = vunpack.c.h.b16 %v3785
      %v3803 = vunpack.c.l.b16 %v3786
      %v3804 = vunpack.c.h.b16 %v3786
      %v3805 = vunpack.c.l.b16 %v3787
      %v3806 = vunpack.c.h.b16 %v3787
      %v3807 = vunpack.c.l.b16 %v3788
      %v3808 = vunpack.c.h.b16 %v3788
      %v3809 = vunpack.c.l.b16 %v3789
      %v3810 = vunpack.c.h.b16 %v3789
      %v3811 = vunpack.c.l.b16 %v3790
      %v3812 = vunpack.c.h.b16 %v3790
      %v3813 = vunpack.c.l.b16 %v3791
      %v3814 = vunpack.c.h.b16 %v3791
      %v3815 = vunpack.c.l.b16 %v3792
      %v3816 = vunpack.c.h.b16 %v3792
      %v3817 = vpack.c.b16 %v3801, %v3801
      %v3818 = vpack.c.b16 %v3802, %v3802
      %v3819 = vpack.c.b16 %v3803, %v3803
      %v3820 = vpack.c.b16 %v3804, %v3804
      %v3821 = vpack.c.b16 %v3805, %v3805
      %v3822 = vpack.c.b16 %v3806, %v3806
      %v3823 = vpack.c.b16 %v3807, %v3807
      %v3824 = vpack.c.b16 %v3808, %v3808
      %v3825 = vpack.c.b16 %v3809, %v3809
      %v3826 = vpack.c.b16 %v3810, %v3810
      %v3827 = vpack.c.b16 %v3811, %v3811
      %v3828 = vpack.c.b16 %v3812, %v3812
      %v3829 = vpack.c.b16 %v3813, %v3813
      %v3830 = vpack.c.b16 %v3814, %v3814
      %v3831 = vpack.c.b16 %v3815, %v3815
      %v3832 = vpack.c.b16 %v3816, %v3816
      %v3834 = vshrl.u32 %v3817, 16
      %v3836 = vrot.slane %v3834, 4
      %v3837 = vshll.u32 %v3817, 16
      %v3839 = vrot.slane %v3837, 5
      %v3840 = vor.u32 %v3836, %v3839
      %v3841 = vrot.slane %v3840, 4
      %v3843 = vshll.u32 %v3818, 16
      %v3845 = vrot.slane %v3843, 5
      %v3846 = vsel %vm2794, %v3841, %v3845
      %v3848 = vshrl.u32 %v3819, 16
      %v3850 = vrot.slane %v3848, 4
      %v3851 = vshll.u32 %v3819, 16
      %v3853 = vrot.slane %v3851, 5
      %v3854 = vor.u32 %v3850, %v3853
      %v3855 = vrot.slane %v3854, 4
      %v3857 = vshll.u32 %v3820, 16
      %v3859 = vrot.slane %v3857, 5
      %v3860 = vsel %vm2794, %v3855, %v3859
      %v3862 = vshrl.u32 %v3821, 16
      %v3864 = vrot.slane %v3862, 4
      %v3865 = vshll.u32 %v3821, 16
      %v3867 = vrot.slane %v3865, 5
      %v3868 = vor.u32 %v3864, %v3867
      %v3869 = vrot.slane %v3868, 4
      %v3871 = vshll.u32 %v3822, 16
      %v3873 = vrot.slane %v3871, 5
      %v3874 = vsel %vm2794, %v3869, %v3873
      %v3876 = vshrl.u32 %v3823, 16
      %v3878 = vrot.slane %v3876, 4
      %v3879 = vshll.u32 %v3823, 16
      %v3881 = vrot.slane %v3879, 5
      %v3882 = vor.u32 %v3878, %v3881
      %v3883 = vrot.slane %v3882, 4
      %v3885 = vshll.u32 %v3824, 16
      %v3887 = vrot.slane %v3885, 5
      %v3888 = vsel %vm2794, %v3883, %v3887
      %v3890 = vshrl.u32 %v3825, 16
      %v3892 = vrot.slane %v3890, 4
      %v3893 = vshll.u32 %v3825, 16
      %v3895 = vrot.slane %v3893, 5
      %v3896 = vor.u32 %v3892, %v3895
      %v3897 = vrot.slane %v3896, 4
      %v3899 = vshll.u32 %v3826, 16
      %v3901 = vrot.slane %v3899, 5
      %v3902 = vsel %vm2794, %v3897, %v3901
      %v3904 = vshrl.u32 %v3827, 16
      %v3906 = vrot.slane %v3904, 4
      %v3907 = vshll.u32 %v3827, 16
      %v3909 = vrot.slane %v3907, 5
      %v3910 = vor.u32 %v3906, %v3909
      %v3911 = vrot.slane %v3910, 4
      %v3913 = vshll.u32 %v3828, 16
      %v3915 = vrot.slane %v3913, 5
      %v3916 = vsel %vm2794, %v3911, %v3915
      %v3918 = vshrl.u32 %v3829, 16
      %v3920 = vrot.slane %v3918, 4
      %v3921 = vshll.u32 %v3829, 16
      %v3923 = vrot.slane %v3921, 5
      %v3924 = vor.u32 %v3920, %v3923
      %v3925 = vrot.slane %v3924, 4
      %v3927 = vshll.u32 %v3830, 16
      %v3929 = vrot.slane %v3927, 5
      %v3930 = vsel %vm2794, %v3925, %v3929
      %v3932 = vshrl.u32 %v3831, 16
      %v3934 = vrot.slane %v3932, 4
      %v3935 = vshll.u32 %v3831, 16
      %v3937 = vrot.slane %v3935, 5
      %v3938 = vor.u32 %v3934, %v3937
      %v3939 = vrot.slane %v3938, 4
      %v3941 = vshll.u32 %v3832, 16
      %v3943 = vrot.slane %v3941, 5
      %v3944 = vsel %vm2794, %v3939, %v3943
      %v3945 = vunpack.c.l.b16 %v3846
      %v3946 = vunpack.c.l.b16 %v3860
      %v3947 = vunpack.c.l.b16 %v3874
      %v3948 = vunpack.c.l.b16 %v3888
      %v3949 = vunpack.c.l.b16 %v3902
      %v3950 = vunpack.c.l.b16 %v3916
      %v3951 = vunpack.c.l.b16 %v3930
      %v3952 = vunpack.c.l.b16 %v3944
      %v3953 = vpack.c.b16 %v3946, %v3945
      %v3954 = vpack.c.b16 %v3948, %v3947
      %v3955 = vpack.c.b16 %v3950, %v3949
      %v3956 = vpack.c.b16 %v3952, %v3951
      %3957 = vrot.lane.b32.xlu0 %v3953, 32
      %v3958 = vpop.permute.xlu0 %3957
      %3959 = vrot.lane.b32.xlu0 %v3954, 32
      %v3960 = vpop.permute.xlu0 %3959
      %3961 = vrot.lane.b32.xlu0 %v3955, 32
      %v3962 = vpop.permute.xlu0 %3961
      %3963 = vrot.lane.b32.xlu0 %v3956, 32
      %v3964 = vpop.permute.xlu0 %3963
      %vm3969 = vcmask 294144
      %3970 = vst.msk [vmem:[#allocation3] sm:$0xff] %vm3969, %v3958
      %3971 = vst.msk [vmem:[#allocation3 + $0x8] sm:$0xff] %vm3969, %v3960
      %3972 = vst.msk [vmem:[#allocation3 + $0x10] sm:$0xff] %vm3969, %v3962
      %3973 = vst.msk [vmem:[#allocation3 + $0x18] sm:$0xff] %vm3969, %v3964
      %v3974 = vld [vmem:[#allocation3] sm:$0xff]
      %v3975 = vld [vmem:[#allocation3 + $0x8] sm:$0xff]
      %v3976 = vld [vmem:[#allocation3 + $0x10] sm:$0xff]
      %v3977 = vld [vmem:[#allocation3 + $0x18] sm:$0xff]
      %v3978 = vld [vmem:[%s5] sm:$0xf]
      %v3979 = vld [vmem:[%s5 + $0x4] sm:$0xf]
      %v3980 = vld [vmem:[%s5 + $0x8] sm:$0xf]
      %v3981 = vld [vmem:[%s5 + $0xc] sm:$0xf]
      %v3982 = vld [vmem:[%s5 + $0x10] sm:$0x3]
      %v3983 = vld [vmem:[%s6] sm:$0x1]
      %v3985 = vlaneseq
      %v3986 = vshrl.u32 %v3985, 7
      %v3987 = vsub.s32 0, %v3986
      %v3988 = vrot.slane %v3983, %v3987
      %v3995 = vunpack.c.l.b16 %v3978
      %v3996 = vunpack.c.l.b16 %v3979
      %v3997 = vunpack.c.l.b16 %v3980
      %v3998 = vunpack.c.l.b16 %v3981
      %v3999 = vunpack.c.l.b16 %v3982
      %v4000 = vpack.c.b16 %v3996, %v3995
      %v4001 = vpack.c.b16 %v3998, %v3997
      %v4002 = vpack.c.b16 %v3999, %v3999
      %vm4005 = vcmask 293888
      %v4007 = vsel %vm4005, %v3974, 0
      %v4010 = vsel %vm4005, %v3975, 0
      %v4013 = vsel %vm4005, %v3976, 0
      %v4016 = vsel %vm4005, %v3977, 0
      %v4019 = vsel %vm917, %v4002, 0
      %4021 = vmatprep.subr.bf16.mxu0 0
      %4022 = vmatpush1.bf16.msra.mxu0 %v4000
      %4023 = vmatprep.subr.bf16.mxu0 0
      %4024 = vmatpush1.bf16.msra.mxu0 %v4001
      %4025 = vmatprep.subr.bf16.mxu0 0
      %4026 = vmatpush1.bf16.msra.mxu0 %v4019
      %4027 = vmatprep.subr.bf16.mxu0 0
      %4028 = vmatpush1.bf16.msra.mxu0 0
      %4029 = vmatprep.subr.bf16.mxu0 0
      %4030 = vmatpush1.bf16.msra.mxu0 0
      %4031 = vmatprep.subr.bf16.mxu0 0
      %4032 = vmatpush1.bf16.msra.mxu0 0
      %4033 = vmatprep.subr.bf16.mxu0 0
      %4034 = vmatpush1.bf16.msra.mxu0 0
      %4035 = vmatprep.subr.bf16.mxu0 0
      %4036 = vmatpush1.bf16.msra.mxu0 0
      %4037 = vmatprep.subr.bf16.mxu0 0
      %4038 = vmatpush1.bf16.msra.mxu0 0
      %4039 = vmatprep.subr.bf16.mxu0 0
      %4040 = vmatpush1.bf16.msra.mxu0 0
      %4041 = vmatprep.subr.bf16.mxu0 0
      %4042 = vmatpush1.bf16.msra.mxu0 0
      %4043 = vmatprep.subr.bf16.mxu0 0
      %4044 = vmatpush1.bf16.msra.mxu0 0
      %4045 = vmatprep.subr.bf16.mxu0 0
      %4046 = vmatpush1.bf16.msra.mxu0 0
      %4047 = vmatprep.subr.bf16.mxu0 0
      %4048 = vmatpush1.bf16.msra.mxu0 0
      %4049 = vmatprep.subr.bf16.mxu0 0
      %4050 = vmatpush1.bf16.msra.mxu0 0
      %4051 = vmatprep.subr.bf16.mxu0 0
      %4052 = vmatpush1.bf16.msra.mxu0 0
      %4053 = vmatprep.mubr.bf16.mxu0 0
      %4054 = vmatmul.mubr.bf16.gmra.mrb[0].mxu0 %v4007
      %v4055 = vpop.f32.mrb[0].mxu0
      %v4056 = vadd.f32 %v3988, %v4055
      %v4057 = vpop.f32.mrb[0].mxu0
      %v4058 = vpop.f32.mrb[0].mxu0
      %v4059 = vadd.f32 %v3988, %v4058
      %v4060 = vpop.f32.mrb[0].mxu0
      %4061 = vmatprep.mubr.bf16.mxu0 0
      %4062 = vmatmul.mubr.bf16.gmra.mrb[0].mxu0 %v4010
      %v4063 = vpop.f32.mrb[0].mxu0
      %v4064 = vadd.f32 %v3988, %v4063
      %v4065 = vpop.f32.mrb[0].mxu0
      %v4066 = vpop.f32.mrb[0].mxu0
      %v4067 = vadd.f32 %v3988, %v4066
      %v4068 = vpop.f32.mrb[0].mxu0
      %4069 = vmatprep.mubr.bf16.mxu0 0
      %4070 = vmatmul.mubr.bf16.gmra.mrb[0].mxu0 %v4013
      %v4071 = vpop.f32.mrb[0].mxu0
      %v4072 = vadd.f32 %v3988, %v4071
      %v4073 = vpop.f32.mrb[0].mxu0
      %v4074 = vpop.f32.mrb[0].mxu0
      %v4075 = vadd.f32 %v3988, %v4074
      %v4076 = vpop.f32.mrb[0].mxu0
      %4077 = vmatprep.mubr.bf16.mxu0 0
      %4078 = vmatmul.mubr.bf16.gmra.mrb[0].mxu0 %v4016
      %v4079 = vpop.f32.mrb[0].mxu0
      %v4080 = vadd.f32 %v3988, %v4079
      %v4081 = vpop.f32.mrb[0].mxu0
      %v4082 = vpop.f32.mrb[0].mxu0
      %v4083 = vadd.f32 %v3988, %v4082
      %v4084 = vpop.f32.mrb[0].mxu0
      %4085 = vdwg.mxu0
      %v4086 = vld [vmem:[%s7] sm:$0xff]
      %v4087 = vld [vmem:[%s8] sm:$0x3]
      %v4088 = vsel %vm664, %v4056, 0.0
      %v4089 = vsel %vm664, %v4059, 0.0
      %v4090 = vadd.f32 %v4088, %v4089
      %v4091 = vsel %vm664, %v4064, 0.0
      %v4092 = vadd.f32 %v4090, %v4091
      %v4093 = vsel %vm664, %v4067, 0.0
      %v4094 = vadd.f32 %v4092, %v4093
      %v4095 = vsel %vm664, %v4072, 0.0
      %v4096 = vadd.f32 %v4094, %v4095
      %v4097 = vsel %vm664, %v4075, 0.0
      %v4098 = vadd.f32 %v4096, %v4097
      %v4099 = vsel %vm664, %v4080, 0.0
      %v4100 = vadd.f32 %v4098, %v4099
      %v4101 = vsel %vm664, %v4083, 0.0
      %v4102 = vadd.f32 %v4100, %v4101
      %v4103 = vrot.slane %v4102, 4
      %v4104 = vadd.f32 %v4102, %v4103
      %v4105 = vrot.slane %v4104, 2
      %v4106 = vadd.f32 %v4104, %v4105
      %v4107 = vrot.slane %v4106, 1
      %v4108 = vadd.f32 %v4106, %v4107
      %v4110 = vsel %vm664, %v4108, 0
      %4112 = vmatprep.subr.mxu0 0.0
      %4113 = vmatpush1.msra.mxu0 %v4086
      %4114 = vmatprep.subr.mxu0 0.0
      %4115 = vmatpush1.msra.mxu0 0.0
      %4116 = vmatprep.subr.mxu0 0.0
      %4117 = vmatpush1.msra.mxu0 0.0
      %4118 = vmatprep.subr.mxu0 0.0
      %4119 = vmatpush1.msra.mxu0 0.0
      %4120 = vmatprep.subr.mxu0 0.0
      %4121 = vmatpush1.msra.mxu0 0.0
      %4122 = vmatprep.subr.mxu0 0.0
      %4123 = vmatpush1.msra.mxu0 0.0
      %4124 = vmatprep.subr.mxu0 0.0
      %4125 = vmatpush1.msra.mxu0 0.0
      %4126 = vmatprep.subr.mxu0 0.0
      %4127 = vmatpush1.msra.mxu0 0.0
      %4128 = vmatprep.subr.mxu0 0.0
      %4129 = vmatpush1.msra.mxu0 0.0
      %4130 = vmatprep.subr.mxu0 0.0
      %4131 = vmatpush1.msra.mxu0 0.0
      %4132 = vmatprep.subr.mxu0 0.0
      %4133 = vmatpush1.msra.mxu0 0.0
      %4134 = vmatprep.subr.mxu0 0.0
      %4135 = vmatpush1.msra.mxu0 0.0
      %4136 = vmatprep.subr.mxu0 0.0
      %4137 = vmatpush1.msra.mxu0 0.0
      %4138 = vmatprep.subr.mxu0 0.0
      %4139 = vmatpush1.msra.mxu0 0.0
      %4140 = vmatprep.subr.mxu0 0.0
      %4141 = vmatpush1.msra.mxu0 0.0
      %4142 = vmatprep.subr.mxu0 0.0
      %4143 = vmatpush1.msra.mxu0 0.0
      %4144 = vmatprep.subr.mxu0 0.0
      %4145 = vmatpush1.msra.mxu0 0.0
      %4146 = vmatprep.subr.mxu0 0.0
      %4147 = vmatpush1.msra.mxu0 0.0
      %4148 = vmatprep.subr.mxu0 0.0
      %4149 = vmatpush1.msra.mxu0 0.0
      %4150 = vmatprep.subr.mxu0 0.0
      %4151 = vmatpush1.msra.mxu0 0.0
      %4152 = vmatprep.subr.mxu0 0.0
      %4153 = vmatpush1.msra.mxu0 0.0
      %4154 = vmatprep.subr.mxu0 0.0
      %4155 = vmatpush1.msra.mxu0 0.0
      %4156 = vmatprep.subr.mxu0 0.0
      %4157 = vmatpush1.msra.mxu0 0.0
      %4158 = vmatprep.subr.mxu0 0.0
      %4159 = vmatpush1.msra.mxu0 0.0
      %4160 = vmatprep.subr.mxu0 0.0
      %4161 = vmatpush1.msra.mxu0 0.0
      %4162 = vmatprep.subr.mxu0 0.0
      %4163 = vmatpush1.msra.mxu0 0.0
      %4164 = vmatprep.subr.mxu0 0.0
      %4165 = vmatpush1.msra.mxu0 0.0
      %4166 = vmatprep.subr.mxu0 0.0
      %4167 = vmatpush1.msra.mxu0 0.0
      %4168 = vmatprep.subr.mxu0 0.0
      %4169 = vmatpush1.msra.mxu0 0.0
      %4170 = vmatprep.subr.mxu0 0.0
      %4171 = vmatpush1.msra.mxu0 0.0
      %4172 = vmatprep.subr.mxu0 0.0
      %4173 = vmatpush1.msra.mxu0 0.0
      %4174 = vmatprep.subr.mxu0 0.0
      %4175 = vmatpush1.msra.mxu0 0.0
      %4176 = vmatprep.mubr.f32.mxu0 0.0
      %4177 = vmatmul.mubr.f32.gmra.mrb[0].mxu0 %v4110
      %v4178 = vpop.f32.mrb[0].mxu0
      %v4179 = vadd.f32 0.0, %v4178
      %v4180 = vpop.f32.mrb[0].mxu0
      %4181 = vdwg.mxu0
      %v4183 = vsel %vm913, %v4179, 0
      %v4186 = vsel %vm917, %v4087, 0
      %4188 = vmatprep.subr.mxu0 0.0
      %4189 = vmatpush1.msra.mxu0 %v4186
      %4190 = vmatprep.subr.mxu0 0.0
      %4191 = vmatpush1.msra.mxu0 0.0
      %4192 = vmatprep.subr.mxu0 0.0
      %4193 = vmatpush1.msra.mxu0 0.0
      %4194 = vmatprep.subr.mxu0 0.0
      %4195 = vmatpush1.msra.mxu0 0.0
      %4196 = vmatprep.subr.mxu0 0.0
      %4197 = vmatpush1.msra.mxu0 0.0
      %4198 = vmatprep.subr.mxu0 0.0
      %4199 = vmatpush1.msra.mxu0 0.0
      %4200 = vmatprep.subr.mxu0 0.0
      %4201 = vmatpush1.msra.mxu0 0.0
      %4202 = vmatprep.subr.mxu0 0.0
      %4203 = vmatpush1.msra.mxu0 0.0
      %4204 = vmatprep.subr.mxu0 0.0
      %4205 = vmatpush1.msra.mxu0 0.0
      %4206 = vmatprep.subr.mxu0 0.0
      %4207 = vmatpush1.msra.mxu0 0.0
      %4208 = vmatprep.subr.mxu0 0.0
      %4209 = vmatpush1.msra.mxu0 0.0
      %4210 = vmatprep.subr.mxu0 0.0
      %4211 = vmatpush1.msra.mxu0 0.0
      %4212 = vmatprep.subr.mxu0 0.0
      %4213 = vmatpush1.msra.mxu0 0.0
      %4214 = vmatprep.subr.mxu0 0.0
      %4215 = vmatpush1.msra.mxu0 0.0
      %4216 = vmatprep.subr.mxu0 0.0
      %4217 = vmatpush1.msra.mxu0 0.0
      %4218 = vmatprep.subr.mxu0 0.0
      %4219 = vmatpush1.msra.mxu0 0.0
      %4220 = vmatprep.subr.mxu0 0.0
      %4221 = vmatpush1.msra.mxu0 0.0
      %4222 = vmatprep.subr.mxu0 0.0
      %4223 = vmatpush1.msra.mxu0 0.0
      %4224 = vmatprep.subr.mxu0 0.0
      %4225 = vmatpush1.msra.mxu0 0.0
      %4226 = vmatprep.subr.mxu0 0.0
      %4227 = vmatpush1.msra.mxu0 0.0
      %4228 = vmatprep.subr.mxu0 0.0
      %4229 = vmatpush1.msra.mxu0 0.0
      %4230 = vmatprep.subr.mxu0 0.0
      %4231 = vmatpush1.msra.mxu0 0.0
      %4232 = vmatprep.subr.mxu0 0.0
      %4233 = vmatpush1.msra.mxu0 0.0
      %4234 = vmatprep.subr.mxu0 0.0
      %4235 = vmatpush1.msra.mxu0 0.0
      %4236 = vmatprep.subr.mxu0 0.0
      %4237 = vmatpush1.msra.mxu0 0.0
      %4238 = vmatprep.subr.mxu0 0.0
      %4239 = vmatpush1.msra.mxu0 0.0
      %4240 = vmatprep.subr.mxu0 0.0
      %4241 = vmatpush1.msra.mxu0 0.0
      %4242 = vmatprep.subr.mxu0 0.0
      %4243 = vmatpush1.msra.mxu0 0.0
      %4244 = vmatprep.subr.mxu0 0.0
      %4245 = vmatpush1.msra.mxu0 0.0
      %4246 = vmatprep.subr.mxu0 0.0
      %4247 = vmatpush1.msra.mxu0 0.0
      %4248 = vmatprep.subr.mxu0 0.0
      %4249 = vmatpush1.msra.mxu0 0.0
      %4250 = vmatprep.subr.mxu0 0.0
      %4251 = vmatpush1.msra.mxu0 0.0
      %4252 = vmatprep.mubr.f32.mxu0 0.0
      %4253 = vmatmul.mubr.f32.gmra.mrb[0].mxu0 %v4183
      %v4254 = vpop.f32.mrb[0].mxu0
      %v4255 = vadd.f32 0.0, %v4254
      %v4256 = vpop.f32.mrb[0].mxu0
      %4257 = vdwg.mxu0
      %v4258 = vlaneseq
      %v4259 = vshrl.u32 %v4258, 7
      %v4260 = vsub.s32 0, %v4259
      %v4261 = vrot.slane %v4255, %v4260
      %v4262 = vsub.f32 %v4056, %v4261
      %v4263 = vsub.f32 %v4059, %v4261
      %v4264 = vsub.f32 %v4064, %v4261
      %v4265 = vsub.f32 %v4067, %v4261
      %v4266 = vsub.f32 %v4072, %v4261
      %v4267 = vsub.f32 %v4075, %v4261
      %v4268 = vsub.f32 %v4080, %v4261
      %v4269 = vsub.f32 %v4083, %v4261
      %v4270 = vmul.f32 %v4262, %v4262
      %v4271 = vmul.f32 %v4263, %v4263
      %v4272 = vmul.f32 %v4264, %v4264
      %v4273 = vmul.f32 %v4265, %v4265
      %v4274 = vmul.f32 %v4266, %v4266
      %v4275 = vmul.f32 %v4267, %v4267
      %v4276 = vmul.f32 %v4268, %v4268
      %v4277 = vmul.f32 %v4269, %v4269
      %v4278 = vsel %vm664, %v4270, 0.0
      %v4279 = vsel %vm664, %v4271, 0.0
      %v4280 = vadd.f32 %v4278, %v4279
      %v4281 = vsel %vm664, %v4272, 0.0
      %v4282 = vadd.f32 %v4280, %v4281
      %v4283 = vsel %vm664, %v4273, 0.0
      %v4284 = vadd.f32 %v4282, %v4283
      %v4285 = vsel %vm664, %v4274, 0.0
      %v4286 = vadd.f32 %v4284, %v4285
      %v4287 = vsel %vm664, %v4275, 0.0
      %v4288 = vadd.f32 %v4286, %v4287
      %v4289 = vsel %vm664, %v4276, 0.0
      %v4290 = vadd.f32 %v4288, %v4289
      %v4291 = vsel %vm664, %v4277, 0.0
      %v4292 = vadd.f32 %v4290, %v4291
      %v4293 = vrot.slane %v4292, 4
      %v4294 = vadd.f32 %v4292, %v4293
      %v4295 = vrot.slane %v4294, 2
      %v4296 = vadd.f32 %v4294, %v4295
      %v4297 = vrot.slane %v4296, 1
      %v4298 = vadd.f32 %v4296, %v4297
      %v4300 = vsel %vm664, %v4298, 0
      %4302 = vmatprep.subr.mxu0 0.0
      %4303 = vmatpush1.msra.mxu0 %v4086
      %4304 = vmatprep.subr.mxu0 0.0
      %4305 = vmatpush1.msra.mxu0 0.0
      %4306 = vmatprep.subr.mxu0 0.0
      %4307 = vmatpush1.msra.mxu0 0.0
      %4308 = vmatprep.subr.mxu0 0.0
      %4309 = vmatpush1.msra.mxu0 0.0
      %4310 = vmatprep.subr.mxu0 0.0
      %4311 = vmatpush1.msra.mxu0 0.0
      %4312 = vmatprep.subr.mxu0 0.0
      %4313 = vmatpush1.msra.mxu0 0.0
      %4314 = vmatprep.subr.mxu0 0.0
      %4315 = vmatpush1.msra.mxu0 0.0
      %4316 = vmatprep.subr.mxu0 0.0
      %4317 = vmatpush1.msra.mxu0 0.0
      %4318 = vmatprep.subr.mxu0 0.0
      %4319 = vmatpush1.msra.mxu0 0.0
      %4320 = vmatprep.subr.mxu0 0.0
      %4321 = vmatpush1.msra.mxu0 0.0
      %4322 = vmatprep.subr.mxu0 0.0
      %4323 = vmatpush1.msra.mxu0 0.0
      %4324 = vmatprep.subr.mxu0 0.0
      %4325 = vmatpush1.msra.mxu0 0.0
      %4326 = vmatprep.subr.mxu0 0.0
      %4327 = vmatpush1.msra.mxu0 0.0
      %4328 = vmatprep.subr.mxu0 0.0
      %4329 = vmatpush1.msra.mxu0 0.0
      %4330 = vmatprep.subr.mxu0 0.0
      %4331 = vmatpush1.msra.mxu0 0.0
      %4332 = vmatprep.subr.mxu0 0.0
      %4333 = vmatpush1.msra.mxu0 0.0
      %4334 = vmatprep.subr.mxu0 0.0
      %4335 = vmatpush1.msra.mxu0 0.0
      %4336 = vmatprep.subr.mxu0 0.0
      %4337 = vmatpush1.msra.mxu0 0.0
      %4338 = vmatprep.subr.mxu0 0.0
      %4339 = vmatpush1.msra.mxu0 0.0
      %4340 = vmatprep.subr.mxu0 0.0
      %4341 = vmatpush1.msra.mxu0 0.0
      %4342 = vmatprep.subr.mxu0 0.0
      %4343 = vmatpush1.msra.mxu0 0.0
      %4344 = vmatprep.subr.mxu0 0.0
      %4345 = vmatpush1.msra.mxu0 0.0
      %4346 = vmatprep.subr.mxu0 0.0
      %4347 = vmatpush1.msra.mxu0 0.0
      %4348 = vmatprep.subr.mxu0 0.0
      %4349 = vmatpush1.msra.mxu0 0.0
      %4350 = vmatprep.subr.mxu0 0.0
      %4351 = vmatpush1.msra.mxu0 0.0
      %4352 = vmatprep.subr.mxu0 0.0
      %4353 = vmatpush1.msra.mxu0 0.0
      %4354 = vmatprep.subr.mxu0 0.0
      %4355 = vmatpush1.msra.mxu0 0.0
      %4356 = vmatprep.subr.mxu0 0.0
      %4357 = vmatpush1.msra.mxu0 0.0
      %4358 = vmatprep.subr.mxu0 0.0
      %4359 = vmatpush1.msra.mxu0 0.0
      %4360 = vmatprep.subr.mxu0 0.0
      %4361 = vmatpush1.msra.mxu0 0.0
      %4362 = vmatprep.subr.mxu0 0.0
      %4363 = vmatpush1.msra.mxu0 0.0
      %4364 = vmatprep.subr.mxu0 0.0
      %4365 = vmatpush1.msra.mxu0 0.0
      %4366 = vmatprep.mubr.f32.mxu0 0.0
      %4367 = vmatmul.mubr.f32.gmra.mrb[0].mxu0 %v4300
      %v4368 = vpop.f32.mrb[0].mxu0
      %v4369 = vadd.f32 0.0, %v4368
      %v4370 = vpop.f32.mrb[0].mxu0
      %4371 = vdwg.mxu0
      %v4373 = vsel %vm913, %v4369, 0
      %4375 = vmatprep.subr.mxu0 0.0
      %4376 = vmatpush1.msra.mxu0 %v4186
      %4377 = vmatprep.subr.mxu0 0.0
      %4378 = vmatpush1.msra.mxu0 0.0
      %4379 = vmatprep.subr.mxu0 0.0
      %4380 = vmatpush1.msra.mxu0 0.0
      %4381 = vmatprep.subr.mxu0 0.0
      %4382 = vmatpush1.msra.mxu0 0.0
      %4383 = vmatprep.subr.mxu0 0.0
      %4384 = vmatpush1.msra.mxu0 0.0
      %4385 = vmatprep.subr.mxu0 0.0
      %4386 = vmatpush1.msra.mxu0 0.0
      %4387 = vmatprep.subr.mxu0 0.0
      %4388 = vmatpush1.msra.mxu0 0.0
      %4389 = vmatprep.subr.mxu0 0.0
      %4390 = vmatpush1.msra.mxu0 0.0
      %4391 = vmatprep.subr.mxu0 0.0
      %4392 = vmatpush1.msra.mxu0 0.0
      %4393 = vmatprep.subr.mxu0 0.0
      %4394 = vmatpush1.msra.mxu0 0.0
      %4395 = vmatprep.subr.mxu0 0.0
      %4396 = vmatpush1.msra.mxu0 0.0
      %4397 = vmatprep.subr.mxu0 0.0
      %4398 = vmatpush1.msra.mxu0 0.0
      %4399 = vmatprep.subr.mxu0 0.0
      %4400 = vmatpush1.msra.mxu0 0.0
      %4401 = vmatprep.subr.mxu0 0.0
      %4402 = vmatpush1.msra.mxu0 0.0
      %4403 = vmatprep.subr.mxu0 0.0
      %4404 = vmatpush1.msra.mxu0 0.0
      %4405 = vmatprep.subr.mxu0 0.0
      %4406 = vmatpush1.msra.mxu0 0.0
      %4407 = vmatprep.subr.mxu0 0.0
      %4408 = vmatpush1.msra.mxu0 0.0
      %4409 = vmatprep.subr.mxu0 0.0
      %4410 = vmatpush1.msra.mxu0 0.0
      %4411 = vmatprep.subr.mxu0 0.0
      %4412 = vmatpush1.msra.mxu0 0.0
      %4413 = vmatprep.subr.mxu0 0.0
      %4414 = vmatpush1.msra.mxu0 0.0
      %4415 = vmatprep.subr.mxu0 0.0
      %4416 = vmatpush1.msra.mxu0 0.0
      %4417 = vmatprep.subr.mxu0 0.0
      %4418 = vmatpush1.msra.mxu0 0.0
      %4419 = vmatprep.subr.mxu0 0.0
      %4420 = vmatpush1.msra.mxu0 0.0
      %4421 = vmatprep.subr.mxu0 0.0
      %4422 = vmatpush1.msra.mxu0 0.0
      %4423 = vmatprep.subr.mxu0 0.0
      %4424 = vmatpush1.msra.mxu0 0.0
      %4425 = vmatprep.subr.mxu0 0.0
      %4426 = vmatpush1.msra.mxu0 0.0
      %4427 = vmatprep.subr.mxu0 0.0
      %4428 = vmatpush1.msra.mxu0 0.0
      %4429 = vmatprep.subr.mxu0 0.0
      %4430 = vmatpush1.msra.mxu0 0.0
      %4431 = vmatprep.subr.mxu0 0.0
      %4432 = vmatpush1.msra.mxu0 0.0
      %4433 = vmatprep.subr.mxu0 0.0
      %4434 = vmatpush1.msra.mxu0 0.0
      %4435 = vmatprep.subr.mxu0 0.0
      %4436 = vmatpush1.msra.mxu0 0.0
      %4437 = vmatprep.subr.mxu0 0.0
      %4438 = vmatpush1.msra.mxu0 0.0
      %4439 = vmatprep.mubr.f32.mxu0 0.0
      %4440 = vmatmul.mubr.f32.gmra.mrb[0].mxu0 %v4373
      %v4441 = vpop.f32.mrb[0].mxu0
      %v4442 = vadd.f32 1e-05, %v4441
      %v4443 = vpop.f32.mrb[0].mxu0
      %4444 = vdwg.mxu0
      %v4445 = vrsqrt.pop %v4442
      %v4446 = vlaneseq
      %v4447 = vshrl.u32 %v4446, 7
      %v4448 = vsub.s32 0, %v4447
      %v4449 = vrot.slane %v4445, %v4448
      %v4450 = vmul.f32 %v4262, %v4449
      %v4451 = vmul.f32 %v4263, %v4449
      %v4452 = vmul.f32 %v4264, %v4449
      %v4453 = vmul.f32 %v4265, %v4449
      %v4454 = vmul.f32 %v4266, %v4449
      %v4455 = vmul.f32 %v4267, %v4449
      %v4456 = vmul.f32 %v4268, %v4449
      %v4457 = vmul.f32 %v4269, %v4449
      %v4458 = vld [vmem:[%s9] sm:$0x1]
      %v4460 = vlaneseq
      %v4461 = vshrl.u32 %v4460, 7
      %v4462 = vsub.s32 0, %v4461
      %v4463 = vrot.slane %v4458, %v4462
      %v4465 = vmul.f32 %v4450, %v4463
      %v4466 = vmul.f32 %v4451, %v4463
      %v4467 = vmul.f32 %v4452, %v4463
      %v4468 = vmul.f32 %v4453, %v4463
      %v4469 = vmul.f32 %v4454, %v4463
      %v4470 = vmul.f32 %v4455, %v4463
      %v4471 = vmul.f32 %v4456, %v4463
      %v4472 = vmul.f32 %v4457, %v4463
      %v4473 = vld [vmem:[%s10] sm:$0x1]
      %v4475 = vlaneseq
      %v4476 = vshrl.u32 %v4475, 7
      %v4477 = vsub.s32 0, %v4476
      %v4478 = vrot.slane %v4473, %v4477
      %v4480 = vadd.f32 %v4465, %v4478
      %v4481 = vadd.f32 %v4466, %v4478
      %v4482 = vadd.f32 %v4467, %v4478
      %v4483 = vadd.f32 %v4468, %v4478
      %v4484 = vadd.f32 %v4469, %v4478
      %v4485 = vadd.f32 %v4470, %v4478
      %v4486 = vadd.f32 %v4471, %v4478
      %v4487 = vadd.f32 %v4472, %v4478
      %v4488 = vmul.f32 %v4480, 0.5
      %v4489 = vmul.f32 %v4481, 0.5
      %v4490 = vmul.f32 %v4482, 0.5
      %v4491 = vmul.f32 %v4483, 0.5
      %v4492 = vmul.f32 %v4484, 0.5
      %v4493 = vmul.f32 %v4485, 0.5
      %v4494 = vmul.f32 %v4486, 0.5
      %v4495 = vmul.f32 %v4487, 0.5
      %v4496 = vmul.f32 %v4480, %v1421
      %v4497 = vmul.f32 %v4481, %v1421
      %v4498 = vmul.f32 %v4482, %v1421
      %v4499 = vmul.f32 %v4483, %v1421
      %v4500 = vmul.f32 %v4484, %v1421
      %v4501 = vmul.f32 %v4485, %v1421
      %v4502 = vmul.f32 %v4486, %v1421
      %v4503 = vmul.f32 %v4487, %v1421
      %v4504 = vand.u32 2147483647, %v4496
      %v4505 = vand.u32 2147483647, %v4497
      %v4506 = vand.u32 2147483647, %v4498
      %v4507 = vand.u32 2147483647, %v4499
      %v4508 = vand.u32 2147483647, %v4500
      %v4509 = vand.u32 2147483647, %v4501
      %v4510 = vand.u32 2147483647, %v4502
      %v4511 = vand.u32 2147483647, %v4503
      %v4512 = vmul.f32 %v4504, 0.3275911
      %v4513 = vmul.f32 %v4505, 0.3275911
      %v4514 = vmul.f32 %v4506, 0.3275911
      %v4515 = vmul.f32 %v4507, 0.3275911
      %v4516 = vmul.f32 %v4508, 0.3275911
      %v4517 = vmul.f32 %v4509, 0.3275911
      %v4518 = vmul.f32 %v4510, 0.3275911
      %v4519 = vmul.f32 %v4511, 0.3275911
      %v4520 = vadd.f32 %v4512, 1.0
      %v4521 = vadd.f32 %v4513, 1.0
      %v4522 = vadd.f32 %v4514, 1.0
      %v4523 = vadd.f32 %v4515, 1.0
      %v4524 = vadd.f32 %v4516, 1.0
      %v4525 = vadd.f32 %v4517, 1.0
      %v4526 = vadd.f32 %v4518, 1.0
      %v4527 = vadd.f32 %v4519, 1.0
      %v4528 = vrcp.pop %v4520
      %v4529 = vmul.f32 1.0, %v4528
      %v4530 = vrcp.pop %v4521
      %v4531 = vmul.f32 1.0, %v4530
      %v4532 = vrcp.pop %v4522
      %v4533 = vmul.f32 1.0, %v4532
      %v4534 = vrcp.pop %v4523
      %v4535 = vmul.f32 1.0, %v4534
      %v4536 = vrcp.pop %v4524
      %v4537 = vmul.f32 1.0, %v4536
      %v4538 = vrcp.pop %v4525
      %v4539 = vmul.f32 1.0, %v4538
      %v4540 = vrcp.pop %v4526
      %v4541 = vmul.f32 1.0, %v4540
      %v4542 = vrcp.pop %v4527
      %v4543 = vmul.f32 1.0, %v4542
      %v4544 = vmul.f32 %v4529, 1.0614054
      %v4545 = vmul.f32 %v4531, 1.0614054
      %v4546 = vmul.f32 %v4533, 1.0614054
      %v4547 = vmul.f32 %v4535, 1.0614054
      %v4548 = vmul.f32 %v4537, 1.0614054
      %v4549 = vmul.f32 %v4539, 1.0614054
      %v4550 = vmul.f32 %v4541, 1.0614054
      %v4551 = vmul.f32 %v4543, 1.0614054
      %v4552 = vadd.f32 %v4544, -1.4531521
      %v4553 = vadd.f32 %v4545, -1.4531521
      %v4554 = vadd.f32 %v4546, -1.4531521
      %v4555 = vadd.f32 %v4547, -1.4531521
      %v4556 = vadd.f32 %v4548, -1.4531521
      %v4557 = vadd.f32 %v4549, -1.4531521
      %v4558 = vadd.f32 %v4550, -1.4531521
      %v4559 = vadd.f32 %v4551, -1.4531521
      %v4560 = vmul.f32 %v4552, %v4529
      %v4561 = vmul.f32 %v4553, %v4531
      %v4562 = vmul.f32 %v4554, %v4533
      %v4563 = vmul.f32 %v4555, %v4535
      %v4564 = vmul.f32 %v4556, %v4537
      %v4565 = vmul.f32 %v4557, %v4539
      %v4566 = vmul.f32 %v4558, %v4541
      %v4567 = vmul.f32 %v4559, %v4543
      %v4568 = vadd.f32 %v4560, 1.4214138
      %v4569 = vadd.f32 %v4561, 1.4214138
      %v4570 = vadd.f32 %v4562, 1.4214138
      %v4571 = vadd.f32 %v4563, 1.4214138
      %v4572 = vadd.f32 %v4564, 1.4214138
      %v4573 = vadd.f32 %v4565, 1.4214138
      %v4574 = vadd.f32 %v4566, 1.4214138
      %v4575 = vadd.f32 %v4567, 1.4214138
      %v4576 = vmul.f32 %v4568, %v4529
      %v4577 = vmul.f32 %v4569, %v4531
      %v4578 = vmul.f32 %v4570, %v4533
      %v4579 = vmul.f32 %v4571, %v4535
      %v4580 = vmul.f32 %v4572, %v4537
      %v4581 = vmul.f32 %v4573, %v4539
      %v4582 = vmul.f32 %v4574, %v4541
      %v4583 = vmul.f32 %v4575, %v4543
      %v4584 = vadd.f32 %v4576, -0.28449672
      %v4585 = vadd.f32 %v4577, -0.28449672
      %v4586 = vadd.f32 %v4578, -0.28449672
      %v4587 = vadd.f32 %v4579, -0.28449672
      %v4588 = vadd.f32 %v4580, -0.28449672
      %v4589 = vadd.f32 %v4581, -0.28449672
      %v4590 = vadd.f32 %v4582, -0.28449672
      %v4591 = vadd.f32 %v4583, -0.28449672
      %v4592 = vmul.f32 %v4584, %v4529
      %v4593 = vmul.f32 %v4585, %v4531
      %v4594 = vmul.f32 %v4586, %v4533
      %v4595 = vmul.f32 %v4587, %v4535
      %v4596 = vmul.f32 %v4588, %v4537
      %v4597 = vmul.f32 %v4589, %v4539
      %v4598 = vmul.f32 %v4590, %v4541
      %v4599 = vmul.f32 %v4591, %v4543
      %v4600 = vadd.f32 %v4592, 0.2548296
      %v4601 = vadd.f32 %v4593, 0.2548296
      %v4602 = vadd.f32 %v4594, 0.2548296
      %v4603 = vadd.f32 %v4595, 0.2548296
      %v4604 = vadd.f32 %v4596, 0.2548296
      %v4605 = vadd.f32 %v4597, 0.2548296
      %v4606 = vadd.f32 %v4598, 0.2548296
      %v4607 = vadd.f32 %v4599, 0.2548296
      %v4608 = vmul.f32 %v4600, %v4529
      %v4609 = vmul.f32 %v4601, %v4531
      %v4610 = vmul.f32 %v4602, %v4533
      %v4611 = vmul.f32 %v4603, %v4535
      %v4612 = vmul.f32 %v4604, %v4537
      %v4613 = vmul.f32 %v4605, %v4539
      %v4614 = vmul.f32 %v4606, %v4541
      %v4615 = vmul.f32 %v4607, %v4543
      %v4616 = vsub.f32 0.0, %v4504
      %v4617 = vsub.f32 0.0, %v4505
      %v4618 = vsub.f32 0.0, %v4506
      %v4619 = vsub.f32 0.0, %v4507
      %v4620 = vsub.f32 0.0, %v4508
      %v4621 = vsub.f32 0.0, %v4509
      %v4622 = vsub.f32 0.0, %v4510
      %v4623 = vsub.f32 0.0, %v4511
      %v4624 = vmul.f32 %v4616, %v4504
      %v4625 = vmul.f32 %v4617, %v4505
      %v4626 = vmul.f32 %v4618, %v4506
      %v4627 = vmul.f32 %v4619, %v4507
      %v4628 = vmul.f32 %v4620, %v4508
      %v4629 = vmul.f32 %v4621, %v4509
      %v4630 = vmul.f32 %v4622, %v4510
      %v4631 = vmul.f32 %v4623, %v4511
      %v4632 = vmul.f32 %v4624, 1.442695
      %v4633 = vpow.pop %v4632
      %v4634 = vmul.f32 %v4625, 1.442695
      %v4635 = vpow.pop %v4634
      %v4636 = vmul.f32 %v4626, 1.442695
      %v4637 = vpow.pop %v4636
      %v4638 = vmul.f32 %v4627, 1.442695
      %v4639 = vpow.pop %v4638
      %v4640 = vmul.f32 %v4628, 1.442695
      %v4641 = vpow.pop %v4640
      %v4642 = vmul.f32 %v4629, 1.442695
      %v4643 = vpow.pop %v4642
      %v4644 = vmul.f32 %v4630, 1.442695
      %v4645 = vpow.pop %v4644
      %v4646 = vmul.f32 %v4631, 1.442695
      %v4647 = vpow.pop %v4646
      %v4648 = vmul.f32 %v4608, %v4633
      %v4649 = vmul.f32 %v4609, %v4635
      %v4650 = vmul.f32 %v4610, %v4637
      %v4651 = vmul.f32 %v4611, %v4639
      %v4652 = vmul.f32 %v4612, %v4641
      %v4653 = vmul.f32 %v4613, %v4643
      %v4654 = vmul.f32 %v4614, %v4645
      %v4655 = vmul.f32 %v4615, %v4647
      %v4656 = vsub.f32 1.0, %v4648
      %v4657 = vsub.f32 1.0, %v4649
      %v4658 = vsub.f32 1.0, %v4650
      %v4659 = vsub.f32 1.0, %v4651
      %v4660 = vsub.f32 1.0, %v4652
      %v4661 = vsub.f32 1.0, %v4653
      %v4662 = vsub.f32 1.0, %v4654
      %v4663 = vsub.f32 1.0, %v4655
      %vm4664 = vcmp.ge.f32.partialorder %v4496, 0.0
      %vm4665 = vcmp.ge.f32.partialorder %v4497, 0.0
      %vm4666 = vcmp.ge.f32.partialorder %v4498, 0.0
      %vm4667 = vcmp.ge.f32.partialorder %v4499, 0.0
      %vm4668 = vcmp.ge.f32.partialorder %v4500, 0.0
      %vm4669 = vcmp.ge.f32.partialorder %v4501, 0.0
      %vm4670 = vcmp.ge.f32.partialorder %v4502, 0.0
      %vm4671 = vcmp.ge.f32.partialorder %v4503, 0.0
      %v4672 = vsub.f32 0.0, %v4656
      %v4673 = vsub.f32 0.0, %v4657
      %v4674 = vsub.f32 0.0, %v4658
      %v4675 = vsub.f32 0.0, %v4659
      %v4676 = vsub.f32 0.0, %v4660
      %v4677 = vsub.f32 0.0, %v4661
      %v4678 = vsub.f32 0.0, %v4662
      %v4679 = vsub.f32 0.0, %v4663
      %v4680 = vsel %vm4664, %v4656, %v4672
      %v4681 = vsel %vm4665, %v4657, %v4673
      %v4682 = vsel %vm4666, %v4658, %v4674
      %v4683 = vsel %vm4667, %v4659, %v4675
      %v4684 = vsel %vm4668, %v4660, %v4676
      %v4685 = vsel %vm4669, %v4661, %v4677
      %v4686 = vsel %vm4670, %v4662, %v4678
      %v4687 = vsel %vm4671, %v4663, %v4679
      %v4688 = vadd.f32 %v4680, 1.0
      %v4689 = vadd.f32 %v4681, 1.0
      %v4690 = vadd.f32 %v4682, 1.0
      %v4691 = vadd.f32 %v4683, 1.0
      %v4692 = vadd.f32 %v4684, 1.0
      %v4693 = vadd.f32 %v4685, 1.0
      %v4694 = vadd.f32 %v4686, 1.0
      %v4695 = vadd.f32 %v4687, 1.0
      %v4696 = vmul.f32 %v4488, %v4688
      %v4697 = vmul.f32 %v4489, %v4689
      %v4698 = vmul.f32 %v4490, %v4690
      %v4699 = vmul.f32 %v4491, %v4691
      %v4700 = vmul.f32 %v4492, %v4692
      %v4701 = vmul.f32 %v4493, %v4693
      %v4702 = vmul.f32 %v4494, %v4694
      %v4703 = vmul.f32 %v4495, %v4695
      %v4704 = vpack.c.bf16 %v4697, %v4696
      %v4705 = vpack.c.bf16 %v4699, %v4698
      %v4706 = vpack.c.bf16 %v4701, %v4700
      %v4707 = vpack.c.bf16 %v4703, %v4702
      %v4712 = vunpack.c.l.b16 %v4704
      %v4713 = vunpack.c.h.b16 %v4704
      %v4714 = vunpack.c.l.b16 %v4705
      %v4715 = vunpack.c.h.b16 %v4705
      %v4716 = vunpack.c.l.b16 %v4706
      %v4717 = vunpack.c.h.b16 %v4706
      %v4718 = vunpack.c.l.b16 %v4707
      %v4719 = vunpack.c.h.b16 %v4707
      %v4720 = vpack.c.b16 %v4712, %v4712
      %v4721 = vpack.c.b16 %v4713, %v4713
      %v4722 = vpack.c.b16 %v4714, %v4714
      %v4723 = vpack.c.b16 %v4715, %v4715
      %v4724 = vpack.c.b16 %v4716, %v4716
      %v4725 = vpack.c.b16 %v4717, %v4717
      %v4726 = vpack.c.b16 %v4718, %v4718
      %v4727 = vpack.c.b16 %v4719, %v4719
      %v4729 = vshrl.u32 %v4720, 16
      %v4731 = vrot.slane %v4729, 7
      %v4732 = vshll.u32 %v4720, 16
      %v4734 = vor.u32 %v4731, %v4732
      %v4736 = vshrl.u32 %v4721, 16
      %v4738 = vrot.slane %v4736, 7
      %v4739 = vshll.u32 %v4721, 16
      %v4741 = vor.u32 %v4738, %v4739
      %v4743 = vshrl.u32 %v4722, 16
      %v4745 = vrot.slane %v4743, 7
      %v4746 = vshll.u32 %v4722, 16
      %v4748 = vor.u32 %v4745, %v4746
      %v4750 = vshrl.u32 %v4723, 16
      %v4752 = vrot.slane %v4750, 7
      %v4753 = vshll.u32 %v4723, 16
      %v4755 = vor.u32 %v4752, %v4753
      %v4757 = vshrl.u32 %v4724, 16
      %v4759 = vrot.slane %v4757, 7
      %v4760 = vshll.u32 %v4724, 16
      %v4762 = vor.u32 %v4759, %v4760
      %v4764 = vshrl.u32 %v4725, 16
      %v4766 = vrot.slane %v4764, 7
      %v4767 = vshll.u32 %v4725, 16
      %v4769 = vor.u32 %v4766, %v4767
      %v4771 = vshrl.u32 %v4726, 16
      %v4773 = vrot.slane %v4771, 7
      %v4774 = vshll.u32 %v4726, 16
      %v4776 = vor.u32 %v4773, %v4774
      %v4778 = vshrl.u32 %v4727, 16
      %v4780 = vrot.slane %v4778, 7
      %v4781 = vshll.u32 %v4727, 16
      %v4783 = vor.u32 %v4780, %v4781
      %s4792 = scalar_lea.vmem [#allocation4], 8
      %vm4793 = vcmask 61440
      %vm4794 = vmand %vm4793, %vm2608
      %v4795 = vld [vmem:[%s4792] sm:$0x1f]
      %v4796 = vsel %vm4794, %v4734, %v4795
      %4797 = vst [vmem:[%s4792] sm:$0x1f] %v4796
      %v4798 = vld [vmem:[%s4792 + $0x8] sm:$0x1f]
      %v4799 = vsel %vm4794, %v4741, %v4798
      %4800 = vst [vmem:[%s4792 + $0x8] sm:$0x1f] %v4799
      %v4801 = vld [vmem:[%s4792 + $0x10] sm:$0x1f]
      %v4802 = vsel %vm4794, %v4748, %v4801
      %4803 = vst [vmem:[%s4792 + $0x10] sm:$0x1f] %v4802
      %v4804 = vld [vmem:[%s4792 + $0x18] sm:$0x1f]
      %v4805 = vsel %vm4794, %v4755, %v4804
      %4806 = vst [vmem:[%s4792 + $0x18] sm:$0x1f] %v4805
      %v4807 = vld [vmem:[%s4792 + $0x20] sm:$0x1f]
      %v4808 = vsel %vm4794, %v4762, %v4807
      %4809 = vst [vmem:[%s4792 + $0x20] sm:$0x1f] %v4808
      %v4810 = vld [vmem:[%s4792 + $0x28] sm:$0x1f]
      %v4811 = vsel %vm4794, %v4769, %v4810
      %4812 = vst [vmem:[%s4792 + $0x28] sm:$0x1f] %v4811
      %v4813 = vld [vmem:[%s4792 + $0x30] sm:$0x1f]
      %v4814 = vsel %vm4794, %v4776, %v4813
      %4815 = vst [vmem:[%s4792 + $0x30] sm:$0x1f] %v4814
      %v4816 = vld [vmem:[%s4792 + $0x38] sm:$0x1f]
      %v4817 = vsel %vm4794, %v4783, %v4816
      %4818 = vst [vmem:[%s4792 + $0x38] sm:$0x1f] %v4817
      %v4819 = vld [vmem:[#allocation4] sm:$0xf]
      %v4820 = vld [vmem:[#allocation4 + $0x8] sm:$0xf]
      %v4821 = vld [vmem:[#allocation4 + $0x10] sm:$0xf]
      %v4822 = vld [vmem:[#allocation4 + $0x18] sm:$0xf]
      %v4823 = vld [vmem:[#allocation4 + $0x20] sm:$0xf]
      %v4824 = vld [vmem:[#allocation4 + $0x28] sm:$0xf]
      %v4825 = vld [vmem:[#allocation4 + $0x30] sm:$0xf]
      %v4826 = vld [vmem:[#allocation4 + $0x38] sm:$0xf]
      %v4835 = vunpack.c.l.b16 %v4819
      %v4836 = vunpack.c.l.b16 %v4820
      %v4837 = vunpack.c.l.b16 %v4821
      %v4838 = vunpack.c.l.b16 %v4822
      %v4839 = vunpack.c.l.b16 %v4823
      %v4840 = vunpack.c.l.b16 %v4824
      %v4841 = vunpack.c.l.b16 %v4825
      %v4842 = vunpack.c.l.b16 %v4826
      %v4843 = vpack.c.b16 %v4836, %v4835
      %v4844 = vpack.c.b16 %v4838, %v4837
      %v4845 = vpack.c.b16 %v4840, %v4839
      %v4846 = vpack.c.b16 %v4842, %v4841
      %4851 = vst.msk [vmem:[#allocation5] sm:$0xff] %vm664, %v4843
      %4852 = vst.msk [vmem:[#allocation5 + $0x8] sm:$0xff] %vm664, %v4844
      %4853 = vst.msk [vmem:[#allocation5 + $0x10] sm:$0xff] %vm664, %v4845
      %4854 = vst.msk [vmem:[#allocation5 + $0x18] sm:$0xff] %vm664, %v4846
      %v4855 = vld [vmem:[#allocation4] sm:$0x1f]
      %v4856 = vld [vmem:[#allocation4 + $0x8] sm:$0x1f]
      %v4857 = vld [vmem:[#allocation4 + $0x10] sm:$0x1f]
      %v4858 = vld [vmem:[#allocation4 + $0x18] sm:$0x1f]
      %v4859 = vld [vmem:[#allocation4 + $0x20] sm:$0x1f]
      %v4860 = vld [vmem:[#allocation4 + $0x28] sm:$0x1f]
      %v4861 = vld [vmem:[#allocation4 + $0x30] sm:$0x1f]
      %v4862 = vld [vmem:[#allocation4 + $0x38] sm:$0x1f]
      %v4871 = vunpack.c.l.b16 %v4855
      %v4872 = vunpack.c.h.b16 %v4855
      %v4873 = vunpack.c.l.b16 %v4856
      %v4874 = vunpack.c.h.b16 %v4856
      %v4875 = vunpack.c.l.b16 %v4857
      %v4876 = vunpack.c.h.b16 %v4857
      %v4877 = vunpack.c.l.b16 %v4858
      %v4878 = vunpack.c.h.b16 %v4858
      %v4879 = vunpack.c.l.b16 %v4859
      %v4880 = vunpack.c.h.b16 %v4859
      %v4881 = vunpack.c.l.b16 %v4860
      %v4882 = vunpack.c.h.b16 %v4860
      %v4883 = vunpack.c.l.b16 %v4861
      %v4884 = vunpack.c.h.b16 %v4861
      %v4885 = vunpack.c.l.b16 %v4862
      %v4886 = vunpack.c.h.b16 %v4862
      %v4887 = vpack.c.b16 %v4871, %v4871
      %v4888 = vpack.c.b16 %v4872, %v4872
      %v4889 = vpack.c.b16 %v4873, %v4873
      %v4890 = vpack.c.b16 %v4874, %v4874
      %v4891 = vpack.c.b16 %v4875, %v4875
      %v4892 = vpack.c.b16 %v4876, %v4876
      %v4893 = vpack.c.b16 %v4877, %v4877
      %v4894 = vpack.c.b16 %v4878, %v4878
      %v4895 = vpack.c.b16 %v4879, %v4879
      %v4896 = vpack.c.b16 %v4880, %v4880
      %v4897 = vpack.c.b16 %v4881, %v4881
      %v4898 = vpack.c.b16 %v4882, %v4882
      %v4899 = vpack.c.b16 %v4883, %v4883
      %v4900 = vpack.c.b16 %v4884, %v4884
      %v4901 = vpack.c.b16 %v4885, %v4885
      %v4902 = vpack.c.b16 %v4886, %v4886
      %v4904 = vshrl.u32 %v4887, 16
      %v4906 = vrot.slane %v4904, 4
      %v4907 = vshll.u32 %v4887, 16
      %v4909 = vrot.slane %v4907, 5
      %v4910 = vor.u32 %v4906, %v4909
      %v4911 = vrot.slane %v4910, 4
      %v4913 = vshll.u32 %v4888, 16
      %v4915 = vrot.slane %v4913, 5
      %v4916 = vsel %vm2794, %v4911, %v4915
      %v4918 = vshrl.u32 %v4889, 16
      %v4920 = vrot.slane %v4918, 4
      %v4921 = vshll.u32 %v4889, 16
      %v4923 = vrot.slane %v4921, 5
      %v4924 = vor.u32 %v4920, %v4923
      %v4925 = vrot.slane %v4924, 4
      %v4927 = vshll.u32 %v4890, 16
      %v4929 = vrot.slane %v4927, 5
      %v4930 = vsel %vm2794, %v4925, %v4929
      %v4932 = vshrl.u32 %v4891, 16
      %v4934 = vrot.slane %v4932, 4
      %v4935 = vshll.u32 %v4891, 16
      %v4937 = vrot.slane %v4935, 5
      %v4938 = vor.u32 %v4934, %v4937
      %v4939 = vrot.slane %v4938, 4
      %v4941 = vshll.u32 %v4892, 16
      %v4943 = vrot.slane %v4941, 5
      %v4944 = vsel %vm2794, %v4939, %v4943
      %v4946 = vshrl.u32 %v4893, 16
      %v4948 = vrot.slane %v4946, 4
      %v4949 = vshll.u32 %v4893, 16
      %v4951 = vrot.slane %v4949, 5
      %v4952 = vor.u32 %v4948, %v4951
      %v4953 = vrot.slane %v4952, 4
      %v4955 = vshll.u32 %v4894, 16
      %v4957 = vrot.slane %v4955, 5
      %v4958 = vsel %vm2794, %v4953, %v4957
      %v4960 = vshrl.u32 %v4895, 16
      %v4962 = vrot.slane %v4960, 4
      %v4963 = vshll.u32 %v4895, 16
      %v4965 = vrot.slane %v4963, 5
      %v4966 = vor.u32 %v4962, %v4965
      %v4967 = vrot.slane %v4966, 4
      %v4969 = vshll.u32 %v4896, 16
      %v4971 = vrot.slane %v4969, 5
      %v4972 = vsel %vm2794, %v4967, %v4971
      %v4974 = vshrl.u32 %v4897, 16
      %v4976 = vrot.slane %v4974, 4
      %v4977 = vshll.u32 %v4897, 16
      %v4979 = vrot.slane %v4977, 5
      %v4980 = vor.u32 %v4976, %v4979
      %v4981 = vrot.slane %v4980, 4
      %v4983 = vshll.u32 %v4898, 16
      %v4985 = vrot.slane %v4983, 5
      %v4986 = vsel %vm2794, %v4981, %v4985
      %v4988 = vshrl.u32 %v4899, 16
      %v4990 = vrot.slane %v4988, 4
      %v4991 = vshll.u32 %v4899, 16
      %v4993 = vrot.slane %v4991, 5
      %v4994 = vor.u32 %v4990, %v4993
      %v4995 = vrot.slane %v4994, 4
      %v4997 = vshll.u32 %v4900, 16
      %v4999 = vrot.slane %v4997, 5
      %v5000 = vsel %vm2794, %v4995, %v4999
      %v5002 = vshrl.u32 %v4901, 16
      %v5004 = vrot.slane %v5002, 4
      %v5005 = vshll.u32 %v4901, 16
      %v5007 = vrot.slane %v5005, 5
      %v5008 = vor.u32 %v5004, %v5007
      %v5009 = vrot.slane %v5008, 4
      %v5011 = vshll.u32 %v4902, 16
      %v5013 = vrot.slane %v5011, 5
      %v5014 = vsel %vm2794, %v5009, %v5013
      %v5015 = vunpack.c.l.b16 %v4916
      %v5016 = vunpack.c.l.b16 %v4930
      %v5017 = vunpack.c.l.b16 %v4944
      %v5018 = vunpack.c.l.b16 %v4958
      %v5019 = vunpack.c.l.b16 %v4972
      %v5020 = vunpack.c.l.b16 %v4986
      %v5021 = vunpack.c.l.b16 %v5000
      %v5022 = vunpack.c.l.b16 %v5014
      %v5023 = vpack.c.b16 %v5016, %v5015
      %v5024 = vpack.c.b16 %v5018, %v5017
      %v5025 = vpack.c.b16 %v5020, %v5019
      %v5026 = vpack.c.b16 %v5022, %v5021
      %5027 = vrot.lane.b32.xlu0 %v5023, 8
      %v5028 = vpop.permute.xlu0 %5027
      %5029 = vrot.lane.b32.xlu0 %v5024, 8
      %v5030 = vpop.permute.xlu0 %5029
      %5031 = vrot.lane.b32.xlu0 %v5025, 8
      %v5032 = vpop.permute.xlu0 %5031
      %5033 = vrot.lane.b32.xlu0 %v5026, 8
      %v5034 = vpop.permute.xlu0 %5033
      %vm5039 = vcmask 130112
      %5040 = vst.msk [vmem:[#allocation5] sm:$0xff] %vm5039, %v5028
      %5041 = vst.msk [vmem:[#allocation5 + $0x8] sm:$0xff] %vm5039, %v5030
      %5042 = vst.msk [vmem:[#allocation5 + $0x10] sm:$0xff] %vm5039, %v5032
      %5043 = vst.msk [vmem:[#allocation5 + $0x18] sm:$0xff] %vm5039, %v5034
      %v5044 = vld [vmem:[#allocation4] sm:$0x1e]
      %v5045 = vld [vmem:[#allocation4 + $0x8] sm:$0x1e]
      %v5046 = vld [vmem:[#allocation4 + $0x10] sm:$0x1e]
      %v5047 = vld [vmem:[#allocation4 + $0x18] sm:$0x1e]
      %v5048 = vld [vmem:[#allocation4 + $0x20] sm:$0x1e]
      %v5049 = vld [vmem:[#allocation4 + $0x28] sm:$0x1e]
      %v5050 = vld [vmem:[#allocation4 + $0x30] sm:$0x1e]
      %v5051 = vld [vmem:[#allocation4 + $0x38] sm:$0x1e]
      %v5060 = vunpack.c.l.b16 %v5044
      %v5061 = vunpack.c.h.b16 %v5044
      %v5062 = vunpack.c.l.b16 %v5045
      %v5063 = vunpack.c.h.b16 %v5045
      %v5064 = vunpack.c.l.b16 %v5046
      %v5065 = vunpack.c.h.b16 %v5046
      %v5066 = vunpack.c.l.b16 %v5047
      %v5067 = vunpack.c.h.b16 %v5047
      %v5068 = vunpack.c.l.b16 %v5048
      %v5069 = vunpack.c.h.b16 %v5048
      %v5070 = vunpack.c.l.b16 %v5049
      %v5071 = vunpack.c.h.b16 %v5049
      %v5072 = vunpack.c.l.b16 %v5050
      %v5073 = vunpack.c.h.b16 %v5050
      %v5074 = vunpack.c.l.b16 %v5051
      %v5075 = vunpack.c.h.b16 %v5051
      %v5076 = vpack.c.b16 %v5060, %v5060
      %v5077 = vpack.c.b16 %v5061, %v5061
      %v5078 = vpack.c.b16 %v5062, %v5062
      %v5079 = vpack.c.b16 %v5063, %v5063
      %v5080 = vpack.c.b16 %v5064, %v5064
      %v5081 = vpack.c.b16 %v5065, %v5065
      %v5082 = vpack.c.b16 %v5066, %v5066
      %v5083 = vpack.c.b16 %v5067, %v5067
      %v5084 = vpack.c.b16 %v5068, %v5068
      %v5085 = vpack.c.b16 %v5069, %v5069
      %v5086 = vpack.c.b16 %v5070, %v5070
      %v5087 = vpack.c.b16 %v5071, %v5071
      %v5088 = vpack.c.b16 %v5072, %v5072
      %v5089 = vpack.c.b16 %v5073, %v5073
      %v5090 = vpack.c.b16 %v5074, %v5074
      %v5091 = vpack.c.b16 %v5075, %v5075
      %vm5092 = vcmask 1042432
      %vm5093 = vcmask 1046532
      %vm5094 = vmor %vm5092, %vm5093
      %v5095 = vrot.slane %v5076, 5
      %v5096 = vrot.slane %v5095, 4
      %v5097 = vrot.slane %v5077, 5
      %v5098 = vsel %vm5094, %v5096, %v5097
      %v5099 = vrot.slane %v5078, 5
      %v5100 = vrot.slane %v5099, 4
      %v5101 = vrot.slane %v5079, 5
      %v5102 = vsel %vm5094, %v5100, %v5101
      %v5103 = vrot.slane %v5080, 5
      %v5104 = vrot.slane %v5103, 4
      %v5105 = vrot.slane %v5081, 5
      %v5106 = vsel %vm5094, %v5104, %v5105
      %v5107 = vrot.slane %v5082, 5
      %v5108 = vrot.slane %v5107, 4
      %v5109 = vrot.slane %v5083, 5
      %v5110 = vsel %vm5094, %v5108, %v5109
      %v5111 = vrot.slane %v5084, 5
      %v5112 = vrot.slane %v5111, 4
      %v5113 = vrot.slane %v5085, 5
      %v5114 = vsel %vm5094, %v5112, %v5113
      %v5115 = vrot.slane %v5086, 5
      %v5116 = vrot.slane %v5115, 4
      %v5117 = vrot.slane %v5087, 5
      %v5118 = vsel %vm5094, %v5116, %v5117
      %v5119 = vrot.slane %v5088, 5
      %v5120 = vrot.slane %v5119, 4
      %v5121 = vrot.slane %v5089, 5
      %v5122 = vsel %vm5094, %v5120, %v5121
      %v5123 = vrot.slane %v5090, 5
      %v5124 = vrot.slane %v5123, 4
      %v5125 = vrot.slane %v5091, 5
      %v5126 = vsel %vm5094, %v5124, %v5125
      %v5127 = vunpack.c.l.b16 %v5098
      %v5128 = vunpack.c.l.b16 %v5102
      %v5129 = vunpack.c.l.b16 %v5106
      %v5130 = vunpack.c.l.b16 %v5110
      %v5131 = vunpack.c.l.b16 %v5114
      %v5132 = vunpack.c.l.b16 %v5118
      %v5133 = vunpack.c.l.b16 %v5122
      %v5134 = vunpack.c.l.b16 %v5126
      %v5135 = vpack.c.b16 %v5128, %v5127
      %v5136 = vpack.c.b16 %v5130, %v5129
      %v5137 = vpack.c.b16 %v5132, %v5131
      %v5138 = vpack.c.b16 %v5134, %v5133
      %5139 = vrot.lane.b32.xlu0 %v5135, 16
      %v5140 = vpop.permute.xlu0 %5139
      %5141 = vrot.lane.b32.xlu0 %v5136, 16
      %v5142 = vpop.permute.xlu0 %5141
      %5143 = vrot.lane.b32.xlu0 %v5137, 16
      %v5144 = vpop.permute.xlu0 %5143
      %5145 = vrot.lane.b32.xlu0 %v5138, 16
      %v5146 = vpop.permute.xlu0 %5145
      %vm5151 = vcmask 195712
      %5152 = vst.msk [vmem:[#allocation5] sm:$0xff] %vm5151, %v5140
      %5153 = vst.msk [vmem:[#allocation5 + $0x8] sm:$0xff] %vm5151, %v5142
      %5154 = vst.msk [vmem:[#allocation5 + $0x10] sm:$0xff] %vm5151, %v5144
      %5155 = vst.msk [vmem:[#allocation5 + $0x18] sm:$0xff] %vm5151, %v5146
      %v5156 = vld [vmem:[%s4792] sm:$0xf]
      %v5157 = vld [vmem:[%s4792 + $0x8] sm:$0xf]
      %v5158 = vld [vmem:[%s4792 + $0x10] sm:$0xf]
      %v5159 = vld [vmem:[%s4792 + $0x18] sm:$0xf]
      %v5160 = vld [vmem:[%s4792 + $0x20] sm:$0xf]
      %v5161 = vld [vmem:[%s4792 + $0x28] sm:$0xf]
      %v5162 = vld [vmem:[%s4792 + $0x30] sm:$0xf]
      %v5163 = vld [vmem:[%s4792 + $0x38] sm:$0xf]
      %v5172 = vunpack.c.l.b16 %v5156
      %v5173 = vunpack.c.l.b16 %v5157
      %v5174 = vunpack.c.l.b16 %v5158
      %v5175 = vunpack.c.l.b16 %v5159
      %v5176 = vunpack.c.l.b16 %v5160
      %v5177 = vunpack.c.l.b16 %v5161
      %v5178 = vunpack.c.l.b16 %v5162
      %v5179 = vunpack.c.l.b16 %v5163
      %v5180 = vpack.c.b16 %v5173, %v5172
      %v5181 = vpack.c.b16 %v5175, %v5174
      %v5182 = vpack.c.b16 %v5177, %v5176
      %v5183 = vpack.c.b16 %v5179, %v5178
      %5184 = vrot.lane.b32.xlu0 %v5180, 24
      %v5185 = vpop.permute.xlu0 %5184
      %5186 = vrot.lane.b32.xlu0 %v5181, 24
      %v5187 = vpop.permute.xlu0 %5186
      %5188 = vrot.lane.b32.xlu0 %v5182, 24
      %v5189 = vpop.permute.xlu0 %5188
      %5190 = vrot.lane.b32.xlu0 %v5183, 24
      %v5191 = vpop.permute.xlu0 %5190
      %vm5196 = vcmask 261312
      %5197 = vst.msk [vmem:[#allocation5] sm:$0xff] %vm5196, %v5185
      %5198 = vst.msk [vmem:[#allocation5 + $0x8] sm:$0xff] %vm5196, %v5187
      %5199 = vst.msk [vmem:[#allocation5 + $0x10] sm:$0xff] %vm5196, %v5189
      %5200 = vst.msk [vmem:[#allocation5 + $0x18] sm:$0xff] %vm5196, %v5191
      %v5201 = vld [vmem:[%s4792] sm:$0x1f]
      %v5202 = vld [vmem:[%s4792 + $0x8] sm:$0x1f]
      %v5203 = vld [vmem:[%s4792 + $0x10] sm:$0x1f]
      %v5204 = vld [vmem:[%s4792 + $0x18] sm:$0x1f]
      %v5205 = vld [vmem:[%s4792 + $0x20] sm:$0x1f]
      %v5206 = vld [vmem:[%s4792 + $0x28] sm:$0x1f]
      %v5207 = vld [vmem:[%s4792 + $0x30] sm:$0x1f]
      %v5208 = vld [vmem:[%s4792 + $0x38] sm:$0x1f]
      %v5217 = vunpack.c.l.b16 %v5201
      %v5218 = vunpack.c.h.b16 %v5201
      %v5219 = vunpack.c.l.b16 %v5202
      %v5220 = vunpack.c.h.b16 %v5202
      %v5221 = vunpack.c.l.b16 %v5203
      %v5222 = vunpack.c.h.b16 %v5203
      %v5223 = vunpack.c.l.b16 %v5204
      %v5224 = vunpack.c.h.b16 %v5204
      %v5225 = vunpack.c.l.b16 %v5205
      %v5226 = vunpack.c.h.b16 %v5205
      %v5227 = vunpack.c.l.b16 %v5206
      %v5228 = vunpack.c.h.b16 %v5206
      %v5229 = vunpack.c.l.b16 %v5207
      %v5230 = vunpack.c.h.b16 %v5207
      %v5231 = vunpack.c.l.b16 %v5208
      %v5232 = vunpack.c.h.b16 %v5208
      %v5233 = vpack.c.b16 %v5217, %v5217
      %v5234 = vpack.c.b16 %v5218, %v5218
      %v5235 = vpack.c.b16 %v5219, %v5219
      %v5236 = vpack.c.b16 %v5220, %v5220
      %v5237 = vpack.c.b16 %v5221, %v5221
      %v5238 = vpack.c.b16 %v5222, %v5222
      %v5239 = vpack.c.b16 %v5223, %v5223
      %v5240 = vpack.c.b16 %v5224, %v5224
      %v5241 = vpack.c.b16 %v5225, %v5225
      %v5242 = vpack.c.b16 %v5226, %v5226
      %v5243 = vpack.c.b16 %v5227, %v5227
      %v5244 = vpack.c.b16 %v5228, %v5228
      %v5245 = vpack.c.b16 %v5229, %v5229
      %v5246 = vpack.c.b16 %v5230, %v5230
      %v5247 = vpack.c.b16 %v5231, %v5231
      %v5248 = vpack.c.b16 %v5232, %v5232
      %v5250 = vshrl.u32 %v5233, 16
      %v5252 = vrot.slane %v5250, 4
      %v5253 = vshll.u32 %v5233, 16
      %v5255 = vrot.slane %v5253, 5
      %v5256 = vor.u32 %v5252, %v5255
      %v5257 = vrot.slane %v5256, 4
      %v5259 = vshll.u32 %v5234, 16
      %v5261 = vrot.slane %v5259, 5
      %v5262 = vsel %vm2794, %v5257, %v5261
      %v5264 = vshrl.u32 %v5235, 16
      %v5266 = vrot.slane %v5264, 4
      %v5267 = vshll.u32 %v5235, 16
      %v5269 = vrot.slane %v5267, 5
      %v5270 = vor.u32 %v5266, %v5269
      %v5271 = vrot.slane %v5270, 4
      %v5273 = vshll.u32 %v5236, 16
      %v5275 = vrot.slane %v5273, 5
      %v5276 = vsel %vm2794, %v5271, %v5275
      %v5278 = vshrl.u32 %v5237, 16
      %v5280 = vrot.slane %v5278, 4
      %v5281 = vshll.u32 %v5237, 16
      %v5283 = vrot.slane %v5281, 5
      %v5284 = vor.u32 %v5280, %v5283
      %v5285 = vrot.slane %v5284, 4
      %v5287 = vshll.u32 %v5238, 16
      %v5289 = vrot.slane %v5287, 5
      %v5290 = vsel %vm2794, %v5285, %v5289
      %v5292 = vshrl.u32 %v5239, 16
      %v5294 = vrot.slane %v5292, 4
      %v5295 = vshll.u32 %v5239, 16
      %v5297 = vrot.slane %v5295, 5
      %v5298 = vor.u32 %v5294, %v5297
      %v5299 = vrot.slane %v5298, 4
      %v5301 = vshll.u32 %v5240, 16
      %v5303 = vrot.slane %v5301, 5
      %v5304 = vsel %vm2794, %v5299, %v5303
      %v5306 = vshrl.u32 %v5241, 16
      %v5308 = vrot.slane %v5306, 4
      %v5309 = vshll.u32 %v5241, 16
      %v5311 = vrot.slane %v5309, 5
      %v5312 = vor.u32 %v5308, %v5311
      %v5313 = vrot.slane %v5312, 4
      %v5315 = vshll.u32 %v5242, 16
      %v5317 = vrot.slane %v5315, 5
      %v5318 = vsel %vm2794, %v5313, %v5317
      %v5320 = vshrl.u32 %v5243, 16
      %v5322 = vrot.slane %v5320, 4
      %v5323 = vshll.u32 %v5243, 16
      %v5325 = vrot.slane %v5323, 5
      %v5326 = vor.u32 %v5322, %v5325
      %v5327 = vrot.slane %v5326, 4
      %v5329 = vshll.u32 %v5244, 16
      %v5331 = vrot.slane %v5329, 5
      %v5332 = vsel %vm2794, %v5327, %v5331
      %v5334 = vshrl.u32 %v5245, 16
      %v5336 = vrot.slane %v5334, 4
      %v5337 = vshll.u32 %v5245, 16
      %v5339 = vrot.slane %v5337, 5
      %v5340 = vor.u32 %v5336, %v5339
      %v5341 = vrot.slane %v5340, 4
      %v5343 = vshll.u32 %v5246, 16
      %v5345 = vrot.slane %v5343, 5
      %v5346 = vsel %vm2794, %v5341, %v5345
      %v5348 = vshrl.u32 %v5247, 16
      %v5350 = vrot.slane %v5348, 4
      %v5351 = vshll.u32 %v5247, 16
      %v5353 = vrot.slane %v5351, 5
      %v5354 = vor.u32 %v5350, %v5353
      %v5355 = vrot.slane %v5354, 4
      %v5357 = vshll.u32 %v5248, 16
      %v5359 = vrot.slane %v5357, 5
      %v5360 = vsel %vm2794, %v5355, %v5359
      %v5361 = vunpack.c.l.b16 %v5262
      %v5362 = vunpack.c.l.b16 %v5276
      %v5363 = vunpack.c.l.b16 %v5290
      %v5364 = vunpack.c.l.b16 %v5304
      %v5365 = vunpack.c.l.b16 %v5318
      %v5366 = vunpack.c.l.b16 %v5332
      %v5367 = vunpack.c.l.b16 %v5346
      %v5368 = vunpack.c.l.b16 %v5360
      %v5369 = vpack.c.b16 %v5362, %v5361
      %v5370 = vpack.c.b16 %v5364, %v5363
      %v5371 = vpack.c.b16 %v5366, %v5365
      %v5372 = vpack.c.b16 %v5368, %v5367
      %5373 = vrot.lane.b32.xlu0 %v5369, 32
      %v5374 = vpop.permute.xlu0 %5373
      %5375 = vrot.lane.b32.xlu0 %v5370, 32
      %v5376 = vpop.permute.xlu0 %5375
      %5377 = vrot.lane.b32.xlu0 %v5371, 32
      %v5378 = vpop.permute.xlu0 %5377
      %5379 = vrot.lane.b32.xlu0 %v5372, 32
      %v5380 = vpop.permute.xlu0 %5379
      %vm5385 = vcmask 326912
      %5386 = vst.msk [vmem:[#allocation5] sm:$0xff] %vm5385, %v5374
      %5387 = vst.msk [vmem:[#allocation5 + $0x8] sm:$0xff] %vm5385, %v5376
      %5388 = vst.msk [vmem:[#allocation5 + $0x10] sm:$0xff] %vm5385, %v5378
      %5389 = vst.msk [vmem:[#allocation5 + $0x18] sm:$0xff] %vm5385, %v5380
      %v5390 = vld [vmem:[%s4792] sm:$0x1e]
      %v5391 = vld [vmem:[%s4792 + $0x8] sm:$0x1e]
      %v5392 = vld [vmem:[%s4792 + $0x10] sm:$0x1e]
      %v5393 = vld [vmem:[%s4792 + $0x18] sm:$0x1e]
      %v5394 = vld [vmem:[%s4792 + $0x20] sm:$0x1e]
      %v5395 = vld [vmem:[%s4792 + $0x28] sm:$0x1e]
      %v5396 = vld [vmem:[%s4792 + $0x30] sm:$0x1e]
      %v5397 = vld [vmem:[%s4792 + $0x38] sm:$0x1e]
      %v5406 = vunpack.c.l.b16 %v5390
      %v5407 = vunpack.c.h.b16 %v5390
      %v5408 = vunpack.c.l.b16 %v5391
      %v5409 = vunpack.c.h.b16 %v5391
      %v5410 = vunpack.c.l.b16 %v5392
      %v5411 = vunpack.c.h.b16 %v5392
      %v5412 = vunpack.c.l.b16 %v5393
      %v5413 = vunpack.c.h.b16 %v5393
      %v5414 = vunpack.c.l.b16 %v5394
      %v5415 = vunpack.c.h.b16 %v5394
      %v5416 = vunpack.c.l.b16 %v5395
      %v5417 = vunpack.c.h.b16 %v5395
      %v5418 = vunpack.c.l.b16 %v5396
      %v5419 = vunpack.c.h.b16 %v5396
      %v5420 = vunpack.c.l.b16 %v5397
      %v5421 = vunpack.c.h.b16 %v5397
      %v5422 = vpack.c.b16 %v5406, %v5406
      %v5423 = vpack.c.b16 %v5407, %v5407
      %v5424 = vpack.c.b16 %v5408, %v5408
      %v5425 = vpack.c.b16 %v5409, %v5409
      %v5426 = vpack.c.b16 %v5410, %v5410
      %v5427 = vpack.c.b16 %v5411, %v5411
      %v5428 = vpack.c.b16 %v5412, %v5412
      %v5429 = vpack.c.b16 %v5413, %v5413
      %v5430 = vpack.c.b16 %v5414, %v5414
      %v5431 = vpack.c.b16 %v5415, %v5415
      %v5432 = vpack.c.b16 %v5416, %v5416
      %v5433 = vpack.c.b16 %v5417, %v5417
      %v5434 = vpack.c.b16 %v5418, %v5418
      %v5435 = vpack.c.b16 %v5419, %v5419
      %v5436 = vpack.c.b16 %v5420, %v5420
      %v5437 = vpack.c.b16 %v5421, %v5421
      %v5438 = vrot.slane %v5422, 5
      %v5439 = vrot.slane %v5438, 4
      %v5440 = vrot.slane %v5423, 5
      %v5441 = vsel %vm5094, %v5439, %v5440
      %v5442 = vrot.slane %v5424, 5
      %v5443 = vrot.slane %v5442, 4
      %v5444 = vrot.slane %v5425, 5
      %v5445 = vsel %vm5094, %v5443, %v5444
      %v5446 = vrot.slane %v5426, 5
      %v5447 = vrot.slane %v5446, 4
      %v5448 = vrot.slane %v5427, 5
      %v5449 = vsel %vm5094, %v5447, %v5448
      %v5450 = vrot.slane %v5428, 5
      %v5451 = vrot.slane %v5450, 4
      %v5452 = vrot.slane %v5429, 5
      %v5453 = vsel %vm5094, %v5451, %v5452
      %v5454 = vrot.slane %v5430, 5
      %v5455 = vrot.slane %v5454, 4
      %v5456 = vrot.slane %v5431, 5
      %v5457 = vsel %vm5094, %v5455, %v5456
      %v5458 = vrot.slane %v5432, 5
      %v5459 = vrot.slane %v5458, 4
      %v5460 = vrot.slane %v5433, 5
      %v5461 = vsel %vm5094, %v5459, %v5460
      %v5462 = vrot.slane %v5434, 5
      %v5463 = vrot.slane %v5462, 4
      %v5464 = vrot.slane %v5435, 5
      %v5465 = vsel %vm5094, %v5463, %v5464
      %v5466 = vrot.slane %v5436, 5
      %v5467 = vrot.slane %v5466, 4
      %v5468 = vrot.slane %v5437, 5
      %v5469 = vsel %vm5094, %v5467, %v5468
      %v5470 = vunpack.c.l.b16 %v5441
      %v5471 = vunpack.c.l.b16 %v5445
      %v5472 = vunpack.c.l.b16 %v5449
      %v5473 = vunpack.c.l.b16 %v5453
      %v5474 = vunpack.c.l.b16 %v5457
      %v5475 = vunpack.c.l.b16 %v5461
      %v5476 = vunpack.c.l.b16 %v5465
      %v5477 = vunpack.c.l.b16 %v5469
      %v5478 = vpack.c.b16 %v5471, %v5470
      %v5479 = vpack.c.b16 %v5473, %v5472
      %v5480 = vpack.c.b16 %v5475, %v5474
      %v5481 = vpack.c.b16 %v5477, %v5476
      %5482 = vrot.lane.b32.xlu0 %v5478, 40
      %v5483 = vpop.permute.xlu0 %5482
      %5484 = vrot.lane.b32.xlu0 %v5479, 40
      %v5485 = vpop.permute.xlu0 %5484
      %5486 = vrot.lane.b32.xlu0 %v5480, 40
      %v5487 = vpop.permute.xlu0 %5486
      %5488 = vrot.lane.b32.xlu0 %v5481, 40
      %v5489 = vpop.permute.xlu0 %5488
      %vm5494 = vcmask 392512
      %5495 = vst.msk [vmem:[#allocation5] sm:$0xff] %vm5494, %v5483
      %5496 = vst.msk [vmem:[#allocation5 + $0x8] sm:$0xff] %vm5494, %v5485
      %5497 = vst.msk [vmem:[#allocation5 + $0x10] sm:$0xff] %vm5494, %v5487
      %5498 = vst.msk [vmem:[#allocation5 + $0x18] sm:$0xff] %vm5494, %v5489
      %s5499 = scalar_lea.vmem [#allocation4], 16
      %v5500 = vld [vmem:[%s5499] sm:$0xf]
      %v5501 = vld [vmem:[%s5499 + $0x8] sm:$0xf]
      %v5502 = vld [vmem:[%s5499 + $0x10] sm:$0xf]
      %v5503 = vld [vmem:[%s5499 + $0x18] sm:$0xf]
      %v5504 = vld [vmem:[%s5499 + $0x20] sm:$0xf]
      %v5505 = vld [vmem:[%s5499 + $0x28] sm:$0xf]
      %v5506 = vld [vmem:[%s5499 + $0x30] sm:$0xf]
      %v5507 = vld [vmem:[%s5499 + $0x38] sm:$0xf]
      %v5516 = vunpack.c.l.b16 %v5500
      %v5517 = vunpack.c.l.b16 %v5501
      %v5518 = vunpack.c.l.b16 %v5502
      %v5519 = vunpack.c.l.b16 %v5503
      %v5520 = vunpack.c.l.b16 %v5504
      %v5521 = vunpack.c.l.b16 %v5505
      %v5522 = vunpack.c.l.b16 %v5506
      %v5523 = vunpack.c.l.b16 %v5507
      %v5524 = vpack.c.b16 %v5517, %v5516
      %v5525 = vpack.c.b16 %v5519, %v5518
      %v5526 = vpack.c.b16 %v5521, %v5520
      %v5527 = vpack.c.b16 %v5523, %v5522
      %5528 = vrot.lane.b32.xlu0 %v5524, 48
      %v5529 = vpop.permute.xlu0 %5528
      %5530 = vrot.lane.b32.xlu0 %v5525, 48
      %v5531 = vpop.permute.xlu0 %5530
      %5532 = vrot.lane.b32.xlu0 %v5526, 48
      %v5533 = vpop.permute.xlu0 %5532
      %5534 = vrot.lane.b32.xlu0 %v5527, 48
      %v5535 = vpop.permute.xlu0 %5534
      %vm5540 = vcmask 458112
      %5541 = vst.msk [vmem:[#allocation5] sm:$0xff] %vm5540, %v5529
      %5542 = vst.msk [vmem:[#allocation5 + $0x8] sm:$0xff] %vm5540, %v5531
      %5543 = vst.msk [vmem:[#allocation5 + $0x10] sm:$0xff] %vm5540, %v5533
      %5544 = vst.msk [vmem:[#allocation5 + $0x18] sm:$0xff] %vm5540, %v5535
      %v5545 = vld [vmem:[%s5499] sm:$0x1f]
      %v5546 = vld [vmem:[%s5499 + $0x8] sm:$0x1f]
      %v5547 = vld [vmem:[%s5499 + $0x10] sm:$0x1f]
      %v5548 = vld [vmem:[%s5499 + $0x18] sm:$0x1f]
      %v5549 = vld [vmem:[%s5499 + $0x20] sm:$0x1f]
      %v5550 = vld [vmem:[%s5499 + $0x28] sm:$0x1f]
      %v5551 = vld [vmem:[%s5499 + $0x30] sm:$0x1f]
      %v5552 = vld [vmem:[%s5499 + $0x38] sm:$0x1f]
      %v5561 = vunpack.c.l.b16 %v5545
      %v5562 = vunpack.c.h.b16 %v5545
      %v5563 = vunpack.c.l.b16 %v5546
      %v5564 = vunpack.c.h.b16 %v5546
      %v5565 = vunpack.c.l.b16 %v5547
      %v5566 = vunpack.c.h.b16 %v5547
      %v5567 = vunpack.c.l.b16 %v5548
      %v5568 = vunpack.c.h.b16 %v5548
      %v5569 = vunpack.c.l.b16 %v5549
      %v5570 = vunpack.c.h.b16 %v5549
      %v5571 = vunpack.c.l.b16 %v5550
      %v5572 = vunpack.c.h.b16 %v5550
      %v5573 = vunpack.c.l.b16 %v5551
      %v5574 = vunpack.c.h.b16 %v5551
      %v5575 = vunpack.c.l.b16 %v5552
      %v5576 = vunpack.c.h.b16 %v5552
      %v5577 = vpack.c.b16 %v5561, %v5561
      %v5578 = vpack.c.b16 %v5562, %v5562
      %v5579 = vpack.c.b16 %v5563, %v5563
      %v5580 = vpack.c.b16 %v5564, %v5564
      %v5581 = vpack.c.b16 %v5565, %v5565
      %v5582 = vpack.c.b16 %v5566, %v5566
      %v5583 = vpack.c.b16 %v5567, %v5567
      %v5584 = vpack.c.b16 %v5568, %v5568
      %v5585 = vpack.c.b16 %v5569, %v5569
      %v5586 = vpack.c.b16 %v5570, %v5570
      %v5587 = vpack.c.b16 %v5571, %v5571
      %v5588 = vpack.c.b16 %v5572, %v5572
      %v5589 = vpack.c.b16 %v5573, %v5573
      %v5590 = vpack.c.b16 %v5574, %v5574
      %v5591 = vpack.c.b16 %v5575, %v5575
      %v5592 = vpack.c.b16 %v5576, %v5576
      %v5594 = vshrl.u32 %v5577, 16
      %v5596 = vrot.slane %v5594, 4
      %v5597 = vshll.u32 %v5577, 16
      %v5599 = vrot.slane %v5597, 5
      %v5600 = vor.u32 %v5596, %v5599
      %v5601 = vrot.slane %v5600, 4
      %v5603 = vshll.u32 %v5578, 16
      %v5605 = vrot.slane %v5603, 5
      %v5606 = vsel %vm2794, %v5601, %v5605
      %v5608 = vshrl.u32 %v5579, 16
      %v5610 = vrot.slane %v5608, 4
      %v5611 = vshll.u32 %v5579, 16
      %v5613 = vrot.slane %v5611, 5
      %v5614 = vor.u32 %v5610, %v5613
      %v5615 = vrot.slane %v5614, 4
      %v5617 = vshll.u32 %v5580, 16
      %v5619 = vrot.slane %v5617, 5
      %v5620 = vsel %vm2794, %v5615, %v5619
      %v5622 = vshrl.u32 %v5581, 16
      %v5624 = vrot.slane %v5622, 4
      %v5625 = vshll.u32 %v5581, 16
      %v5627 = vrot.slane %v5625, 5
      %v5628 = vor.u32 %v5624, %v5627
      %v5629 = vrot.slane %v5628, 4
      %v5631 = vshll.u32 %v5582, 16
      %v5633 = vrot.slane %v5631, 5
      %v5634 = vsel %vm2794, %v5629, %v5633
      %v5636 = vshrl.u32 %v5583, 16
      %v5638 = vrot.slane %v5636, 4
      %v5639 = vshll.u32 %v5583, 16
      %v5641 = vrot.slane %v5639, 5
      %v5642 = vor.u32 %v5638, %v5641
      %v5643 = vrot.slane %v5642, 4
      %v5645 = vshll.u32 %v5584, 16
      %v5647 = vrot.slane %v5645, 5
      %v5648 = vsel %vm2794, %v5643, %v5647
      %v5650 = vshrl.u32 %v5585, 16
      %v5652 = vrot.slane %v5650, 4
      %v5653 = vshll.u32 %v5585, 16
      %v5655 = vrot.slane %v5653, 5
      %v5656 = vor.u32 %v5652, %v5655
      %v5657 = vrot.slane %v5656, 4
      %v5659 = vshll.u32 %v5586, 16
      %v5661 = vrot.slane %v5659, 5
      %v5662 = vsel %vm2794, %v5657, %v5661
      %v5664 = vshrl.u32 %v5587, 16
      %v5666 = vrot.slane %v5664, 4
      %v5667 = vshll.u32 %v5587, 16
      %v5669 = vrot.slane %v5667, 5
      %v5670 = vor.u32 %v5666, %v5669
      %v5671 = vrot.slane %v5670, 4
      %v5673 = vshll.u32 %v5588, 16
      %v5675 = vrot.slane %v5673, 5
      %v5676 = vsel %vm2794, %v5671, %v5675
      %v5678 = vshrl.u32 %v5589, 16
      %v5680 = vrot.slane %v5678, 4
      %v5681 = vshll.u32 %v5589, 16
      %v5683 = vrot.slane %v5681, 5
      %v5684 = vor.u32 %v5680, %v5683
      %v5685 = vrot.slane %v5684, 4
      %v5687 = vshll.u32 %v5590, 16
      %v5689 = vrot.slane %v5687, 5
      %v5690 = vsel %vm2794, %v5685, %v5689
      %v5692 = vshrl.u32 %v5591, 16
      %v5694 = vrot.slane %v5692, 4
      %v5695 = vshll.u32 %v5591, 16
      %v5697 = vrot.slane %v5695, 5
      %v5698 = vor.u32 %v5694, %v5697
      %v5699 = vrot.slane %v5698, 4
      %v5701 = vshll.u32 %v5592, 16
      %v5703 = vrot.slane %v5701, 5
      %v5704 = vsel %vm2794, %v5699, %v5703
      %v5705 = vunpack.c.l.b16 %v5606
      %v5706 = vunpack.c.l.b16 %v5620
      %v5707 = vunpack.c.l.b16 %v5634
      %v5708 = vunpack.c.l.b16 %v5648
      %v5709 = vunpack.c.l.b16 %v5662
      %v5710 = vunpack.c.l.b16 %v5676
      %v5711 = vunpack.c.l.b16 %v5690
      %v5712 = vunpack.c.l.b16 %v5704
      %v5713 = vpack.c.b16 %v5706, %v5705
      %v5714 = vpack.c.b16 %v5708, %v5707
      %v5715 = vpack.c.b16 %v5710, %v5709
      %v5716 = vpack.c.b16 %v5712, %v5711
      %5717 = vrot.lane.b32.xlu0 %v5713, 56
      %v5718 = vpop.permute.xlu0 %5717
      %5719 = vrot.lane.b32.xlu0 %v5714, 56
      %v5720 = vpop.permute.xlu0 %5719
      %5721 = vrot.lane.b32.xlu0 %v5715, 56
      %v5722 = vpop.permute.xlu0 %5721
      %5723 = vrot.lane.b32.xlu0 %v5716, 56
      %v5724 = vpop.permute.xlu0 %5723
      %vm5729 = vcmask 523712
      %5730 = vst.msk [vmem:[#allocation5] sm:$0xff] %vm5729, %v5718
      %5731 = vst.msk [vmem:[#allocation5 + $0x8] sm:$0xff] %vm5729, %v5720
      %5732 = vst.msk [vmem:[#allocation5 + $0x10] sm:$0xff] %vm5729, %v5722
      %5733 = vst.msk [vmem:[#allocation5 + $0x18] sm:$0xff] %vm5729, %v5724
      %v5734 = vld [vmem:[%s5499] sm:$0x1e]
      %v5735 = vld [vmem:[%s5499 + $0x8] sm:$0x1e]
      %v5736 = vld [vmem:[%s5499 + $0x10] sm:$0x1e]
      %v5737 = vld [vmem:[%s5499 + $0x18] sm:$0x1e]
      %v5738 = vld [vmem:[%s5499 + $0x20] sm:$0x1e]
      %v5739 = vld [vmem:[%s5499 + $0x28] sm:$0x1e]
      %v5740 = vld [vmem:[%s5499 + $0x30] sm:$0x1e]
      %v5741 = vld [vmem:[%s5499 + $0x38] sm:$0x1e]
      %v5750 = vunpack.c.l.b16 %v5734
      %v5751 = vunpack.c.h.b16 %v5734
      %v5752 = vunpack.c.l.b16 %v5735
      %v5753 = vunpack.c.h.b16 %v5735
      %v5754 = vunpack.c.l.b16 %v5736
      %v5755 = vunpack.c.h.b16 %v5736
      %v5756 = vunpack.c.l.b16 %v5737
      %v5757 = vunpack.c.h.b16 %v5737
      %v5758 = vunpack.c.l.b16 %v5738
      %v5759 = vunpack.c.h.b16 %v5738
      %v5760 = vunpack.c.l.b16 %v5739
      %v5761 = vunpack.c.h.b16 %v5739
      %v5762 = vunpack.c.l.b16 %v5740
      %v5763 = vunpack.c.h.b16 %v5740
      %v5764 = vunpack.c.l.b16 %v5741
      %v5765 = vunpack.c.h.b16 %v5741
      %v5766 = vpack.c.b16 %v5750, %v5750
      %v5767 = vpack.c.b16 %v5751, %v5751
      %v5768 = vpack.c.b16 %v5752, %v5752
      %v5769 = vpack.c.b16 %v5753, %v5753
      %v5770 = vpack.c.b16 %v5754, %v5754
      %v5771 = vpack.c.b16 %v5755, %v5755
      %v5772 = vpack.c.b16 %v5756, %v5756
      %v5773 = vpack.c.b16 %v5757, %v5757
      %v5774 = vpack.c.b16 %v5758, %v5758
      %v5775 = vpack.c.b16 %v5759, %v5759
      %v5776 = vpack.c.b16 %v5760, %v5760
      %v5777 = vpack.c.b16 %v5761, %v5761
      %v5778 = vpack.c.b16 %v5762, %v5762
      %v5779 = vpack.c.b16 %v5763, %v5763
      %v5780 = vpack.c.b16 %v5764, %v5764
      %v5781 = vpack.c.b16 %v5765, %v5765
      %v5782 = vrot.slane %v5766, 5
      %v5783 = vrot.slane %v5782, 4
      %v5784 = vrot.slane %v5767, 5
      %v5785 = vsel %vm5094, %v5783, %v5784
      %v5786 = vrot.slane %v5768, 5
      %v5787 = vrot.slane %v5786, 4
      %v5788 = vrot.slane %v5769, 5
      %v5789 = vsel %vm5094, %v5787, %v5788
      %v5790 = vrot.slane %v5770, 5
      %v5791 = vrot.slane %v5790, 4
      %v5792 = vrot.slane %v5771, 5
      %v5793 = vsel %vm5094, %v5791, %v5792
      %v5794 = vrot.slane %v5772, 5
      %v5795 = vrot.slane %v5794, 4
      %v5796 = vrot.slane %v5773, 5
      %v5797 = vsel %vm5094, %v5795, %v5796
      %v5798 = vrot.slane %v5774, 5
      %v5799 = vrot.slane %v5798, 4
      %v5800 = vrot.slane %v5775, 5
      %v5801 = vsel %vm5094, %v5799, %v5800
      %v5802 = vrot.slane %v5776, 5
      %v5803 = vrot.slane %v5802, 4
      %v5804 = vrot.slane %v5777, 5
      %v5805 = vsel %vm5094, %v5803, %v5804
      %v5806 = vrot.slane %v5778, 5
      %v5807 = vrot.slane %v5806, 4
      %v5808 = vrot.slane %v5779, 5
      %v5809 = vsel %vm5094, %v5807, %v5808
      %v5810 = vrot.slane %v5780, 5
      %v5811 = vrot.slane %v5810, 4
      %v5812 = vrot.slane %v5781, 5
      %v5813 = vsel %vm5094, %v5811, %v5812
      %v5814 = vunpack.c.l.b16 %v5785
      %v5815 = vunpack.c.l.b16 %v5789
      %v5816 = vunpack.c.l.b16 %v5793
      %v5817 = vunpack.c.l.b16 %v5797
      %v5818 = vunpack.c.l.b16 %v5801
      %v5819 = vunpack.c.l.b16 %v5805
      %v5820 = vunpack.c.l.b16 %v5809
      %v5821 = vunpack.c.l.b16 %v5813
      %v5822 = vpack.c.b16 %v5815, %v5814
      %v5823 = vpack.c.b16 %v5817, %v5816
      %v5824 = vpack.c.b16 %v5819, %v5818
      %v5825 = vpack.c.b16 %v5821, %v5820
      %5826 = vrot.lane.b32.xlu0 %v5822, 64
      %v5827 = vpop.permute.xlu0 %5826
      %5828 = vrot.lane.b32.xlu0 %v5823, 64
      %v5829 = vpop.permute.xlu0 %5828
      %5830 = vrot.lane.b32.xlu0 %v5824, 64
      %v5831 = vpop.permute.xlu0 %5830
      %5832 = vrot.lane.b32.xlu0 %v5825, 64
      %v5833 = vpop.permute.xlu0 %5832
      %vm5838 = vcmask 589312
      %5839 = vst.msk [vmem:[#allocation5] sm:$0xff] %vm5838, %v5827
      %5840 = vst.msk [vmem:[#allocation5 + $0x8] sm:$0xff] %vm5838, %v5829
      %5841 = vst.msk [vmem:[#allocation5 + $0x10] sm:$0xff] %vm5838, %v5831
      %5842 = vst.msk [vmem:[#allocation5 + $0x18] sm:$0xff] %vm5838, %v5833
      %v5843 = vld [vmem:[#allocation5] sm:$0xff]
      %v5844 = vld [vmem:[#allocation5 + $0x8] sm:$0xff]
      %v5845 = vld [vmem:[#allocation5 + $0x10] sm:$0xff]
      %v5846 = vld [vmem:[#allocation5 + $0x18] sm:$0xff]
      %v5847 = vld [vmem:[%s11] sm:$0xf]
      %v5848 = vld [vmem:[%s11 + $0x4] sm:$0xf]
      %v5849 = vld [vmem:[%s11 + $0x8] sm:$0xf]
      %v5850 = vld [vmem:[%s11 + $0xc] sm:$0xf]
      %v5851 = vld [vmem:[%s11 + $0x10] sm:$0xf]
      %v5852 = vld [vmem:[%s11 + $0x14] sm:$0xf]
      %v5853 = vld [vmem:[%s11 + $0x18] sm:$0xf]
      %v5854 = vld [vmem:[%s11 + $0x1c] sm:$0xf]
      %v5855 = vld [vmem:[%s11 + $0x20] sm:$0xf]
      %v5856 = vld [vmem:[%s12] sm:$0x1]
      %v5858 = vlaneseq
      %v5859 = vshrl.u32 %v5858, 7
      %v5860 = vsub.s32 0, %v5859
      %v5861 = vrot.slane %v5856, %v5860
      %v5872 = vunpack.c.l.b16 %v5847
      %v5873 = vunpack.c.l.b16 %v5848
      %v5874 = vunpack.c.l.b16 %v5849
      %v5875 = vunpack.c.l.b16 %v5850
      %v5876 = vunpack.c.l.b16 %v5851
      %v5877 = vunpack.c.l.b16 %v5852
      %v5878 = vunpack.c.l.b16 %v5853
      %v5879 = vunpack.c.l.b16 %v5854
      %v5880 = vunpack.c.l.b16 %v5855
      %v5881 = vpack.c.b16 %v5873, %v5872
      %v5882 = vpack.c.b16 %v5875, %v5874
      %v5883 = vpack.c.b16 %v5877, %v5876
      %v5884 = vpack.c.b16 %v5879, %v5878
      %v5885 = vpack.c.b16 %v5880, %v5880
      %vm5890 = vcmask 588800
      %v5892 = vsel %vm5890, %v5843, 0
      %v5895 = vsel %vm5890, %v5844, 0
      %v5898 = vsel %vm5890, %v5845, 0
      %v5901 = vsel %vm5890, %v5846, 0
      %v5904 = vsel %vm839, %v5885, 0
      %5906 = vmatprep.subr.bf16.mxu0 0
      %5907 = vmatpush1.bf16.msra.mxu0 %v5881
      %5908 = vmatprep.subr.bf16.mxu0 0
      %5909 = vmatpush1.bf16.msra.mxu0 %v5882
      %5910 = vmatprep.subr.bf16.mxu0 0
      %5911 = vmatpush1.bf16.msra.mxu0 %v5883
      %5912 = vmatprep.subr.bf16.mxu0 0
      %5913 = vmatpush1.bf16.msra.mxu0 %v5884
      %5914 = vmatprep.subr.bf16.mxu0 0
      %5915 = vmatpush1.bf16.msra.mxu0 %v5904
      %5916 = vmatprep.subr.bf16.mxu0 0
      %5917 = vmatpush1.bf16.msra.mxu0 0
      %5918 = vmatprep.subr.bf16.mxu0 0
      %5919 = vmatpush1.bf16.msra.mxu0 0
      %5920 = vmatprep.subr.bf16.mxu0 0
      %5921 = vmatpush1.bf16.msra.mxu0 0
      %5922 = vmatprep.subr.bf16.mxu0 0
      %5923 = vmatpush1.bf16.msra.mxu0 0
      %5924 = vmatprep.subr.bf16.mxu0 0
      %5925 = vmatpush1.bf16.msra.mxu0 0
      %5926 = vmatprep.subr.bf16.mxu0 0
      %5927 = vmatpush1.bf16.msra.mxu0 0
      %5928 = vmatprep.subr.bf16.mxu0 0
      %5929 = vmatpush1.bf16.msra.mxu0 0
      %5930 = vmatprep.subr.bf16.mxu0 0
      %5931 = vmatpush1.bf16.msra.mxu0 0
      %5932 = vmatprep.subr.bf16.mxu0 0
      %5933 = vmatpush1.bf16.msra.mxu0 0
      %5934 = vmatprep.subr.bf16.mxu0 0
      %5935 = vmatpush1.bf16.msra.mxu0 0
      %5936 = vmatprep.subr.bf16.mxu0 0
      %5937 = vmatpush1.bf16.msra.mxu0 0
      %5938 = vmatprep.mubr.bf16.mxu0 0
      %5939 = vmatmul.mubr.bf16.gmra.mrb[0].mxu0 %v5892
      %v5940 = vpop.f32.mrb[0].mxu0
      %v5941 = vadd.f32 %v5861, %v5940
      %v5942 = vpop.f32.mrb[0].mxu0
      %v5943 = vpop.f32.mrb[0].mxu0
      %v5944 = vadd.f32 %v5861, %v5943
      %v5945 = vpop.f32.mrb[0].mxu0
      %5946 = vmatprep.mubr.bf16.mxu0 0
      %5947 = vmatmul.mubr.bf16.gmra.mrb[0].mxu0 %v5895
      %v5948 = vpop.f32.mrb[0].mxu0
      %v5949 = vadd.f32 %v5861, %v5948
      %v5950 = vpop.f32.mrb[0].mxu0
      %v5951 = vpop.f32.mrb[0].mxu0
      %v5952 = vadd.f32 %v5861, %v5951
      %v5953 = vpop.f32.mrb[0].mxu0
      %5954 = vmatprep.mubr.bf16.mxu0 0
      %5955 = vmatmul.mubr.bf16.gmra.mrb[0].mxu0 %v5898
      %v5956 = vpop.f32.mrb[0].mxu0
      %v5957 = vadd.f32 %v5861, %v5956
      %v5958 = vpop.f32.mrb[0].mxu0
      %v5959 = vpop.f32.mrb[0].mxu0
      %v5960 = vadd.f32 %v5861, %v5959
      %v5961 = vpop.f32.mrb[0].mxu0
      %5962 = vmatprep.mubr.bf16.mxu0 0
      %5963 = vmatmul.mubr.bf16.gmra.mrb[0].mxu0 %v5901
      %v5964 = vpop.f32.mrb[0].mxu0
      %v5965 = vadd.f32 %v5861, %v5964
      %v5966 = vpop.f32.mrb[0].mxu0
      %v5967 = vpop.f32.mrb[0].mxu0
      %v5968 = vadd.f32 %v5861, %v5967
      %v5969 = vpop.f32.mrb[0].mxu0
      %5970 = vdwg.mxu0
      %v5971 = vld [vmem:[%s13] sm:$0x1]
      %v5973 = vlaneseq
      %v5974 = vshrl.u32 %v5973, 7
      %v5975 = vsub.s32 0, %v5974
      %v5976 = vrot.slane %v5971, %v5975
      %v5978 = vmul.f32 %v1279, %v5976
      %v5979 = vmul.f32 %v1280, %v5976
      %v5980 = vmul.f32 %v1281, %v5976
      %v5981 = vmul.f32 %v1282, %v5976
      %v5982 = vmul.f32 %v1283, %v5976
      %v5983 = vmul.f32 %v1284, %v5976
      %v5984 = vmul.f32 %v1285, %v5976
      %v5985 = vmul.f32 %v1286, %v5976
      %v5986 = vld [vmem:[%s14] sm:$0x1]
      %v5988 = vlaneseq
      %v5989 = vshrl.u32 %v5988, 7
      %v5990 = vsub.s32 0, %v5989
      %v5991 = vrot.slane %v5986, %v5990
      %v5993 = vadd.f32 %v5978, %v5991
      %v5994 = vadd.f32 %v5979, %v5991
      %v5995 = vadd.f32 %v5980, %v5991
      %v5996 = vadd.f32 %v5981, %v5991
      %v5997 = vadd.f32 %v5982, %v5991
      %v5998 = vadd.f32 %v5983, %v5991
      %v5999 = vadd.f32 %v5984, %v5991
      %v6000 = vadd.f32 %v5985, %v5991
      %v6001 = vpack.c.bf16 %v5994, %v5993
      %v6002 = vpack.c.bf16 %v5996, %v5995
      %v6003 = vpack.c.bf16 %v5998, %v5997
      %v6004 = vpack.c.bf16 %v6000, %v5999
      %v6005 = vld [vmem:[%s15] sm:$0x3]
      %v6006 = vld [vmem:[%s16] sm:$0x1]
      %v6008 = vlaneseq
      %v6009 = vshrl.u32 %v6008, 7
      %v6010 = vsub.s32 0, %v6009
      %v6011 = vrot.slane %v6006, %v6010
      %v6014 = vsel %vm548, %v6001, 0
      %v6017 = vsel %vm548, %v6002, 0
      %v6020 = vsel %vm548, %v6003, 0
      %v6023 = vsel %vm548, %v6004, 0
      %v6026 = vsel %vm917, %v6005, 0
      %6028 = vmatprep.subr.bf16.mxu0 0
      %6029 = vmatpush1.bf16.msra.mxu0 %v6026
      %6030 = vmatprep.subr.bf16.mxu0 0
      %6031 = vmatpush1.bf16.msra.mxu0 0
      %6032 = vmatprep.subr.bf16.mxu0 0
      %6033 = vmatpush1.bf16.msra.mxu0 0
      %6034 = vmatprep.subr.bf16.mxu0 0
      %6035 = vmatpush1.bf16.msra.mxu0 0
      %6036 = vmatprep.subr.bf16.mxu0 0
      %6037 = vmatpush1.bf16.msra.mxu0 0
      %6038 = vmatprep.subr.bf16.mxu0 0
      %6039 = vmatpush1.bf16.msra.mxu0 0
      %6040 = vmatprep.subr.bf16.mxu0 0
      %6041 = vmatpush1.bf16.msra.mxu0 0
      %6042 = vmatprep.subr.bf16.mxu0 0
      %6043 = vmatpush1.bf16.msra.mxu0 0
      %6044 = vmatprep.subr.bf16.mxu0 0
      %6045 = vmatpush1.bf16.msra.mxu0 0
      %6046 = vmatprep.subr.bf16.mxu0 0
      %6047 = vmatpush1.bf16.msra.mxu0 0
      %6048 = vmatprep.subr.bf16.mxu0 0
      %6049 = vmatpush1.bf16.msra.mxu0 0
      %6050 = vmatprep.subr.bf16.mxu0 0
      %6051 = vmatpush1.bf16.msra.mxu0 0
      %6052 = vmatprep.subr.bf16.mxu0 0
      %6053 = vmatpush1.bf16.msra.mxu0 0
      %6054 = vmatprep.subr.bf16.mxu0 0
      %6055 = vmatpush1.bf16.msra.mxu0 0
      %6056 = vmatprep.subr.bf16.mxu0 0
      %6057 = vmatpush1.bf16.msra.mxu0 0
      %6058 = vmatprep.subr.bf16.mxu0 0
      %6059 = vmatpush1.bf16.msra.mxu0 0
      %6060 = vmatprep.mubr.bf16.mxu0 0
      %6061 = vmatmul.mubr.bf16.gmra.mrb[0].mxu0 %v6014
      %v6062 = vpop.f32.mrb[0].mxu0
      %v6063 = vadd.f32 %v6011, %v6062
      %v6064 = vpop.f32.mrb[0].mxu0
      %v6065 = vpop.f32.mrb[0].mxu0
      %v6066 = vadd.f32 %v6011, %v6065
      %v6067 = vpop.f32.mrb[0].mxu0
      %6068 = vmatprep.mubr.bf16.mxu0 0
      %6069 = vmatmul.mubr.bf16.gmra.mrb[0].mxu0 %v6017
      %v6070 = vpop.f32.mrb[0].mxu0
      %v6071 = vadd.f32 %v6011, %v6070
      %v6072 = vpop.f32.mrb[0].mxu0
      %v6073 = vpop.f32.mrb[0].mxu0
      %v6074 = vadd.f32 %v6011, %v6073
      %v6075 = vpop.f32.mrb[0].mxu0
      %6076 = vmatprep.mubr.bf16.mxu0 0
      %6077 = vmatmul.mubr.bf16.gmra.mrb[0].mxu0 %v6020
      %v6078 = vpop.f32.mrb[0].mxu0
      %v6079 = vadd.f32 %v6011, %v6078
      %v6080 = vpop.f32.mrb[0].mxu0
      %v6081 = vpop.f32.mrb[0].mxu0
      %v6082 = vadd.f32 %v6011, %v6081
      %v6083 = vpop.f32.mrb[0].mxu0
      %6084 = vmatprep.mubr.bf16.mxu0 0
      %6085 = vmatmul.mubr.bf16.gmra.mrb[0].mxu0 %v6023
      %v6086 = vpop.f32.mrb[0].mxu0
      %v6087 = vadd.f32 %v6011, %v6086
      %v6088 = vpop.f32.mrb[0].mxu0
      %v6089 = vpop.f32.mrb[0].mxu0
      %v6090 = vadd.f32 %v6011, %v6089
      %v6091 = vpop.f32.mrb[0].mxu0
      %6092 = vdwg.mxu0
      %v6093 = vadd.f32 %v5941, %v6063
      %v6094 = vadd.f32 %v5944, %v6066
      %v6095 = vadd.f32 %v5949, %v6071
      %v6096 = vadd.f32 %v5952, %v6074
      %v6097 = vadd.f32 %v5957, %v6079
      %v6098 = vadd.f32 %v5960, %v6082
      %v6099 = vadd.f32 %v5965, %v6087
      %v6100 = vadd.f32 %v5968, %v6090
      %6101 = vxpose.xlu0.b32.start [1/16] %v6093, 128
      %6102 = vxpose.xlu0.b32.cont [2/16] %v6094, 128
      %6103 = vxpose.xlu0.b32.cont [3/16] %v6095, 128
      %6104 = vxpose.xlu0.b32.cont [4/16] %v6096, 128
      %6105 = vxpose.xlu0.b32.cont [5/16] %v6097, 128
      %6106 = vxpose.xlu0.b32.cont [6/16] %v6098, 128
      %6107 = vxpose.xlu0.b32.cont [7/16] %v6099, 128
      %6108 = vxpose.xlu0.b32.cont [8/16] %v6100, 128
      %6109 = vxpose.xlu0.b32.cont [9/16] 0.0, 128
      %6110 = vxpose.xlu0.b32.cont [10/16] 0.0, 128
      %6111 = vxpose.xlu0.b32.cont [11/16] 0.0, 128
      %6112 = vxpose.xlu0.b32.cont [12/16] 0.0, 128
      %6113 = vxpose.xlu0.b32.cont [13/16] 0.0, 128
      %6114 = vxpose.xlu0.b32.cont [14/16] 0.0, 128
      %6115 = vxpose.xlu0.b32.cont [15/16] 0.0, 128
      %6116 = vxpose.xlu0.b32.end [16/16] 0.0, 128
      %v6117 = vpop.trf.xlu0
      %v6118 = vpop.trf.xlu0
      %v6119 = vpop.trf.xlu0
      %v6120 = vpop.trf.xlu0
      %v6121 = vpop.trf.xlu0
      %v6122 = vpop.trf.xlu0
      %v6123 = vpop.trf.xlu0
      %v6124 = vpop.trf.xlu0
      %v6125 = vpop.trf.xlu0
      %v6126 = vpop.trf.xlu0
      %v6127 = vpop.trf.xlu0
      %v6128 = vpop.trf.xlu0
      %v6129 = vpop.trf.xlu0
      %v6130 = vpop.trf.xlu0
      %v6131 = vpop.trf.xlu0
      %v6132 = vpop.trf.xlu0
      %vm6133 = vcmask 523264
      %6134 = vst.msk [vmem:[%s546] sm:$0xff] %vm6133, %v6117
      %p6135 = scmp.lt.s32.totalorder %s28, 1
      %s6136 = scalar_select %p6135, %s28, 1
      %s6137 = smul.addr %s6136, 8
      %s6138 = scalar_lea.vmem %s17, %s6137
      // Predicated region
      $region89: #{residual_block_forward.1} parent=87 // pred_check
        %p6139 = pneg %p408
      $region90: #{residual_block_forward.1} parent=87 // pred_check_branch
        %6141 = sbr.rel (%p6139) target = $region92
      $region91: #{residual_block_forward.1} parent=87 // pred_region
        _
      $region92: #{residual_block_forward.1} parent=87 // pred_fallthru
        _
    $region88: #{residual_block_forward.1} parent=5 // pred_fallthru
      _
    %p6142 = scmp.le.s32.totalorder 2, %s23
    // Predicated region
    $region93: #{residual_block_forward.1} parent=5 // pred_check
      %p6143 = pneg %p6142
    $region94: #{residual_block_forward.1} parent=5 // pred_check_branch
      %6145 = sbr.rel (%p6143) target = $region96
    $region95: #{residual_block_forward.1} parent=5 // pred_region
      %s6146 = ssub.s32 %s23, 2
      // Predicated region
      $region97: #{residual_block_forward.1} parent=95 // pred_check
        %p6147 = pneg %p414
      $region98: #{residual_block_forward.1} parent=95 // pred_check_branch
        %6149 = sbr.rel (%p6147) target = $region100
      $region99: #{residual_block_forward.1} parent=95 // pred_region
        %p6150 = scmp.lt.s32.totalorder %s29, 1
        %s6151 = scalar_select %p6150, %s29, 1
        %s6152 = smul.addr %s6151, 8
        %s6153 = scalar_lea.vmem %s17, %s6152
      $region100: #{residual_block_forward.1} parent=95 // pred_fallthru
        _
    $region96: #{residual_block_forward.1} parent=5 // pred_fallthru
      _
  $region6: #{residual_block_forward.1} parent=0 // loop_footer
    %s27 = sadd.s32 1, %s23
  $region7: #{residual_block_forward.1} parent=0 // loop_footer_branch
    %22 = sbr.rel target = $region3
  $region8: #{residual_block_forward.1} parent=0 // loop_exit
    _

</llo_original>
